<compile_context>
chip_gen: v6e
topology: v6e:2x2x1
jax: 0.10.0
libtpu: 0.0.40
codegen_flags: <defaults>
</compile_context>

<pallas_src>
import functools
import math

import jax
import jax.numpy as jnp
from jax.experimental import pallas as pl
from jax.experimental.pallas import tpu as pltpu

_GELU_C = math.sqrt(2.0 / math.pi)


@functools.lru_cache(maxsize=None)
def _vmem_limit():
    """Generation-aware scoped-VMEM budget (bytes)."""
    try:
        kind = jax.devices()[0].device_kind.lower()
    except Exception:  # pragma: no cover
        kind = ""
    if "v5" in kind or "v6" in kind:
        return 96 * 1024 * 1024          # 128 MiB physical
    if "7" in kind:
        return 48 * 1024 * 1024          # v7x: 64 MiB physical per core
    return 32 * 1024 * 1024              # conservative default


def _apply_activation(y, activation):
    if activation == "gelu_tanh":
        return 0.5 * y * (1.0 + jnp.tanh(_GELU_C * (y + 0.044715 * y * y * y)))
    return y


def _round_up(x, m):
    return ((x + m - 1) // m) * m


def _pick_divisor_tile(dim, target, align):
    """Largest `align`-multiple tile <= target that divides dim, else None."""
    t = (target // align) * align
    while t >= align:
        if dim % t == 0:
            return t
        t -= align
    return None


def _row_tiling(M, target):
    """(tm, M_padded) for the bf16 row (sublane) axis; 16-aligned tiles."""
    if M <= target:
        return M, M                      # single full-extent block
    t = _pick_divisor_tile(M, target, 16)
    if t is not None:
        return t, M
    return target, _round_up(M, target)  # caller pads rows, slices output


def _col_tile(dim, target):
    """Lane-axis tile: 128-aligned divisor, else full dim."""
    if dim <= target:
        return dim
    t = _pick_divisor_tile(dim, target, 128)
    return dim if t is None else t


# --------------------------- generic tiled matmul ----------------------------
# y = act(x @ w + b) [+ residual]; bf16 MXU operands, f32 accumulation.

def _matmul_noK_kernel(x_ref, w_ref, b_ref, *rest, activation, has_residual):
    if has_residual:
        r_ref, o_ref = rest
    else:
        (o_ref,) = rest
    y = jnp.dot(x_ref[...], w_ref[...],
                preferred_element_type=jnp.float32) + b_ref[...].astype(jnp.float32)
    y = _apply_activation(y, activation)
    if has_residual:
        y = y + r_ref[...].astype(jnp.float32)
    o_ref[...] = y.astype(o_ref.dtype)


def _matmul_K_kernel(x_ref, w_ref, b_ref, *rest, activation, has_residual):
    if has_residual:
        r_ref, o_ref, acc_ref = rest
    else:
        o_ref, acc_ref = rest

    @pl.when(pl.program_id(2) == 0)
    def _init():
        acc_ref[...] = jnp.zeros_like(acc_ref)

    acc_ref[...] += jnp.dot(x_ref[...], w_ref[...],
                            preferred_element_type=jnp.float32)

    @pl.when(pl.program_id(2) == pl.num_programs(2) - 1)
    def _finalize():
        y = acc_ref[...] + b_ref[...].astype(jnp.float32)
        y = _apply_activation(y, activation)
        if has_residual:
            y = y + r_ref[...].astype(jnp.float32)
        o_ref[...] = y.astype(o_ref.dtype)


def matmul(x, w, b, *, activation=None, residual=None, out_dtype=jnp.bfloat16,
           tm=512, tn=1024, tk_max=2048):
    M, K = x.shape
    N = w.shape[1]
    tm, m_pad = _row_tiling(M, tm)
    tn = _col_tile(N, tn)

    if m_pad != M:
        x = jnp.pad(x, ((0, m_pad - M), (0, 0)))
        if residual is not None:
            residual = jnp.pad(residual, ((0, m_pad - M), (0, 0)))

    has_res = residual is not None
    b2 = b.reshape(1, N)

    if K <= tk_max:
        # Full-K panel: no reduction grid axis, no accumulator scratch.
        in_specs = [
            pl.BlockSpec((tm, K), lambda i, j: (i, 0)),
            pl.BlockSpec((K, tn), lambda i, j: (0, j)),
            pl.BlockSpec((1, tn), lambda i, j: (0, j)),
        ]
        inputs = [x, w, b2]
        if has_res:
            in_specs.append(pl.BlockSpec((tm, tn), lambda i, j: (i, j)))
            inputs.append(residual)
        out = pl.pallas_call(
            functools.partial(_matmul_noK_kernel, activation=activation,
                              has_residual=has_res),
            out_shape=jax.ShapeDtypeStruct((m_pad, N), out_dtype),
            grid=(m_pad // tm, N // tn),
            in_specs=in_specs,
            out_specs=pl.BlockSpec((tm, tn), lambda i, j: (i, j)),
            compiler_params=pltpu.CompilerParams(
                dimension_semantics=("parallel", "parallel"),
                vmem_limit_bytes=_vmem_limit()),
        )(*inputs)
    else:
        tk = _col_tile(K, 1024)
        in_specs = [
            pl.BlockSpec((tm, tk), lambda i, j, k: (i, k)),
            pl.BlockSpec((tk, tn), lambda i, j, k: (k, j)),
            pl.BlockSpec((1, tn), lambda i, j, k: (0, j)),
        ]
        inputs = [x, w, b2]
        if has_res:
            in_specs.append(pl.BlockSpec((tm, tn), lambda i, j, k: (i, j)))
            inputs.append(residual)
        out = pl.pallas_call(
            functools.partial(_matmul_K_kernel, activation=activation,
                              has_residual=has_res),
            out_shape=jax.ShapeDtypeStruct((m_pad, N), out_dtype),
            grid=(m_pad // tm, N // tn, K // tk),
            in_specs=in_specs,
            out_specs=pl.BlockSpec((tm, tn), lambda i, j, k: (i, j)),
            scratch_shapes=[pltpu.VMEM((tm, tn), jnp.float32)],
            compiler_params=pltpu.CompilerParams(
                dimension_semantics=("parallel", "parallel", "arbitrary"),
                vmem_limit_bytes=_vmem_limit()),
        )(*inputs)

    return out[:M] if m_pad != M else out


# ----------------------- fused LayerNorm + matmul ----------------------------
# y = act(LN(x) * g + b_ln) @ w + b.  LN is computed once per row block
# (pl.when on the first N tile) into a bf16 VMEM scratch and reused across N.

def _ln_matmul_kernel(x_ref, g_ref, bln_ref, w_ref, b_ref, o_ref, xn_ref,
                      *, eps, activation):
    @pl.when(pl.program_id(1) == 0)
    def _layernorm():
        x = x_ref[...].astype(jnp.float32)
        mean = jnp.mean(x, axis=-1, keepdims=True)
        var = jnp.mean(jnp.square(x - mean), axis=-1, keepdims=True)
        xn = (x - mean) * jax.lax.rsqrt(var + eps)
        xn = xn * g_ref[...] + bln_ref[...]
        xn_ref[...] = xn.astype(jnp.bfloat16)

    y = jnp.dot(xn_ref[...], w_ref[...],
                preferred_element_type=jnp.float32) + b_ref[...].astype(jnp.float32)
    y = _apply_activation(y, activation)
    o_ref[...] = y.astype(o_ref.dtype)


def fused_ln_matmul(x, g, b_ln, w, b, *, activation=None,
                    out_dtype=jnp.bfloat16, eps=1e-6, tm=512, tn=1024):
    M, K = x.shape
    N = w.shape[1]
    tm, m_pad = _row_tiling(M, tm)
    tn = _col_tile(N, tn)
    if m_pad != M:
        x = jnp.pad(x, ((0, m_pad - M), (0, 0)))

    out = pl.pallas_call(
        functools.partial(_ln_matmul_kernel, eps=eps, activation=activation),
        out_shape=jax.ShapeDtypeStruct((m_pad, N), out_dtype),
        grid=(m_pad // tm, N // tn),
        in_specs=[
            pl.BlockSpec((tm, K), lambda i, j: (i, 0)),
            pl.BlockSpec((1, K), lambda i, j: (0, 0)),
            pl.BlockSpec((1, K), lambda i, j: (0, 0)),
            pl.BlockSpec((K, tn), lambda i, j: (0, j)),
            pl.BlockSpec((1, tn), lambda i, j: (0, j)),
        ],
        out_specs=pl.BlockSpec((tm, tn), lambda i, j: (i, j)),
        scratch_shapes=[pltpu.VMEM((tm, K), jnp.bfloat16)],
        compiler_params=pltpu.CompilerParams(
            # N axis must stay sequential per row-block (reuses the LN scratch).
            dimension_semantics=("parallel", "arbitrary"),
            vmem_limit_bytes=_vmem_limit()),
    )(x, g.reshape(1, K), b_ln.reshape(1, K), w, b.reshape(1, N))
    return out[:M] if m_pad != M else out


# --------------------------- multi-head attention ----------------------------
# Grid (B, nh): one head per step (no per-head unroll / vreg spill, >=2
# parallel steps for v7x).  QKV is reshaped head-major in the wrapper so each
# step gets lane-dense (S, dh) blocks; the Q scale is pre-folded into qkv_w.

def _attention_kernel(qkv_ref, o_ref):
    q = qkv_ref[0, 0, 0]        # (S, dh) bf16, already scaled by dh**-0.5
    k = qkv_ref[1, 0, 0]
    v = qkv_ref[2, 0, 0]
    s = jax.lax.dot_general(q, k, (((1,), (1,)), ((), ())),
                            preferred_element_type=jnp.float32)
    m = jnp.max(s, axis=-1, keepdims=True)
    p = jnp.exp(s - m)
    inv = pl.reciprocal(jnp.sum(p, axis=-1, keepdims=True), approx=True)
    o = jnp.dot(p.astype(jnp.bfloat16), v,
                preferred_element_type=jnp.float32) * inv
    o_ref[0, 0] = o.astype(o_ref.dtype)


def attention(qkv, B, S, nh, dh, *, out_dtype=jnp.bfloat16):
    # (B*S, 3H) -> head-major (3, B, nh, S, dh)  (layout plumbing in XLA).
    qkv3 = qkv.reshape(B, S, 3, nh, dh).transpose(2, 0, 3, 1, 4)
    # TODO(synk): at the real SigLIP dh=64 the (S, dh) blocks are not
    #             lane-dense; pack head pairs (dh*2=128) for full lane width.
    out = pl.pallas_call(
        _attention_kernel,
        out_shape=jax.ShapeDtypeStruct((B, nh, S, dh), out_dtype),
        grid=(B, nh),
        in_specs=[pl.BlockSpec((3, 1, 1, S, dh), lambda b, h: (0, b, h, 0, 0))],
        out_specs=pl.BlockSpec((1, 1, S, dh), lambda b, h: (b, h, 0, 0)),
        compiler_params=pltpu.CompilerParams(
            dimension_semantics=("parallel", "parallel"),
            vmem_limit_bytes=_vmem_limit()),
    )(qkv3)
    # head-major -> (B*S, H)
    return out.transpose(0, 2, 1, 3).reshape(B * S, nh * dh)


# --------------------------- parameter creation ------------------------------

def init_params(key, cfg):
    hidden = cfg["hidden"]
    patch = cfg["patch"]
    channels = cfg["channels"]
    inter = cfg["intermediate"]
    d_model = cfg["d_model"]
    nh = cfg["heads"]
    dh = hidden // nh
    num_patches = (cfg["image_size"] // patch) ** 2
    q_scale = dh ** -0.5

    def dense(k, fan_in, fan_out):
        kw, kb = jax.random.split(k)
        w = jax.random.normal(kw, (fan_in, fan_out), jnp.float32) * 0.02
        b = jax.random.normal(kb, (fan_out,), jnp.float32) * 0.02
        return w, b

    keys = jax.random.split(key, 4 + cfg["layers"])
    params = {}
    pw, pb = dense(keys[0], channels * patch * patch, hidden)
    params["patch_w"], params["patch_b"] = pw.astype(jnp.bfloat16), pb
    params["pos_emb"] = (jax.random.normal(keys[1], (num_patches, hidden),
                                           jnp.float32) * 0.02).astype(jnp.bfloat16)
    params["post_ln_g"] = jnp.ones((hidden,), jnp.float32)
    params["post_ln_b"] = jnp.zeros((hidden,), jnp.float32)
    prw, prb = dense(keys[2], hidden, d_model)
    params["proj_w"], params["proj_b"] = prw.astype(jnp.bfloat16), prb

    layers = []
    for li in range(cfg["layers"]):
        lk = jax.random.split(keys[4 + li], 6)
        layer = {
            "ln1_g": jnp.ones((hidden,), jnp.float32),
            "ln1_b": jnp.zeros((hidden,), jnp.float32),
            "ln2_g": jnp.ones((hidden,), jnp.float32),
            "ln2_b": jnp.zeros((hidden,), jnp.float32),
        }
        q_w, q_b = dense(lk[0], hidden, hidden)
        k_w, k_b = dense(lk[1], hidden, hidden)
        v_w, v_b = dense(lk[2], hidden, hidden)
        # Fold the dh**-0.5 attention scale into Q (free weight transform).
        q_w = q_w * q_scale
        q_b = q_b * q_scale
        layer["qkv_w"] = jnp.concatenate([q_w, k_w, v_w], axis=1).astype(jnp.bfloat16)
        layer["qkv_b"] = jnp.concatenate([q_b, k_b, v_b], axis=0)          # f32
        o_w, o_b = dense(lk[3], hidden, hidden)
        layer["o_w"], layer["o_b"] = o_w.astype(jnp.bfloat16), o_b
        f1w, f1b = dense(lk[4], hidden, inter)
        layer["fc1_w"], layer["fc1_b"] = f1w.astype(jnp.bfloat16), f1b
        f2w, f2b = dense(lk[5], inter, hidden)
        layer["fc2_w"], layer["fc2_b"] = f2w.astype(jnp.bfloat16), f2b
        layers.append(layer)
    params["layers"] = layers
    return params


# ------------------------------ forward pass ---------------------------------

def vision_encoder_forward(params, pixel_values, cfg):
    B, C, Hpx, Wpx = pixel_values.shape
    p = cfg["patch"]
    hp, wp = Hpx // p, Wpx // p
    S = hp * wp
    Hd = cfg["hidden"]
    nh = cfg["heads"]
    dh = Hd // nh

    # Patch embedding: stride==kernel conv == im2col reshape (glue) + matmul;
    # positional embedding added in the matmul epilogue (fused residual).
    patches = pixel_values.reshape(B, C, hp, p, wp, p)
    patches = patches.transpose(0, 2, 4, 1, 3, 5).reshape(B * S, C * p * p)
    patches = patches.astype(jnp.bfloat16)
    pos = jnp.broadcast_to(params["pos_emb"][None], (B, S, Hd)).reshape(B * S, Hd)
    x = matmul(patches, params["patch_w"], params["patch_b"], residual=pos)

    for layer in params["layers"]:
        # --- self-attention block (pre-LN) ---
        qkv = fused_ln_matmul(x, layer["ln1_g"], layer["ln1_b"],
                              layer["qkv_w"], layer["qkv_b"])
        attn = attention(qkv, B, S, nh, dh)
        x = matmul(attn, layer["o_w"], layer["o_b"], residual=x)

        # --- MLP block (pre-LN, tanh-GELU) ---
        h = fused_ln_matmul(x, layer["ln2_g"], layer["ln2_b"],
                            layer["fc1_w"], layer["fc1_b"],
                            activation="gelu_tanh")
        x = matmul(h, layer["fc2_w"], layer["fc2_b"], residual=x)

    # post layernorm + VisionEncoder.projection, fused.
    out = fused_ln_matmul(x, params["post_ln_g"], params["post_ln_b"],
                          params["proj_w"], params["proj_b"],
                          out_dtype=jnp.float32)
    return out.reshape(B, S, cfg["d_model"])


# ----------------------------------- main -------------------------------------

if __name__ == "__main__":
    cfg = dict(
        image_size=32,     # scaled-down stand-in for 224
        patch=8,           # stand-in for patch16
        channels=3,
        hidden=256,        # stand-in for 768 (lane-aligned: dh = 128)
        heads=2,
        layers=2,
        intermediate=512,  # stand-in for 3072
        d_model=128,
    )

    key = jax.random.PRNGKey(0)
    k_params, k_input = jax.random.split(key)
    params = init_params(k_params, cfg)

    pixel_values = jax.random.normal(
        k_input, (2, cfg["channels"], cfg["image_size"], cfg["image_size"]),
        jnp.float32)

    fwd = jax.jit(functools.partial(vision_encoder_forward, cfg=cfg))
    out = fwd(params, pixel_values)
    out = jax.block_until_ready(out)

    expected_seq = (cfg["image_size"] // cfg["patch"]) ** 2
    assert out.shape == (2, expected_seq, cfg["d_model"]), out.shape
    assert out.dtype == jnp.float32
    assert bool(jnp.all(jnp.isfinite(out)))
    print("KERNEL_OK")
</pallas_src>

<mosaic_0001>
module attributes {stable_mosaic.version = 11 : i64} {
  func.func @_matmul_noK_kernel(%arg0: i32, %arg1: i32, %arg2: memref<32x192xbf16, #tpu.memory_space<vmem>>, %arg3: memref<192x256xbf16, #tpu.memory_space<vmem>>, %arg4: memref<1x256xf32, #tpu.memory_space<vmem>>, %arg5: memref<32x256xbf16, #tpu.memory_space<vmem>>, %arg6: memref<32x256xbf16, #tpu.memory_space<vmem>>) attributes {dimension_semantics = [#tpu.dimension_semantics<parallel>, #tpu.dimension_semantics<parallel>], iteration_bounds = array<i64: 1, 1>, scalar_prefetch = 0 : i64, scratch_operands = 0 : i64, tpu.core_type = #tpu.core_type<tc>, window_params = [{transform_indices = @transform_0, window_bounds = array<i64: 32, 192>}, {transform_indices = @transform_1, window_bounds = array<i64: 192, 256>}, {transform_indices = @transform_2, window_bounds = array<i64: 1, 256>}, {transform_indices = @transform_3, window_bounds = array<i64: 32, 256>}, {transform_indices = @transform_4, window_bounds = array<i64: 32, 256>}]} {
    %c0 = arith.constant 0 : index
    %c0_0 = arith.constant 0 : index
    %0 = vector.load %arg2[%c0, %c0_0] : memref<32x192xbf16, #tpu.memory_space<vmem>>, vector<32x192xbf16>
    %c0_1 = arith.constant 0 : index
    %c0_2 = arith.constant 0 : index
    %1 = vector.load %arg3[%c0_1, %c0_2] : memref<192x256xbf16, #tpu.memory_space<vmem>>, vector<192x256xbf16>
    %cst = arith.constant dense<0.000000e+00> : vector<32x256xf32>
    %2 = tpu.matmul %0, %1, %cst {dimension_numbers = #tpu.dot_dimension_numbers<[1], [0], [0], [1], [0, 0, 1, 1], [], []>} : vector<32x192xbf16>, vector<192x256xbf16>, vector<32x256xf32> -> vector<32x256xf32>
    %c0_3 = arith.constant 0 : index
    %c0_4 = arith.constant 0 : index
    %3 = vector.load %arg4[%c0_3, %c0_4] : memref<1x256xf32, #tpu.memory_space<vmem>>, vector<1x256xf32>
    %4 = vector.broadcast %3 : vector<1x256xf32> to vector<32x256xf32>
    %5 = arith.addf %2, %4 : vector<32x256xf32>
    %c0_5 = arith.constant 0 : index
    %c0_6 = arith.constant 0 : index
    %6 = vector.load %arg5[%c0_5, %c0_6] : memref<32x256xbf16, #tpu.memory_space<vmem>>, vector<32x256xbf16>
    %7 = arith.extf %6 : vector<32x256xbf16> to vector<32x256xf32>
    %8 = arith.addf %5, %7 : vector<32x256xf32>
    %9 = arith.truncf %8 : vector<32x256xf32> to vector<32x256xbf16>
    %c0_7 = arith.constant 0 : index
    %c0_8 = arith.constant 0 : index
    %10 = vector.load %arg6[%c0_7, %c0_8] : memref<32x256xbf16, #tpu.memory_space<vmem>>, vector<32x256xbf16>
    tpu.vector_store %arg6[%c0_7, %c0_8], %9 {strides = array<i32>} : memref<32x256xbf16, #tpu.memory_space<vmem>>, vector<32x256xbf16>,
    return
  }
  func.func @transform_0(%arg0: i32, %arg1: i32) -> (i32, i32) {
    %c0_i32 = arith.constant 0 : i32
    %c0_i32_0 = arith.constant 0 : i32
    return %arg0, %c0_i32 : i32, i32
  }
  func.func @transform_1(%arg0: i32, %arg1: i32) -> (i32, i32) {
    %c0_i32 = arith.constant 0 : i32
    %c0_i32_0 = arith.constant 0 : i32
    return %c0_i32, %arg1 : i32, i32
  }
  func.func @transform_2(%arg0: i32, %arg1: i32) -> (i32, i32) {
    %c0_i32 = arith.constant 0 : i32
    %c0_i32_0 = arith.constant 0 : i32
    return %c0_i32, %arg1 : i32, i32
  }
  func.func @transform_3(%arg0: i32, %arg1: i32) -> (i32, i32) {
    %c0_i32 = arith.constant 0 : i32
    return %arg0, %arg1 : i32, i32
  }
  func.func @transform_4(%arg0: i32, %arg1: i32) -> (i32, i32) {
    %c0_i32 = arith.constant 0 : i32
    return %arg0, %arg1 : i32, i32
  }
}

module attributes {stable_mosaic.version = 11 : i64} {
  func.func @_ln_matmul_kernel(%arg0: i32, %arg1: i32, %arg2: memref<32x256xbf16, #tpu.memory_space<vmem>>, %arg3: memref<1x256xf32, #tpu.memory_space<vmem>>, %arg4: memref<1x256xf32, #tpu.memory_space<vmem>>, %arg5: memref<256x768xbf16, #tpu.memory_space<vmem>>, %arg6: memref<1x768xf32, #tpu.memory_space<vmem>>, %arg7: memref<32x768xbf16, #tpu.memory_space<vmem>>, %arg8: memref<32x256xbf16, #tpu.memory_space<vmem>>) attributes {dimension_semantics = [#tpu.dimension_semantics<parallel>, #tpu.dimension_semantics<arbitrary>], iteration_bounds = array<i64: 1, 1>, scalar_prefetch = 0 : i64, scratch_operands = 1 : i64, tpu.core_type = #tpu.core_type<tc>, window_params = [{transform_indices = @transform_0, window_bounds = array<i64: 32, 256>}, {pipeline_mode = #tpu.pipeline_mode<synchronous>, transform_indices = @transform_1, window_bounds = array<i64: 1, 256>}, {pipeline_mode = #tpu.pipeline_mode<synchronous>, transform_indices = @transform_2, window_bounds = array<i64: 1, 256>}, {transform_indices = @transform_3, window_bounds = array<i64: 256, 768>}, {transform_indices = @transform_4, window_bounds = array<i64: 1, 768>}, {transform_indices = @transform_5, window_bounds = array<i64: 32, 768>}]} {
    %c0_i32 = arith.constant 0 : i32
    %0 = arith.cmpi eq, %arg1, %c0_i32 : i32
    %1 = arith.extui %0 : i1 to i32
    %c0_i32_0 = arith.constant 0 : i32
    %2 = arith.cmpi ne, %1, %c0_i32_0 : i32
    scf.if %2 {
      %c0_8 = arith.constant 0 : index
      %c0_9 = arith.constant 0 : index
      %11 = vector.load %arg2[%c0_8, %c0_9] : memref<32x256xbf16, #tpu.memory_space<vmem>>, vector<32x256xbf16>
      %12 = arith.extf %11 : vector<32x256xbf16> to vector<32x256xf32>
      %cst_10 = arith.constant dense<0.000000e+00> : vector<32xf32>
      %13 = vector.multi_reduction <add>, %12, %cst_10 [1] : vector<32x256xf32> to vector<32xf32>
      %14 = vector.shape_cast %13 : vector<32xf32> to vector<32x1xf32>
      %cst_11 = arith.constant 2.560000e+02 : f32
      %15 = vector.broadcast %cst_11 : f32 to vector<32x1xf32>
      %16 = arith.divf %14, %15 : vector<32x1xf32>
      %17 = vector.broadcast %16 : vector<32x1xf32> to vector<32x256xf32>
      %18 = arith.subf %12, %17 : vector<32x256xf32>
      %19 = arith.mulf %18, %18 : vector<32x256xf32>
      %cst_12 = arith.constant dense<0.000000e+00> : vector<32xf32>
      %20 = vector.multi_reduction <add>, %19, %cst_12 [1] : vector<32x256xf32> to vector<32xf32>
      %21 = vector.shape_cast %20 : vector<32xf32> to vector<32x1xf32>
      %cst_13 = arith.constant 2.560000e+02 : f32
      %22 = vector.broadcast %cst_13 : f32 to vector<32x1xf32>
      %23 = arith.divf %21, %22 : vector<32x1xf32>
      %24 = vector.broadcast %16 : vector<32x1xf32> to vector<32x256xf32>
      %25 = arith.subf %12, %24 : vector<32x256xf32>
      %cst_14 = arith.constant 9.99999997E-7 : f32
      %26 = vector.broadcast %cst_14 : f32 to vector<32x1xf32>
      %27 = arith.addf %23, %26 : vector<32x1xf32>
      %28 = math.rsqrt %27 : vector<32x1xf32>
      %29 = vector.broadcast %28 : vector<32x1xf32> to vector<32x256xf32>
      %30 = arith.mulf %25, %29 : vector<32x256xf32>
      %c0_15 = arith.constant 0 : index
      %c0_16 = arith.constant 0 : index
      %31 = vector.load %arg3[%c0_15, %c0_16] : memref<1x256xf32, #tpu.memory_space<vmem>>, vector<1x256xf32>
      %32 = vector.broadcast %31 : vector<1x256xf32> to vector<32x256xf32>
      %33 = arith.mulf %30, %32 : vector<32x256xf32>
      %c0_17 = arith.constant 0 : index
      %c0_18 = arith.constant 0 : index
      %34 = vector.load %arg4[%c0_17, %c0_18] : memref<1x256xf32, #tpu.memory_space<vmem>>, vector<1x256xf32>
      %35 = vector.broadcast %34 : vector<1x256xf32> to vector<32x256xf32>
      %36 = arith.addf %33, %35 : vector<32x256xf32>
      %37 = arith.truncf %36 : vector<32x256xf32> to vector<32x256xbf16>
      %c0_19 = arith.constant 0 : index
      %c0_20 = arith.constant 0 : index
      %38 = vector.load %arg8[%c0_19, %c0_20] : memref<32x256xbf16, #tpu.memory_space<vmem>>, vector<32x256xbf16>
      tpu.vector_store %arg8[%c0_19, %c0_20], %37 {strides = array<i32>} : memref<32x256xbf16, #tpu.memory_space<vmem>>, vector<32x256xbf16>,
    } else {
    }
    %c0 = arith.constant 0 : index
    %c0_1 = arith.constant 0 : index
    %3 = vector.load %arg8[%c0, %c0_1] : memref<32x256xbf16, #tpu.memory_space<vmem>>, vector<32x256xbf16>
    %c0_2 = arith.constant 0 : index
    %c0_3 = arith.constant 0 : index
    %4 = vector.load %arg5[%c0_2, %c0_3] : memref<256x768xbf16, #tpu.memory_space<vmem>>, vector<256x768xbf16>
    %cst = arith.constant dense<0.000000e+00> : vector<32x768xf32>
    %5 = tpu.matmul %3, %4, %cst {dimension_numbers = #tpu.dot_dimension_numbers<[1], [0], [0], [1], [0, 0, 1, 1], [], []>} : vector<32x256xbf16>, vector<256x768xbf16>, vector<32x768xf32> -> vector<32x768xf32>
    %c0_4 = arith.constant 0 : index
    %c0_5 = arith.constant 0 : index
    %6 = vector.load %arg6[%c0_4, %c0_5] : memref<1x768xf32, #tpu.memory_space<vmem>>, vector<1x768xf32>
    %7 = vector.broadcast %6 : vector<1x768xf32> to vector<32x768xf32>
    %8 = arith.addf %5, %7 : vector<32x768xf32>
    %9 = arith.truncf %8 : vector<32x768xf32> to vector<32x768xbf16>
    %c0_6 = arith.constant 0 : index
    %c0_7 = arith.constant 0 : index
    %10 = vector.load %arg7[%c0_6, %c0_7] : memref<32x768xbf16, #tpu.memory_space<vmem>>, vector<32x768xbf16>
    tpu.vector_store %arg7[%c0_6, %c0_7], %9 {strides = array<i32>} : memref<32x768xbf16, #tpu.memory_space<vmem>>, vector<32x768xbf16>,
    return
  }
  func.func @transform_0(%arg0: i32, %arg1: i32) -> (i32, i32) {
    %c0_i32 = arith.constant 0 : i32
    %c0_i32_0 = arith.constant 0 : i32
    return %arg0, %c0_i32 : i32, i32
  }
  func.func @transform_1(%arg0: i32, %arg1: i32) -> (i32, i32) {
    %c0_i32 = arith.constant 0 : i32
    %c0_i32_0 = arith.constant 0 : i32
    %c0_i32_1 = arith.constant 0 : i32
    return %c0_i32, %c0_i32_0 : i32, i32
  }
  func.func @transform_2(%arg0: i32, %arg1: i32) -> (i32, i32) {
    %c0_i32 = arith.constant 0 : i32
    %c0_i32_0 = arith.constant 0 : i32
    %c0_i32_1 = arith.constant 0 : i32
    return %c0_i32, %c0_i32_0 : i32, i32
  }
  func.func @transform_3(%arg0: i32, %arg1: i32) -> (i32, i32) {
    %c0_i32 = arith.constant 0 : i32
    %c0_i32_0 = arith.constant 0 : i32
    return %c0_i32, %arg1 : i32, i32
  }
  func.func @transform_4(%arg0: i32, %arg1: i32) -> (i32, i32) {
    %c0_i32 = arith.constant 0 : i32
    %c0_i32_0 = arith.constant 0 : i32
    return %c0_i32, %arg1 : i32, i32
  }
  func.func @transform_5(%arg0: i32, %arg1: i32) -> (i32, i32) {
    %c0_i32 = arith.constant 0 : i32
    return %arg0, %arg1 : i32, i32
  }
}

module attributes {stable_mosaic.version = 11 : i64} {
  func.func @_attention_kernel(%arg0: i32, %arg1: i32, %arg2: memref<3x1x1x16x128xbf16, #tpu.memory_space<vmem>>, %arg3: memref<1x1x16x128xbf16, #tpu.memory_space<vmem>>) attributes {dimension_semantics = [#tpu.dimension_semantics<parallel>, #tpu.dimension_semantics<parallel>], iteration_bounds = array<i64: 2, 2>, scalar_prefetch = 0 : i64, scratch_operands = 0 : i64, tpu.core_type = #tpu.core_type<tc>, window_params = [{transform_indices = @transform_0, window_bounds = array<i64: 3, 1, 1, 16, 128>}, {transform_indices = @transform_1, window_bounds = array<i64: 1, 1, 16, 128>}]} {
    %c0 = arith.constant 0 : index
    %c0_0 = arith.constant 0 : index
    %c0_1 = arith.constant 0 : index
    %c0_2 = arith.constant 0 : index
    %c0_3 = arith.constant 0 : index
    %0 = vector.load %arg2[%c0, %c0_0, %c0_1, %c0_2, %c0_3] : memref<3x1x1x16x128xbf16, #tpu.memory_space<vmem>>, vector<1x1x1x16x128xbf16>
    %1 = vector.shape_cast %0 : vector<1x1x1x16x128xbf16> to vector<16x128xbf16>
    %c1 = arith.constant 1 : index
    %c0_4 = arith.constant 0 : index
    %c0_5 = arith.constant 0 : index
    %c0_6 = arith.constant 0 : index
    %c0_7 = arith.constant 0 : index
    %2 = vector.load %arg2[%c1, %c0_4, %c0_5, %c0_6, %c0_7] : memref<3x1x1x16x128xbf16, #tpu.memory_space<vmem>>, vector<1x1x1x16x128xbf16>
    %3 = vector.shape_cast %2 : vector<1x1x1x16x128xbf16> to vector<16x128xbf16>
    %c2 = arith.constant 2 : index
    %c0_8 = arith.constant 0 : index
    %c0_9 = arith.constant 0 : index
    %c0_10 = arith.constant 0 : index
    %c0_11 = arith.constant 0 : index
    %4 = vector.load %arg2[%c2, %c0_8, %c0_9, %c0_10, %c0_11] : memref<3x1x1x16x128xbf16, #tpu.memory_space<vmem>>, vector<1x1x1x16x128xbf16>
    %5 = vector.shape_cast %4 : vector<1x1x1x16x128xbf16> to vector<16x128xbf16>
    %cst = arith.constant dense<0.000000e+00> : vector<16x16xf32>
    %6 = tpu.matmul %1, %3, %cst {dimension_numbers = #tpu.dot_dimension_numbers<[1], [1], [0], [0], [0, 0, 1, 0], [], []>} : vector<16x128xbf16>, vector<16x128xbf16>, vector<16x16xf32> -> vector<16x16xf32>
    %cst_12 = arith.constant dense<0xFF800000> : vector<16xf32>
    %7 = vector.multi_reduction <maximumf>, %6, %cst_12 [1] : vector<16x16xf32> to vector<16xf32>
    %8 = vector.shape_cast %7 : vector<16xf32> to vector<16x1xf32>
    %9 = vector.broadcast %8 : vector<16x1xf32> to vector<16x16xf32>
    %10 = arith.subf %6, %9 : vector<16x16xf32>
    %11 = math.exp %10 : vector<16x16xf32>
    %cst_13 = arith.constant dense<0.000000e+00> : vector<16xf32>
    %12 = vector.multi_reduction <add>, %11, %cst_13 [1] : vector<16x16xf32> to vector<16xf32>
    %13 = vector.shape_cast %12 : vector<16xf32> to vector<16x1xf32>
    %14 = tpu.reciprocal %13 {approx = true} : vector<16x1xf32> -> vector<16x1xf32>
    %15 = arith.truncf %11 : vector<16x16xf32> to vector<16x16xbf16>
    %cst_14 = arith.constant dense<0.000000e+00> : vector<16x128xf32>
    %16 = tpu.matmul %15, %5, %cst_14 {dimension_numbers = #tpu.dot_dimension_numbers<[1], [0], [0], [1], [0, 0, 1, 1], [], []>} : vector<16x16xbf16>, vector<16x128xbf16>, vector<16x128xf32> -> vector<16x128xf32>
    %17 = vector.broadcast %14 : vector<16x1xf32> to vector<16x128xf32>
    %18 = arith.mulf %16, %17 : vector<16x128xf32>
    %19 = arith.truncf %18 : vector<16x128xf32> to vector<16x128xbf16>
    %c0_15 = arith.constant 0 : index
    %c0_16 = arith.constant 0 : index
    %c0_17 = arith.constant 0 : index
    %c0_18 = arith.constant 0 : index
    %20 = vector.load %arg3[%c0_15, %c0_16, %c0_17, %c0_18] : memref<1x1x16x128xbf16, #tpu.memory_space<vmem>>, vector<1x1x16x128xbf16>
    %21 = vector.shape_cast %20 : vector<1x1x16x128xbf16> to vector<16x128xbf16>
    %22 = vector.shape_cast %19 : vector<16x128xbf16> to vector<1x1x16x128xbf16>
    tpu.vector_store %arg3[%c0_15, %c0_16, %c0_17, %c0_18], %22 {strides = array<i32>} : memref<1x1x16x128xbf16, #tpu.memory_space<vmem>>, vector<1x1x16x128xbf16>,
    return
  }
  func.func @transform_0(%arg0: i32, %arg1: i32) -> (i32, i32, i32, i32, i32) {
    %c0_i32 = arith.constant 0 : i32
    %c0_i32_0 = arith.constant 0 : i32
    %c0_i32_1 = arith.constant 0 : i32
    %c0_i32_2 = arith.constant 0 : i32
    return %c0_i32, %arg0, %arg1, %c0_i32_0, %c0_i32_1 : i32, i32, i32, i32, i32
  }
  func.func @transform_1(%arg0: i32, %arg1: i32) -> (i32, i32, i32, i32) {
    %c0_i32 = arith.constant 0 : i32
    %c0_i32_0 = arith.constant 0 : i32
    %c0_i32_1 = arith.constant 0 : i32
    return %arg0, %arg1, %c0_i32, %c0_i32_0 : i32, i32, i32, i32
  }
}

module attributes {stable_mosaic.version = 11 : i64} {
  func.func @_matmul_noK_kernel(%arg0: i32, %arg1: i32, %arg2: memref<32x256xbf16, #tpu.memory_space<vmem>>, %arg3: memref<256x256xbf16, #tpu.memory_space<vmem>>, %arg4: memref<1x256xf32, #tpu.memory_space<vmem>>, %arg5: memref<32x256xbf16, #tpu.memory_space<vmem>>, %arg6: memref<32x256xbf16, #tpu.memory_space<vmem>>) attributes {dimension_semantics = [#tpu.dimension_semantics<parallel>, #tpu.dimension_semantics<parallel>], iteration_bounds = array<i64: 1, 1>, scalar_prefetch = 0 : i64, scratch_operands = 0 : i64, tpu.core_type = #tpu.core_type<tc>, window_params = [{transform_indices = @transform_0, window_bounds = array<i64: 32, 256>}, {transform_indices = @transform_1, window_bounds = array<i64: 256, 256>}, {transform_indices = @transform_2, window_bounds = array<i64: 1, 256>}, {transform_indices = @transform_3, window_bounds = array<i64: 32, 256>}, {transform_indices = @transform_4, window_bounds = array<i64: 32, 256>}]} {
    %c0 = arith.constant 0 : index
    %c0_0 = arith.constant 0 : index
    %0 = vector.load %arg2[%c0, %c0_0] : memref<32x256xbf16, #tpu.memory_space<vmem>>, vector<32x256xbf16>
    %c0_1 = arith.constant 0 : index
    %c0_2 = arith.constant 0 : index
    %1 = vector.load %arg3[%c0_1, %c0_2] : memref<256x256xbf16, #tpu.memory_space<vmem>>, vector<256x256xbf16>
    %cst = arith.constant dense<0.000000e+00> : vector<32x256xf32>
    %2 = tpu.matmul %0, %1, %cst {dimension_numbers = #tpu.dot_dimension_numbers<[1], [0], [0], [1], [0, 0, 1, 1], [], []>} : vector<32x256xbf16>, vector<256x256xbf16>, vector<32x256xf32> -> vector<32x256xf32>
    %c0_3 = arith.constant 0 : index
    %c0_4 = arith.constant 0 : index
    %3 = vector.load %arg4[%c0_3, %c0_4] : memref<1x256xf32, #tpu.memory_space<vmem>>, vector<1x256xf32>
    %4 = vector.broadcast %3 : vector<1x256xf32> to vector<32x256xf32>
    %5 = arith.addf %2, %4 : vector<32x256xf32>
    %c0_5 = arith.constant 0 : index
    %c0_6 = arith.constant 0 : index
    %6 = vector.load %arg5[%c0_5, %c0_6] : memref<32x256xbf16, #tpu.memory_space<vmem>>, vector<32x256xbf16>
    %7 = arith.extf %6 : vector<32x256xbf16> to vector<32x256xf32>
    %8 = arith.addf %5, %7 : vector<32x256xf32>
    %9 = arith.truncf %8 : vector<32x256xf32> to vector<32x256xbf16>
    %c0_7 = arith.constant 0 : index
    %c0_8 = arith.constant 0 : index
    %10 = vector.load %arg6[%c0_7, %c0_8] : memref<32x256xbf16, #tpu.memory_space<vmem>>, vector<32x256xbf16>
    tpu.vector_store %arg6[%c0_7, %c0_8], %9 {strides = array<i32>} : memref<32x256xbf16, #tpu.memory_space<vmem>>, vector<32x256xbf16>,
    return
  }
  func.func @transform_0(%arg0: i32, %arg1: i32) -> (i32, i32) {
    %c0_i32 = arith.constant 0 : i32
    %c0_i32_0 = arith.constant 0 : i32
    return %arg0, %c0_i32 : i32, i32
  }
  func.func @transform_1(%arg0: i32, %arg1: i32) -> (i32, i32) {
    %c0_i32 = arith.constant 0 : i32
    %c0_i32_0 = arith.constant 0 : i32
    return %c0_i32, %arg1 : i32, i32
  }
  func.func @transform_2(%arg0: i32, %arg1: i32) -> (i32, i32) {
    %c0_i32 = arith.constant 0 : i32
    %c0_i32_0 = arith.constant 0 : i32
    return %c0_i32, %arg1 : i32, i32
  }
  func.func @transform_3(%arg0: i32, %arg1: i32) -> (i32, i32) {
    %c0_i32 = arith.constant 0 : i32
    return %arg0, %arg1 : i32, i32
  }
  func.func @transform_4(%arg0: i32, %arg1: i32) -> (i32, i32) {
    %c0_i32 = arith.constant 0 : i32
    return %arg0, %arg1 : i32, i32
  }
}

module attributes {stable_mosaic.version = 11 : i64} {
  func.func @_matmul_noK_kernel(%arg0: i32, %arg1: i32, %arg2: memref<32x512xbf16, #tpu.memory_space<vmem>>, %arg3: memref<512x256xbf16, #tpu.memory_space<vmem>>, %arg4: memref<1x256xf32, #tpu.memory_space<vmem>>, %arg5: memref<32x256xbf16, #tpu.memory_space<vmem>>, %arg6: memref<32x256xbf16, #tpu.memory_space<vmem>>) attributes {dimension_semantics = [#tpu.dimension_semantics<parallel>, #tpu.dimension_semantics<parallel>], iteration_bounds = array<i64: 1, 1>, scalar_prefetch = 0 : i64, scratch_operands = 0 : i64, tpu.core_type = #tpu.core_type<tc>, window_params = [{transform_indices = @transform_0, window_bounds = array<i64: 32, 512>}, {transform_indices = @transform_1, window_bounds = array<i64: 512, 256>}, {transform_indices = @transform_2, window_bounds = array<i64: 1, 256>}, {transform_indices = @transform_3, window_bounds = array<i64: 32, 256>}, {transform_indices = @transform_4, window_bounds = array<i64: 32, 256>}]} {
    %c0 = arith.constant 0 : index
    %c0_0 = arith.constant 0 : index
    %0 = vector.load %arg2[%c0, %c0_0] : memref<32x512xbf16, #tpu.memory_space<vmem>>, vector<32x512xbf16>
    %c0_1 = arith.constant 0 : index
    %c0_2 = arith.constant 0 : index
    %1 = vector.load %arg3[%c0_1, %c0_2] : memref<512x256xbf16, #tpu.memory_space<vmem>>, vector<512x256xbf16>
    %cst = arith.constant dense<0.000000e+00> : vector<32x256xf32>
    %2 = tpu.matmul %0, %1, %cst {dimension_numbers = #tpu.dot_dimension_numbers<[1], [0], [0], [1], [0, 0, 1, 1], [], []>} : vector<32x512xbf16>, vector<512x256xbf16>, vector<32x256xf32> -> vector<32x256xf32>
    %c0_3 = arith.constant 0 : index
    %c0_4 = arith.constant 0 : index
    %3 = vector.load %arg4[%c0_3, %c0_4] : memref<1x256xf32, #tpu.memory_space<vmem>>, vector<1x256xf32>
    %4 = vector.broadcast %3 : vector<1x256xf32> to vector<32x256xf32>
    %5 = arith.addf %2, %4 : vector<32x256xf32>
    %c0_5 = arith.constant 0 : index
    %c0_6 = arith.constant 0 : index
    %6 = vector.load %arg5[%c0_5, %c0_6] : memref<32x256xbf16, #tpu.memory_space<vmem>>, vector<32x256xbf16>
    %7 = arith.extf %6 : vector<32x256xbf16> to vector<32x256xf32>
    %8 = arith.addf %5, %7 : vector<32x256xf32>
    %9 = arith.truncf %8 : vector<32x256xf32> to vector<32x256xbf16>
    %c0_7 = arith.constant 0 : index
    %c0_8 = arith.constant 0 : index
    %10 = vector.load %arg6[%c0_7, %c0_8] : memref<32x256xbf16, #tpu.memory_space<vmem>>, vector<32x256xbf16>
    tpu.vector_store %arg6[%c0_7, %c0_8], %9 {strides = array<i32>} : memref<32x256xbf16, #tpu.memory_space<vmem>>, vector<32x256xbf16>,
    return
  }
  func.func @transform_0(%arg0: i32, %arg1: i32) -> (i32, i32) {
    %c0_i32 = arith.constant 0 : i32
    %c0_i32_0 = arith.constant 0 : i32
    return %arg0, %c0_i32 : i32, i32
  }
  func.func @transform_1(%arg0: i32, %arg1: i32) -> (i32, i32) {
    %c0_i32 = arith.constant 0 : i32
    %c0_i32_0 = arith.constant 0 : i32
    return %c0_i32, %arg1 : i32, i32
  }
  func.func @transform_2(%arg0: i32, %arg1: i32) -> (i32, i32) {
    %c0_i32 = arith.constant 0 : i32
    %c0_i32_0 = arith.constant 0 : i32
    return %c0_i32, %arg1 : i32, i32
  }
  func.func @transform_3(%arg0: i32, %arg1: i32) -> (i32, i32) {
    %c0_i32 = arith.constant 0 : i32
    return %arg0, %arg1 : i32, i32
  }
  func.func @transform_4(%arg0: i32, %arg1: i32) -> (i32, i32) {
    %c0_i32 = arith.constant 0 : i32
    return %arg0, %arg1 : i32, i32
  }
}

module attributes {stable_mosaic.version = 11 : i64} {
  func.func @_ln_matmul_kernel(%arg0: i32, %arg1: i32, %arg2: memref<32x256xbf16, #tpu.memory_space<vmem>>, %arg3: memref<1x256xf32, #tpu.memory_space<vmem>>, %arg4: memref<1x256xf32, #tpu.memory_space<vmem>>, %arg5: memref<256x512xbf16, #tpu.memory_space<vmem>>, %arg6: memref<1x512xf32, #tpu.memory_space<vmem>>, %arg7: memref<32x512xbf16, #tpu.memory_space<vmem>>, %arg8: memref<32x256xbf16, #tpu.memory_space<vmem>>) attributes {dimension_semantics = [#tpu.dimension_semantics<parallel>, #tpu.dimension_semantics<arbitrary>], iteration_bounds = array<i64: 1, 1>, scalar_prefetch = 0 : i64, scratch_operands = 1 : i64, tpu.core_type = #tpu.core_type<tc>, window_params = [{transform_indices = @transform_0, window_bounds = array<i64: 32, 256>}, {pipeline_mode = #tpu.pipeline_mode<synchronous>, transform_indices = @transform_1, window_bounds = array<i64: 1, 256>}, {pipeline_mode = #tpu.pipeline_mode<synchronous>, transform_indices = @transform_2, window_bounds = array<i64: 1, 256>}, {transform_indices = @transform_3, window_bounds = array<i64: 256, 512>}, {transform_indices = @transform_4, window_bounds = array<i64: 1, 512>}, {transform_indices = @transform_5, window_bounds = array<i64: 32, 512>}]} {
    %c0_i32 = arith.constant 0 : i32
    %0 = arith.cmpi eq, %arg1, %c0_i32 : i32
    %1 = arith.extui %0 : i1 to i32
    %c0_i32_0 = arith.constant 0 : i32
    %2 = arith.cmpi ne, %1, %c0_i32_0 : i32
    scf.if %2 {
      %c0_12 = arith.constant 0 : index
      %c0_13 = arith.constant 0 : index
      %24 = vector.load %arg2[%c0_12, %c0_13] : memref<32x256xbf16, #tpu.memory_space<vmem>>, vector<32x256xbf16>
      %25 = arith.extf %24 : vector<32x256xbf16> to vector<32x256xf32>
      %cst_14 = arith.constant dense<0.000000e+00> : vector<32xf32>
      %26 = vector.multi_reduction <add>, %25, %cst_14 [1] : vector<32x256xf32> to vector<32xf32>
      %27 = vector.shape_cast %26 : vector<32xf32> to vector<32x1xf32>
      %cst_15 = arith.constant 2.560000e+02 : f32
      %28 = vector.broadcast %cst_15 : f32 to vector<32x1xf32>
      %29 = arith.divf %27, %28 : vector<32x1xf32>
      %30 = vector.broadcast %29 : vector<32x1xf32> to vector<32x256xf32>
      %31 = arith.subf %25, %30 : vector<32x256xf32>
      %32 = arith.mulf %31, %31 : vector<32x256xf32>
      %cst_16 = arith.constant dense<0.000000e+00> : vector<32xf32>
      %33 = vector.multi_reduction <add>, %32, %cst_16 [1] : vector<32x256xf32> to vector<32xf32>
      %34 = vector.shape_cast %33 : vector<32xf32> to vector<32x1xf32>
      %cst_17 = arith.constant 2.560000e+02 : f32
      %35 = vector.broadcast %cst_17 : f32 to vector<32x1xf32>
      %36 = arith.divf %34, %35 : vector<32x1xf32>
      %37 = vector.broadcast %29 : vector<32x1xf32> to vector<32x256xf32>
      %38 = arith.subf %25, %37 : vector<32x256xf32>
      %cst_18 = arith.constant 9.99999997E-7 : f32
      %39 = vector.broadcast %cst_18 : f32 to vector<32x1xf32>
      %40 = arith.addf %36, %39 : vector<32x1xf32>
      %41 = math.rsqrt %40 : vector<32x1xf32>
      %42 = vector.broadcast %41 : vector<32x1xf32> to vector<32x256xf32>
      %43 = arith.mulf %38, %42 : vector<32x256xf32>
      %c0_19 = arith.constant 0 : index
      %c0_20 = arith.constant 0 : index
      %44 = vector.load %arg3[%c0_19, %c0_20] : memref<1x256xf32, #tpu.memory_space<vmem>>, vector<1x256xf32>
      %45 = vector.broadcast %44 : vector<1x256xf32> to vector<32x256xf32>
      %46 = arith.mulf %43, %45 : vector<32x256xf32>
      %c0_21 = arith.constant 0 : index
      %c0_22 = arith.constant 0 : index
      %47 = vector.load %arg4[%c0_21, %c0_22] : memref<1x256xf32, #tpu.memory_space<vmem>>, vector<1x256xf32>
      %48 = vector.broadcast %47 : vector<1x256xf32> to vector<32x256xf32>
      %49 = arith.addf %46, %48 : vector<32x256xf32>
      %50 = arith.truncf %49 : vector<32x256xf32> to vector<32x256xbf16>
      %c0_23 = arith.constant 0 : index
      %c0_24 = arith.constant 0 : index
      %51 = vector.load %arg8[%c0_23, %c0_24] : memref<32x256xbf16, #tpu.memory_space<vmem>>, vector<32x256xbf16>
      tpu.vector_store %arg8[%c0_23, %c0_24], %50 {strides = array<i32>} : memref<32x256xbf16, #tpu.memory_space<vmem>>, vector<32x256xbf16>,
    } else {
    }
    %c0 = arith.constant 0 : index
    %c0_1 = arith.constant 0 : index
    %3 = vector.load %arg8[%c0, %c0_1] : memref<32x256xbf16, #tpu.memory_space<vmem>>, vector<32x256xbf16>
    %c0_2 = arith.constant 0 : index
    %c0_3 = arith.constant 0 : index
    %4 = vector.load %arg5[%c0_2, %c0_3] : memref<256x512xbf16, #tpu.memory_space<vmem>>, vector<256x512xbf16>
    %cst = arith.constant dense<0.000000e+00> : vector<32x512xf32>
    %5 = tpu.matmul %3, %4, %cst {dimension_numbers = #tpu.dot_dimension_numbers<[1], [0], [0], [1], [0, 0, 1, 1], [], []>} : vector<32x256xbf16>, vector<256x512xbf16>, vector<32x512xf32> -> vector<32x512xf32>
    %c0_4 = arith.constant 0 : index
    %c0_5 = arith.constant 0 : index
    %6 = vector.load %arg6[%c0_4, %c0_5] : memref<1x512xf32, #tpu.memory_space<vmem>>, vector<1x512xf32>
    %7 = vector.broadcast %6 : vector<1x512xf32> to vector<32x512xf32>
    %8 = arith.addf %5, %7 : vector<32x512xf32>
    %cst_6 = arith.constant 5.000000e-01 : f32
    %9 = vector.broadcast %cst_6 : f32 to vector<32x512xf32>
    %10 = arith.mulf %9, %8 : vector<32x512xf32>
    %cst_7 = arith.constant 4.471500e-02 : f32
    %11 = vector.broadcast %cst_7 : f32 to vector<32x512xf32>
    %12 = arith.mulf %11, %8 : vector<32x512xf32>
    %13 = arith.mulf %12, %8 : vector<32x512xf32>
    %14 = arith.mulf %13, %8 : vector<32x512xf32>
    %15 = arith.addf %8, %14 : vector<32x512xf32>
    %cst_8 = arith.constant 0.797884583 : f32
    %16 = vector.broadcast %cst_8 : f32 to vector<32x512xf32>
    %17 = arith.mulf %16, %15 : vector<32x512xf32>
    %18 = math.tanh %17 : vector<32x512xf32>
    %cst_9 = arith.constant 1.000000e+00 : f32
    %19 = vector.broadcast %cst_9 : f32 to vector<32x512xf32>
    %20 = arith.addf %19, %18 : vector<32x512xf32>
    %21 = arith.mulf %10, %20 : vector<32x512xf32>
    %22 = arith.truncf %21 : vector<32x512xf32> to vector<32x512xbf16>
    %c0_10 = arith.constant 0 : index
    %c0_11 = arith.constant 0 : index
    %23 = vector.load %arg7[%c0_10, %c0_11] : memref<32x512xbf16, #tpu.memory_space<vmem>>, vector<32x512xbf16>
    tpu.vector_store %arg7[%c0_10, %c0_11], %22 {strides = array<i32>} : memref<32x512xbf16, #tpu.memory_space<vmem>>, vector<32x512xbf16>,
    return
  }
  func.func @transform_0(%arg0: i32, %arg1: i32) -> (i32, i32) {
    %c0_i32 = arith.constant 0 : i32
    %c0_i32_0 = arith.constant 0 : i32
    return %arg0, %c0_i32 : i32, i32
  }
  func.func @transform_1(%arg0: i32, %arg1: i32) -> (i32, i32) {
    %c0_i32 = arith.constant 0 : i32
    %c0_i32_0 = arith.constant 0 : i32
    %c0_i32_1 = arith.constant 0 : i32
    return %c0_i32, %c0_i32_0 : i32, i32
  }
  func.func @transform_2(%arg0: i32, %arg1: i32) -> (i32, i32) {
    %c0_i32 = arith.constant 0 : i32
    %c0_i32_0 = arith.constant 0 : i32
    %c0_i32_1 = arith.constant 0 : i32
    return %c0_i32, %c0_i32_0 : i32, i32
  }
  func.func @transform_3(%arg0: i32, %arg1: i32) -> (i32, i32) {
    %c0_i32 = arith.constant 0 : i32
    %c0_i32_0 = arith.constant 0 : i32
    return %c0_i32, %arg1 : i32, i32
  }
  func.func @transform_4(%arg0: i32, %arg1: i32) -> (i32, i32) {
    %c0_i32 = arith.constant 0 : i32
    %c0_i32_0 = arith.constant 0 : i32
    return %c0_i32, %arg1 : i32, i32
  }
  func.func @transform_5(%arg0: i32, %arg1: i32) -> (i32, i32) {
    %c0_i32 = arith.constant 0 : i32
    return %arg0, %arg1 : i32, i32
  }
}

module attributes {stable_mosaic.version = 11 : i64} {
  func.func @_ln_matmul_kernel(%arg0: i32, %arg1: i32, %arg2: memref<32x256xbf16, #tpu.memory_space<vmem>>, %arg3: memref<1x256xf32, #tpu.memory_space<vmem>>, %arg4: memref<1x256xf32, #tpu.memory_space<vmem>>, %arg5: memref<256x128xbf16, #tpu.memory_space<vmem>>, %arg6: memref<1x128xf32, #tpu.memory_space<vmem>>, %arg7: memref<32x128xf32, #tpu.memory_space<vmem>>, %arg8: memref<32x256xbf16, #tpu.memory_space<vmem>>) attributes {dimension_semantics = [#tpu.dimension_semantics<parallel>, #tpu.dimension_semantics<arbitrary>], iteration_bounds = array<i64: 1, 1>, scalar_prefetch = 0 : i64, scratch_operands = 1 : i64, tpu.core_type = #tpu.core_type<tc>, window_params = [{transform_indices = @transform_0, window_bounds = array<i64: 32, 256>}, {pipeline_mode = #tpu.pipeline_mode<synchronous>, transform_indices = @transform_1, window_bounds = array<i64: 1, 256>}, {pipeline_mode = #tpu.pipeline_mode<synchronous>, transform_indices = @transform_2, window_bounds = array<i64: 1, 256>}, {transform_indices = @transform_3, window_bounds = array<i64: 256, 128>}, {transform_indices = @transform_4, window_bounds = array<i64: 1, 128>}, {transform_indices = @transform_5, window_bounds = array<i64: 32, 128>}]} {
    %c0_i32 = arith.constant 0 : i32
    %0 = arith.cmpi eq, %arg1, %c0_i32 : i32
    %1 = arith.extui %0 : i1 to i32
    %c0_i32_0 = arith.constant 0 : i32
    %2 = arith.cmpi ne, %1, %c0_i32_0 : i32
    scf.if %2 {
      %c0_8 = arith.constant 0 : index
      %c0_9 = arith.constant 0 : index
      %10 = vector.load %arg2[%c0_8, %c0_9] : memref<32x256xbf16, #tpu.memory_space<vmem>>, vector<32x256xbf16>
      %11 = arith.extf %10 : vector<32x256xbf16> to vector<32x256xf32>
      %cst_10 = arith.constant dense<0.000000e+00> : vector<32xf32>
      %12 = vector.multi_reduction <add>, %11, %cst_10 [1] : vector<32x256xf32> to vector<32xf32>
      %13 = vector.shape_cast %12 : vector<32xf32> to vector<32x1xf32>
      %cst_11 = arith.constant 2.560000e+02 : f32
      %14 = vector.broadcast %cst_11 : f32 to vector<32x1xf32>
      %15 = arith.divf %13, %14 : vector<32x1xf32>
      %16 = vector.broadcast %15 : vector<32x1xf32> to vector<32x256xf32>
      %17 = arith.subf %11, %16 : vector<32x256xf32>
      %18 = arith.mulf %17, %17 : vector<32x256xf32>
      %cst_12 = arith.constant dense<0.000000e+00> : vector<32xf32>
      %19 = vector.multi_reduction <add>, %18, %cst_12 [1] : vector<32x256xf32> to vector<32xf32>
      %20 = vector.shape_cast %19 : vector<32xf32> to vector<32x1xf32>
      %cst_13 = arith.constant 2.560000e+02 : f32
      %21 = vector.broadcast %cst_13 : f32 to vector<32x1xf32>
      %22 = arith.divf %20, %21 : vector<32x1xf32>
      %23 = vector.broadcast %15 : vector<32x1xf32> to vector<32x256xf32>
      %24 = arith.subf %11, %23 : vector<32x256xf32>
      %cst_14 = arith.constant 9.99999997E-7 : f32
      %25 = vector.broadcast %cst_14 : f32 to vector<32x1xf32>
      %26 = arith.addf %22, %25 : vector<32x1xf32>
      %27 = math.rsqrt %26 : vector<32x1xf32>
      %28 = vector.broadcast %27 : vector<32x1xf32> to vector<32x256xf32>
      %29 = arith.mulf %24, %28 : vector<32x256xf32>
      %c0_15 = arith.constant 0 : index
      %c0_16 = arith.constant 0 : index
      %30 = vector.load %arg3[%c0_15, %c0_16] : memref<1x256xf32, #tpu.memory_space<vmem>>, vector<1x256xf32>
      %31 = vector.broadcast %30 : vector<1x256xf32> to vector<32x256xf32>
      %32 = arith.mulf %29, %31 : vector<32x256xf32>
      %c0_17 = arith.constant 0 : index
      %c0_18 = arith.constant 0 : index
      %33 = vector.load %arg4[%c0_17, %c0_18] : memref<1x256xf32, #tpu.memory_space<vmem>>, vector<1x256xf32>
      %34 = vector.broadcast %33 : vector<1x256xf32> to vector<32x256xf32>
      %35 = arith.addf %32, %34 : vector<32x256xf32>
      %36 = arith.truncf %35 : vector<32x256xf32> to vector<32x256xbf16>
      %c0_19 = arith.constant 0 : index
      %c0_20 = arith.constant 0 : index
      %37 = vector.load %arg8[%c0_19, %c0_20] : memref<32x256xbf16, #tpu.memory_space<vmem>>, vector<32x256xbf16>
      tpu.vector_store %arg8[%c0_19, %c0_20], %36 {strides = array<i32>} : memref<32x256xbf16, #tpu.memory_space<vmem>>, vector<32x256xbf16>,
    } else {
    }
    %c0 = arith.constant 0 : index
    %c0_1 = arith.constant 0 : index
    %3 = vector.load %arg8[%c0, %c0_1] : memref<32x256xbf16, #tpu.memory_space<vmem>>, vector<32x256xbf16>
    %c0_2 = arith.constant 0 : index
    %c0_3 = arith.constant 0 : index
    %4 = vector.load %arg5[%c0_2, %c0_3] : memref<256x128xbf16, #tpu.memory_space<vmem>>, vector<256x128xbf16>
    %cst = arith.constant dense<0.000000e+00> : vector<32x128xf32>
    %5 = tpu.matmul %3, %4, %cst {dimension_numbers = #tpu.dot_dimension_numbers<[1], [0], [0], [1], [0, 0, 1, 1], [], []>} : vector<32x256xbf16>, vector<256x128xbf16>, vector<32x128xf32> -> vector<32x128xf32>
    %c0_4 = arith.constant 0 : index
    %c0_5 = arith.constant 0 : index
    %6 = vector.load %arg6[%c0_4, %c0_5] : memref<1x128xf32, #tpu.memory_space<vmem>>, vector<1x128xf32>
    %7 = vector.broadcast %6 : vector<1x128xf32> to vector<32x128xf32>
    %8 = arith.addf %5, %7 : vector<32x128xf32>
    %c0_6 = arith.constant 0 : index
    %c0_7 = arith.constant 0 : index
    %9 = vector.load %arg7[%c0_6, %c0_7] : memref<32x128xf32, #tpu.memory_space<vmem>>, vector<32x128xf32>
    tpu.vector_store %arg7[%c0_6, %c0_7], %8 {strides = array<i32>} : memref<32x128xf32, #tpu.memory_space<vmem>>, vector<32x128xf32>,
    return
  }
  func.func @transform_0(%arg0: i32, %arg1: i32) -> (i32, i32) {
    %c0_i32 = arith.constant 0 : i32
    %c0_i32_0 = arith.constant 0 : i32
    return %arg0, %c0_i32 : i32, i32
  }
  func.func @transform_1(%arg0: i32, %arg1: i32) -> (i32, i32) {
    %c0_i32 = arith.constant 0 : i32
    %c0_i32_0 = arith.constant 0 : i32
    %c0_i32_1 = arith.constant 0 : i32
    return %c0_i32, %c0_i32_0 : i32, i32
  }
  func.func @transform_2(%arg0: i32, %arg1: i32) -> (i32, i32) {
    %c0_i32 = arith.constant 0 : i32
    %c0_i32_0 = arith.constant 0 : i32
    %c0_i32_1 = arith.constant 0 : i32
    return %c0_i32, %c0_i32_0 : i32, i32
  }
  func.func @transform_3(%arg0: i32, %arg1: i32) -> (i32, i32) {
    %c0_i32 = arith.constant 0 : i32
    %c0_i32_0 = arith.constant 0 : i32
    return %c0_i32, %arg1 : i32, i32
  }
  func.func @transform_4(%arg0: i32, %arg1: i32) -> (i32, i32) {
    %c0_i32 = arith.constant 0 : i32
    %c0_i32_0 = arith.constant 0 : i32
    return %c0_i32, %arg1 : i32, i32
  }
  func.func @transform_5(%arg0: i32, %arg1: i32) -> (i32, i32) {
    %c0_i32 = arith.constant 0 : i32
    return %arg0, %arg1 : i32, i32
  }
}

</mosaic_0001>

<llo_original>
// kernel: vision_encoder_forward.14
$region0: #{vision_encoder_forward.14}
  #allocation0 [shape = 'u32[]', space=smem, size = 0x4, offset = 0x4, fixed_abs, tag = 'smem constant byte address 0x4 - core index']
  #allocation1 [shape = 'u32[144,128]{1,0:T(1,128)}', space=vmem, size = 0x12000, scoped, tag = 'internal scratch']
  %s0 = inlined_call_operand.vmem [shape: bf16[3,2,2,16,128], index: 0, kind: input, shape index: {}]
  %s1 = inlined_call_operand.vmem [shape: bf16[2,2,16,128], index: 1, kind: output, shape index: {}]
  %s2 = sld [smem:[#allocation0]]
  $region78: #{vision_encoder_forward.14} parent=0
    _
  %s4 = ssub.s32 1, %s2
  %s5 = scalar_select 0, %s4, %s2
  $region1: #{vision_encoder_forward.14} parent=0
    #allocation2 [shape = 'u8[24576]{0}', space=vmem, size = 0x6000, scoped, tag = 'input window, operand 0']
    loop: start=0, step=1, limit=6
    $region2: #{vision_encoder_forward.14} parent=1 // loop_pre_header
      _
    $region3: #{vision_encoder_forward.14} parent=1 // loop_header
      %s7 = sphi 0, %s11
      %p8 = scmp.ge.s32.totalorder %s7, 6
      %s14 = sphi 0, %s26
      %s15 = sphi 0, %s22
      %s16 = sphi 0, %s14
      %s17 = sphi 0, %s15
      %s18 = sphi 0, %s16
      %s19 = sphi 0, %s17
      %s31 = sphi 0, %s33
      %s34 = sphi 0, %s31
      %s35 = sphi 0, %s34
      %s51 = sphi 0, %s35
      %s59 = sphi 0, %s61
      %s62 = sphi 0, %s59
      %s63 = sphi 0, %s62
      %s79 = sphi 0, %s63
    $region4: #{vision_encoder_forward.14} parent=1 // loop_header_branch
      %10 = sbr.rel (%p8) target = $region8
    $region5: #{vision_encoder_forward.14} parent=1 // loop_body
      %s12 = ssub.s32 %s7, 1
      %s13 = ssub.s32 %s7, 2
      %s20 = sadd.s32 1, %s15
      %p21 = scmp.ge.s32.totalorder %s20, 2
      %s22 = scalar_select %p21, 0, %s20
      %s23 = sadd.s32 1, %s14
      %s24 = scalar_select %p21, %s23, %s14
      %p25 = scmp.ge.s32.totalorder %s24, 2
      %s26 = scalar_select %p25, 0, %s24
      %s27 = ssub.s32 %s14, %s26
      %s28 = ssub.s32 %s15, %s22
      %s29 = sor.u32 %s27, %s28
      %p30 = scmp.eq.s32.totalorder %s29, 0
      %s32 = sadd.s32 %s31, 1
      %s33 = scalar_select %p30, %s31, %s32
      %p36 = pneg %p30
      %p37 = scmp.eq.s32.totalorder %s7, 3
      %p38 = por %p36, %p37
      %p39 = scmp.ne.s32.totalorder %s31, %s34
      %p40 = scmp.eq.s32.totalorder %s7, 0
      %p41 = por %p39, %p40
      %p42 = scmp.ne.s32.totalorder %s31, %s34
      %p43 = scmp.eq.s32.totalorder %s12, 3
      %p44 = por %p42, %p43
      %p45 = scmp.ne.s32.totalorder %s34, %s35
      %p46 = scmp.eq.s32.totalorder %s12, 0
      %p47 = por %p45, %p46
      %p48 = scmp.ne.s32.totalorder %s34, %s35
      %p49 = scmp.eq.s32.totalorder %s13, 3
      %p50 = por %p48, %p49
      %p52 = scmp.ne.s32.totalorder %s35, %s51
      %p53 = scmp.eq.s32.totalorder %s13, 0
      %p54 = por %p52, %p53
      %s55 = ssub.s32 %s14, %s26
      %s56 = ssub.s32 %s15, %s22
      %s57 = sor.u32 %s55, %s56
      %p58 = scmp.eq.s32.totalorder %s57, 0
      %s60 = sadd.s32 %s59, 1
      %s61 = scalar_select %p58, %s59, %s60
      %p64 = pneg %p58
      %p65 = scmp.eq.s32.totalorder %s7, 3
      %p66 = por %p64, %p65
      %p67 = scmp.ne.s32.totalorder %s59, %s62
      %p68 = scmp.eq.s32.totalorder %s7, 0
      %p69 = por %p67, %p68
      %p70 = scmp.ne.s32.totalorder %s59, %s62
      %p71 = scmp.eq.s32.totalorder %s12, 3
      %p72 = por %p70, %p71
      %p73 = scmp.ne.s32.totalorder %s62, %s63
      %p74 = scmp.eq.s32.totalorder %s12, 0
      %p75 = por %p73, %p74
      %p76 = scmp.ne.s32.totalorder %s62, %s63
      %p77 = scmp.eq.s32.totalorder %s13, 3
      %p78 = por %p76, %p77
      %p80 = scmp.ne.s32.totalorder %s63, %s79
      %p81 = scmp.eq.s32.totalorder %s13, 0
      %p82 = por %p80, %p81
      %p83 = scmp.le.s32.totalorder 1, %s7
      %p84 = scmp.lt.s32.totalorder %s7, 5
      %p85 = pnand %p83, %p84
      %p86 = pneg %p85
      // Predicated region
      $region9: #{vision_encoder_forward.14} parent=5 // pred_check
        _
      $region10: #{vision_encoder_forward.14} parent=5 // pred_check_branch
        %88 = sbr.rel (%p85) target = $region12
      $region11: #{vision_encoder_forward.14} parent=5 // pred_region
        %s89 = ssub.s32 %s7, 1
      $region12: #{vision_encoder_forward.14} parent=5 // pred_fallthru
        _
      %p90 = scmp.lt.s32.totalorder %s7, 4
      // Predicated region
      $region13: #{vision_encoder_forward.14} parent=5 // pred_check
        %p91 = pneg %p90
      $region14: #{vision_encoder_forward.14} parent=5 // pred_check_branch
        %93 = sbr.rel (%p91) target = $region16
      $region15: #{vision_encoder_forward.14} parent=5 // pred_region
        // Predicated region
        $region17: #{vision_encoder_forward.14} parent=15 // pred_check
          %p94 = pneg %p41
        $region18: #{vision_encoder_forward.14} parent=15 // pred_check_branch
          %96 = sbr.rel (%p94) target = $region20
        $region19: #{vision_encoder_forward.14} parent=15 // pred_region
          %s97 = sand.u32 %s31, 1
          %s98 = sand.u32 %s31, 1
          %s99 = smul.addr %s98, 24
          %s100 = scalar_lea.vmem [#allocation2], %s99
          %s101 = smul.addr %s15, 2
          %s102 = smul.addr %s14, 4
          %s103 = sadd.s32 %s101, %s102
          %s104 = smul.addr %s103, 4
          %s105 = scalar_lea.vmem %s0, %s104
          // Predicated region
          $region21: #{vision_encoder_forward.14} parent=19 // pred_check
            _
          $region22: #{vision_encoder_forward.14} parent=19 // pred_check_branch
            %107 = sbr.rel (0) target = $region24
          $region23: #{vision_encoder_forward.14} parent=19 // pred_region
            // Predicated region
            $region25: #{vision_encoder_forward.14} parent=23 // pred_check
              _
            $region26: #{vision_encoder_forward.14} parent=23 // pred_check_branch
              %109 = sbr.rel target = $region28
            $region27: #{vision_encoder_forward.14} parent=23 // pred_region
              // Predicated region
              $region40: #{vision_encoder_forward.14} parent=27 // pred_check
                _
              $region41: #{vision_encoder_forward.14} parent=27 // pred_check_branch
                %135 = sbr.rel (0) target = $region43
              $region42: #{vision_encoder_forward.14} parent=27 // pred_region
                loop: start=0, step=1, limit=1
                $region44: #{vision_encoder_forward.14} parent=42 // loop_pre_header
                  _
                $region45: #{vision_encoder_forward.14} parent=42 // loop_header
                  %s137 = sphi 0, %s141
                  %p138 = scmp.ge.s32.totalorder %s137, 1
                  %s142 = sphi %s105, %s105
                  %s143 = sphi %s100, %s100
                $region46: #{vision_encoder_forward.14} parent=42 // loop_header_branch
                  %140 = sbr.rel (%p138) target = $region50
                $region47: #{vision_encoder_forward.14} parent=42 // loop_body
                  _
                $region48: #{vision_encoder_forward.14} parent=42 // loop_footer
                  %s141 = sadd.s32 1, %s137
                $region49: #{vision_encoder_forward.14} parent=42 // loop_footer_branch
                  %136 = sbr.rel target = $region45
                $region50: #{vision_encoder_forward.14} parent=42 // loop_exit
                  _
                %s145 = ssub.s32 16, 1
                loop: start=0, step=1, limit=1
                $region51: #{vision_encoder_forward.14} parent=42 // loop_pre_header
                  _
                $region52: #{vision_encoder_forward.14} parent=42 // loop_header
                  %s147 = sphi 0, %s151
                  %p148 = scmp.ge.s32.totalorder %s147, 1
                  %s152 = sphi %s105, %s105
                  %s153 = sphi %s100, %s100
                $region53: #{vision_encoder_forward.14} parent=42 // loop_header_branch
                  %150 = sbr.rel (%p148) target = $region57
                $region54: #{vision_encoder_forward.14} parent=42 // loop_body
                  %v154 = vld [vmem:[%s152] sm:%s145]
                  %155 = vst [vmem:[%s153] sm:%s145] %v154
                  %v156 = vld [vmem:[%s152 + $0x4] sm:%s145]
                  %157 = vst [vmem:[%s153 + $0x4] sm:%s145] %v156
                  %v158 = vld [vmem:[%s152 + $0x20] sm:%s145]
                  %159 = vst [vmem:[%s153 + $0x8] sm:%s145] %v158
                  %v160 = vld [vmem:[%s152 + $0x24] sm:%s145]
                  %161 = vst [vmem:[%s153 + $0xc] sm:%s145] %v160
                  %v162 = vld [vmem:[%s152 + $0x40] sm:%s145]
                  %163 = vst [vmem:[%s153 + $0x10] sm:%s145] %v162
                  %v164 = vld [vmem:[%s152 + $0x44] sm:%s145]
                  %165 = vst [vmem:[%s153 + $0x14] sm:%s145] %v164
                $region55: #{vision_encoder_forward.14} parent=42 // loop_footer
                  %s151 = sadd.s32 1, %s147
                $region56: #{vision_encoder_forward.14} parent=42 // loop_footer_branch
                  %146 = sbr.rel target = $region52
                $region57: #{vision_encoder_forward.14} parent=42 // loop_exit
                  _
              $region43: #{vision_encoder_forward.14} parent=27 // pred_fallthru
                _
            $region28: #{vision_encoder_forward.14} parent=23 // pred_fallthru
              _
            // Predicated region
            $region29: #{vision_encoder_forward.14} parent=23 // pred_check
              _
            $region30: #{vision_encoder_forward.14} parent=23 // pred_check_branch
              %111 = sbr.rel (0) target = $region32
            $region31: #{vision_encoder_forward.14} parent=23 // pred_region
              %s113 = ssub.s32 16, 1
              loop: start=0, step=1, limit=1
              $region33: #{vision_encoder_forward.14} parent=31 // loop_pre_header
                _
              $region34: #{vision_encoder_forward.14} parent=31 // loop_header
                %s115 = sphi 0, %s119
                %p116 = scmp.ge.s32.totalorder %s115, 1
                %s120 = sphi %s105, %s105
                %s121 = sphi %s100, %s100
              $region35: #{vision_encoder_forward.14} parent=31 // loop_header_branch
                %118 = sbr.rel (%p116) target = $region39
              $region36: #{vision_encoder_forward.14} parent=31 // loop_body
                %v122 = vld [vmem:[%s120] sm:%s113]
                %123 = vst [vmem:[%s121] sm:%s113] %v122
                %v124 = vld [vmem:[%s120 + $0x4] sm:%s113]
                %125 = vst [vmem:[%s121 + $0x4] sm:%s113] %v124
                %v126 = vld [vmem:[%s120 + $0x20] sm:%s113]
                %127 = vst [vmem:[%s121 + $0x8] sm:%s113] %v126
                %v128 = vld [vmem:[%s120 + $0x24] sm:%s113]
                %129 = vst [vmem:[%s121 + $0xc] sm:%s113] %v128
                %v130 = vld [vmem:[%s120 + $0x40] sm:%s113]
                %131 = vst [vmem:[%s121 + $0x10] sm:%s113] %v130
                %v132 = vld [vmem:[%s120 + $0x44] sm:%s113]
                %133 = vst [vmem:[%s121 + $0x14] sm:%s113] %v132
              $region37: #{vision_encoder_forward.14} parent=31 // loop_footer
                %s119 = sadd.s32 1, %s115
              $region38: #{vision_encoder_forward.14} parent=31 // loop_footer_branch
                %114 = sbr.rel target = $region34
              $region39: #{vision_encoder_forward.14} parent=31 // loop_exit
                _
            $region32: #{vision_encoder_forward.14} parent=23 // pred_fallthru
              _
          $region24: #{vision_encoder_forward.14} parent=19 // pred_fallthru
            _
          %166 = vnop
        $region20: #{vision_encoder_forward.14} parent=15 // pred_fallthru
          _
      $region16: #{vision_encoder_forward.14} parent=5 // pred_fallthru
        _
      %p167 = scmp.le.s32.totalorder 1, %s7
      %p168 = scmp.lt.s32.totalorder %s7, 5
      %p169 = pnand %p167, %p168
      %p170 = pneg %p169
      // Predicated region
      $region58: #{vision_encoder_forward.14} parent=5 // pred_check
        _
      $region59: #{vision_encoder_forward.14} parent=5 // pred_check_branch
        %172 = sbr.rel (%p169) target = $region61
      $region60: #{vision_encoder_forward.14} parent=5 // pred_region
        %s173 = ssub.s32 %s7, 1
        %s174 = sand.u32 %s34, 1
        %s175 = sand.u32 %s34, 1
        %s176 = smul.addr %s175, 24
        %s177 = scalar_lea.vmem [#allocation2], %s176
        // Predicated region
        $region62: #{vision_encoder_forward.14} parent=60 // pred_check
          %p178 = pneg %p47
        $region63: #{vision_encoder_forward.14} parent=60 // pred_check_branch
          %180 = sbr.rel (%p178) target = $region65
        $region64: #{vision_encoder_forward.14} parent=60 // pred_region
          _
        $region65: #{vision_encoder_forward.14} parent=60 // pred_fallthru
          _
        %s181 = sand.u32 %s34, 1
        %s182 = sand.u32 %s34, 1
        %s183 = smul.addr %s182, 24
        %s184 = scalar_lea.vmem [#allocation2], %s183
        %p185 = pneg %p47
        %p186 = pneg %p44
        %p187 = pneg %p75
        %p188 = pneg %p72
        %p189 = scmp.lt.s32.totalorder %s16, 1
        %s190 = scalar_select %p189, %s16, 1
        %p191 = scmp.lt.s32.totalorder %s17, 1
        %s192 = scalar_select %p191, %s17, 1
        %s193 = smul.addr %s192, 2
        %s194 = smul.addr %s190, 4
        %s195 = sadd.s32 %s193, %s194
        %s196 = smul.addr %s195, 4
        %s197 = scalar_lea.vmem %s1, %s196
        %p198 = scmp.lt.s32.totalorder %s16, 1
        %s199 = scalar_select %p198, %s16, 1
        %p200 = scmp.lt.s32.totalorder %s17, 1
        %s201 = scalar_select %p200, %s17, 1
        %s202 = smul.addr %s201, 2
        %s203 = smul.addr %s199, 4
        %s204 = sadd.s32 %s202, %s203
        %s205 = smul.addr %s204, 4
        %s206 = scalar_lea.vmem %s1, %s205
        %v208 = vld [vmem:[%s177] sm:$0xf]
        %v209 = vld [vmem:[%s177 + $0x4] sm:$0xf]
        %s210 = scalar_lea.vmem %s177, 8 [#allocation2]
        %v211 = vld [vmem:[%s210] sm:$0xf]
        %v212 = vld [vmem:[%s210 + $0x4] sm:$0xf]
        %s213 = scalar_lea.vmem %s177, 16 [#allocation2]
        %v214 = vld [vmem:[%s213] sm:$0xf]
        %v215 = vld [vmem:[%s213 + $0x4] sm:$0xf]
        %v218 = vunpack.c.l.b16 %v208
        %v219 = vunpack.c.l.b16 %v209
        %v220 = vpack.c.b16 %v219, %v218
        %v224 = vunpack.c.l.b16 %v211
        %v225 = vunpack.c.l.b16 %v212
        %v226 = vpack.c.b16 %v225, %v224
        %228 = vmatprep.subr.bf16.mxu0 0
        %229 = vmatpush1.bf16.xpose.msra.mxu0 0
        %230 = vmatprep.subr.bf16.mxu0 0
        %231 = vmatpush1.bf16.xpose.msra.mxu0 0
        %232 = vmatprep.subr.bf16.mxu0 0
        %233 = vmatpush1.bf16.xpose.msra.mxu0 0
        %234 = vmatprep.subr.bf16.mxu0 0
        %235 = vmatpush1.bf16.xpose.msra.mxu0 0
        %236 = vmatprep.subr.bf16.mxu0 0
        %237 = vmatpush1.bf16.xpose.msra.mxu0 0
        %238 = vmatprep.subr.bf16.mxu0 0
        %239 = vmatpush1.bf16.xpose.msra.mxu0 0
        %240 = vmatprep.subr.bf16.mxu0 0
        %241 = vmatpush1.bf16.xpose.msra.mxu0 0
        %242 = vmatprep.subr.bf16.mxu0 0
        %243 = vmatpush1.bf16.xpose.msra.mxu0 %v226
        %244 = vmatprep.subr.bf16.mxu0 0
        %245 = vmatpush2.bf16.xpose.msra.mxu0 0
        %246 = vmatprep.subr.bf16.mxu0 0
        %247 = vmatpush2.bf16.xpose.msra.mxu0 0
        %248 = vmatprep.subr.bf16.mxu0 0
        %249 = vmatpush2.bf16.xpose.msra.mxu0 0
        %250 = vmatprep.subr.bf16.mxu0 0
        %251 = vmatpush2.bf16.xpose.msra.mxu0 0
        %252 = vmatprep.subr.bf16.mxu0 0
        %253 = vmatpush2.bf16.xpose.msra.mxu0 0
        %254 = vmatprep.subr.bf16.mxu0 0
        %255 = vmatpush2.bf16.xpose.msra.mxu0 0
        %256 = vmatprep.subr.bf16.mxu0 0
        %257 = vmatpush2.bf16.xpose.msra.mxu0 0
        %258 = vmatprep.subr.bf16.mxu0 0
        %259 = vmatpush2.bf16.xpose.msra.mxu0 0
        %260 = vmatprep.mubr.bf16.mxu0 0
        %261 = vmatmul.mubr.bf16.gmra.mxu0 %v220
        %v262 = vpop.f32.mrf.mxu0
        %v263 = vadd.f32 0.0, %v262
        %v264 = vpop.f32.mrf.mxu0
        %v265 = vpop.f32.mrf.mxu0
        %v266 = vadd.f32 0.0, %v265
        %v267 = vpop.f32.mrf.mxu0
        %268 = vdwg.mxu0
        %vm269 = vcmask 130048
        %v270 = vsel %vm269, %v263, -inf
        %271 = vmax.xlane.f32.xlu0 %v270
        %v272 = vpop.xlane.xlu0 %271
        %v273 = vsel %vm269, %v266, -inf
        %274 = vmax.xlane.f32.xlu0 %v273
        %v275 = vpop.xlane.xlu0 %274
        %v276 = vsub.f32 %v263, %v272
        %v277 = vsub.f32 %v266, %v275
        %v278 = vmul.f32 %v276, 1.442695
        %v279 = vpow.pop %v278
        %v280 = vmul.f32 %v277, 1.442695
        %v281 = vpow.pop %v280
        %v282 = vsel %vm269, %v279, 0.0
        %283 = vadd.xlane.f32.xlu0 %v282
        %v284 = vpop.xlane.xlu0 %283
        %v285 = vsel %vm269, %v281, 0.0
        %286 = vadd.xlane.f32.xlu0 %v285
        %v287 = vpop.xlane.xlu0 %286
        %v288 = vrcp.pop %v284
        %v289 = vrcp.pop %v287
        %v290 = vpack.c.bf16 %v281, %v279
        %v293 = vunpack.c.l.b16 %v214
        %v294 = vunpack.c.l.b16 %v215
        %v295 = vpack.c.b16 %v294, %v293
        %v298 = vsel %vm269, %v290, 0
        %300 = vmatprep.subr.bf16.mxu0 0
        %301 = vmatpush1.bf16.msra.mxu0 0
        %302 = vmatprep.subr.bf16.mxu0 0
        %303 = vmatpush1.bf16.msra.mxu0 0
        %304 = vmatprep.subr.bf16.mxu0 0
        %305 = vmatpush1.bf16.msra.mxu0 0
        %306 = vmatprep.subr.bf16.mxu0 0
        %307 = vmatpush1.bf16.msra.mxu0 0
        %308 = vmatprep.subr.bf16.mxu0 0
        %309 = vmatpush1.bf16.msra.mxu0 0
        %310 = vmatprep.subr.bf16.mxu0 0
        %311 = vmatpush1.bf16.msra.mxu0 0
        %312 = vmatprep.subr.bf16.mxu0 0
        %313 = vmatpush1.bf16.msra.mxu0 0
        %314 = vmatprep.subr.bf16.mxu0 0
        %315 = vmatpush1.bf16.msra.mxu0 %v295
        %316 = vmatprep.subr.bf16.mxu0 0
        %317 = vmatpush2.bf16.msra.mxu0 0
        %318 = vmatprep.subr.bf16.mxu0 0
        %319 = vmatpush2.bf16.msra.mxu0 0
        %320 = vmatprep.subr.bf16.mxu0 0
        %321 = vmatpush2.bf16.msra.mxu0 0
        %322 = vmatprep.subr.bf16.mxu0 0
        %323 = vmatpush2.bf16.msra.mxu0 0
        %324 = vmatprep.subr.bf16.mxu0 0
        %325 = vmatpush2.bf16.msra.mxu0 0
        %326 = vmatprep.subr.bf16.mxu0 0
        %327 = vmatpush2.bf16.msra.mxu0 0
        %328 = vmatprep.subr.bf16.mxu0 0
        %329 = vmatpush2.bf16.msra.mxu0 0
        %330 = vmatprep.subr.bf16.mxu0 0
        %331 = vmatpush2.bf16.msra.mxu0 0
        %332 = vmatprep.mubr.bf16.mxu0 0
        %333 = vmatmul.mubr.bf16.gmra.mxu0 %v298
        %v334 = vpop.f32.mrf.mxu0
        %v335 = vadd.f32 0.0, %v334
        %v336 = vpop.f32.mrf.mxu0
        %v337 = vpop.f32.mrf.mxu0
        %v338 = vadd.f32 0.0, %v337
        %v339 = vpop.f32.mrf.mxu0
        %340 = vdwg.mxu0
        %v341 = vmul.f32 %v335, %v288
        %v342 = vmul.f32 %v338, %v289
        %v343 = vpack.c.bf16 %v342, %v341
        %v345 = vunpack.c.l.b16 %v343
        %v346 = vunpack.c.h.b16 %v343
        %v347 = vpack.c.b16 %v345, %v345
        %v348 = vpack.c.b16 %v346, %v346
        %351 = vst [vmem:[%s206] sm:$0xf] %v347
        %352 = vst [vmem:[%s206 + $0x4] sm:$0xf] %v348
        %p353 = scmp.lt.s32.totalorder %s16, 1
        %s354 = scalar_select %p353, %s16, 1
        %p355 = scmp.lt.s32.totalorder %s17, 1
        %s356 = scalar_select %p355, %s17, 1
        %s357 = smul.addr %s356, 2
        %s358 = smul.addr %s354, 4
        %s359 = sadd.s32 %s357, %s358
        %s360 = smul.addr %s359, 4
        %s361 = scalar_lea.vmem %s1, %s360
        // Predicated region
        $region66: #{vision_encoder_forward.14} parent=60 // pred_check
          %p362 = pneg %p72
        $region67: #{vision_encoder_forward.14} parent=60 // pred_check_branch
          %364 = sbr.rel (%p362) target = $region69
        $region68: #{vision_encoder_forward.14} parent=60 // pred_region
          _
        $region69: #{vision_encoder_forward.14} parent=60 // pred_fallthru
          _
      $region61: #{vision_encoder_forward.14} parent=5 // pred_fallthru
        _
      %p365 = scmp.le.s32.totalorder 2, %s7
      // Predicated region
      $region70: #{vision_encoder_forward.14} parent=5 // pred_check
        %p366 = pneg %p365
      $region71: #{vision_encoder_forward.14} parent=5 // pred_check_branch
        %368 = sbr.rel (%p366) target = $region73
      $region72: #{vision_encoder_forward.14} parent=5 // pred_region
        %s369 = ssub.s32 %s7, 2
        // Predicated region
        $region74: #{vision_encoder_forward.14} parent=72 // pred_check
          %p370 = pneg %p78
        $region75: #{vision_encoder_forward.14} parent=72 // pred_check_branch
          %372 = sbr.rel (%p370) target = $region77
        $region76: #{vision_encoder_forward.14} parent=72 // pred_region
          %p373 = scmp.lt.s32.totalorder %s18, 1
          %s374 = scalar_select %p373, %s18, 1
          %p375 = scmp.lt.s32.totalorder %s19, 1
          %s376 = scalar_select %p375, %s19, 1
          %s377 = smul.addr %s376, 2
          %s378 = smul.addr %s374, 4
          %s379 = sadd.s32 %s377, %s378
          %s380 = smul.addr %s379, 4
          %s381 = scalar_lea.vmem %s1, %s380
        $region77: #{vision_encoder_forward.14} parent=72 // pred_fallthru
          _
      $region73: #{vision_encoder_forward.14} parent=5 // pred_fallthru
        _
    $region6: #{vision_encoder_forward.14} parent=1 // loop_footer
      %s11 = sadd.s32 1, %s7
    $region7: #{vision_encoder_forward.14} parent=1 // loop_footer_branch
      %6 = sbr.rel target = $region3
    $region8: #{vision_encoder_forward.14} parent=1 // loop_exit
      _

// kernel: vision_encoder_forward.12
$region0: #{vision_encoder_forward.12}
  #allocation0 [shape = 'u32[]', space=smem, size = 0x4, offset = 0x4, fixed_abs, tag = 'smem constant byte address 0x4 - core index']
  #allocation1 [shape = 'u32[144,128]{1,0:T(1,128)}', space=vmem, size = 0x12000, scoped, tag = 'internal scratch']
  %s0 = inlined_call_operand.vmem [shape: bf16[32,192], index: 0, kind: input, shape index: {}]
  %s1 = inlined_call_operand.vmem [shape: bf16[192,256], index: 1, kind: input, shape index: {}]
  %s2 = inlined_call_operand.vmem [shape: f32[1,256], index: 2, kind: input, shape index: {}]
  %s3 = inlined_call_operand.vmem [shape: bf16[32,256], index: 3, kind: input, shape index: {}]
  %s4 = inlined_call_operand.vmem [shape: bf16[32,256], index: 4, kind: output, shape index: {}]
  %s5 = sld [smem:[#allocation0]]
  $region26: #{vision_encoder_forward.12} parent=0
    _
  %s7 = ssub.s32 1, %s5
  %s8 = scalar_select 0, %s7, %s5
  // Predicated region
  $region2: #{vision_encoder_forward.12} parent=0 // pred_check
    _
  $region3: #{vision_encoder_forward.12} parent=0 // pred_check_branch
    %10 = sbr.rel (0) target = $region5
  $region4: #{vision_encoder_forward.12} parent=0 // pred_region
    _
  $region5: #{vision_encoder_forward.12} parent=0 // pred_fallthru
    _
  // Predicated region
  $region6: #{vision_encoder_forward.12} parent=0 // pred_check
    _
  $region7: #{vision_encoder_forward.12} parent=0 // pred_check_branch
    %12 = sbr.rel (0) target = $region9
  $region8: #{vision_encoder_forward.12} parent=0 // pred_region
    _
  $region9: #{vision_encoder_forward.12} parent=0 // pred_fallthru
    _
  // Predicated region
  $region10: #{vision_encoder_forward.12} parent=0 // pred_check
    _
  $region11: #{vision_encoder_forward.12} parent=0 // pred_check_branch
    %14 = sbr.rel (0) target = $region13
  $region12: #{vision_encoder_forward.12} parent=0 // pred_region
    _
  $region13: #{vision_encoder_forward.12} parent=0 // pred_fallthru
    _
  // Predicated region
  $region14: #{vision_encoder_forward.12} parent=0 // pred_check
    _
  $region15: #{vision_encoder_forward.12} parent=0 // pred_check_branch
    %16 = sbr.rel (0) target = $region17
  $region16: #{vision_encoder_forward.12} parent=0 // pred_region
    _
  $region17: #{vision_encoder_forward.12} parent=0 // pred_fallthru
    _
  %v18 = vld [vmem:[%s0] sm:$0xff]
  %v19 = vld [vmem:[%s0 + $0x8] sm:$0xff]
  %v20 = vld [vmem:[%s0 + $0x10] sm:$0xff]
  %v21 = vld [vmem:[%s0 + $0x18] sm:$0xff]
  %v22 = vld [vmem:[%s1] sm:$0xff]
  %v23 = vld [vmem:[%s1 + $0x8] sm:$0xff]
  %v24 = vld [vmem:[%s1 + $0x10] sm:$0xff]
  %v25 = vld [vmem:[%s1 + $0x18] sm:$0xff]
  %v26 = vld [vmem:[%s1 + $0x20] sm:$0xff]
  %v27 = vld [vmem:[%s1 + $0x28] sm:$0xff]
  %v28 = vld [vmem:[%s1 + $0x30] sm:$0xff]
  %v29 = vld [vmem:[%s1 + $0x38] sm:$0xff]
  %v30 = vld [vmem:[%s1 + $0x40] sm:$0xff]
  %v31 = vld [vmem:[%s1 + $0x48] sm:$0xff]
  %v32 = vld [vmem:[%s1 + $0x50] sm:$0xff]
  %v33 = vld [vmem:[%s1 + $0x58] sm:$0xff]
  %v34 = vld [vmem:[%s1 + $0x60] sm:$0xff]
  %v35 = vld [vmem:[%s1 + $0x68] sm:$0xff]
  %v36 = vld [vmem:[%s1 + $0x70] sm:$0xff]
  %v37 = vld [vmem:[%s1 + $0x78] sm:$0xff]
  %v38 = vld [vmem:[%s1 + $0x80] sm:$0xff]
  %v39 = vld [vmem:[%s1 + $0x88] sm:$0xff]
  %v40 = vld [vmem:[%s1 + $0x90] sm:$0xff]
  %v41 = vld [vmem:[%s1 + $0x98] sm:$0xff]
  %v42 = vld [vmem:[%s1 + $0xa0] sm:$0xff]
  %v43 = vld [vmem:[%s1 + $0xa8] sm:$0xff]
  %v44 = vld [vmem:[%s1 + $0xb0] sm:$0xff]
  %v45 = vld [vmem:[%s1 + $0xb8] sm:$0xff]
  %v46 = vld [vmem:[%s2] sm:$0x3]
  %v48 = vlaneseq
  %v49 = vshrl.u32 %v48, 7
  %v50 = vsub.s32 0, %v49
  %v51 = vrot.slane %v46, %v50
  %v52 = vlaneseq
  %v53 = vshrl.u32 %v52, 7
  %v54 = vsub.s32 1, %v53
  %v55 = vrot.slane %v46, %v54
  %v62 = vunpack.c.l.b16 %v18
  %v63 = vunpack.c.h.b16 %v18
  %v64 = vunpack.c.l.b16 %v19
  %v65 = vunpack.c.h.b16 %v19
  %v66 = vunpack.c.l.b16 %v20
  %v67 = vunpack.c.h.b16 %v20
  %v68 = vunpack.c.l.b16 %v21
  %v69 = vunpack.c.h.b16 %v21
  %v70 = vpack.c.b16 %v64, %v62
  %v71 = vpack.c.b16 %v65, %v63
  %v72 = vpack.c.b16 %v68, %v66
  %v73 = vpack.c.b16 %v69, %v67
  %v100 = vunpack.c.l.b16 %v22
  %v101 = vunpack.c.h.b16 %v22
  %v102 = vunpack.c.l.b16 %v23
  %v103 = vunpack.c.h.b16 %v23
  %v104 = vunpack.c.l.b16 %v24
  %v105 = vunpack.c.h.b16 %v24
  %v106 = vunpack.c.l.b16 %v25
  %v107 = vunpack.c.h.b16 %v25
  %v108 = vunpack.c.l.b16 %v26
  %v109 = vunpack.c.h.b16 %v26
  %v110 = vunpack.c.l.b16 %v27
  %v111 = vunpack.c.h.b16 %v27
  %v112 = vunpack.c.l.b16 %v28
  %v113 = vunpack.c.h.b16 %v28
  %v114 = vunpack.c.l.b16 %v29
  %v115 = vunpack.c.h.b16 %v29
  %v116 = vunpack.c.l.b16 %v30
  %v117 = vunpack.c.h.b16 %v30
  %v118 = vunpack.c.l.b16 %v31
  %v119 = vunpack.c.h.b16 %v31
  %v120 = vunpack.c.l.b16 %v32
  %v121 = vunpack.c.h.b16 %v32
  %v122 = vunpack.c.l.b16 %v33
  %v123 = vunpack.c.h.b16 %v33
  %v124 = vunpack.c.l.b16 %v34
  %v125 = vunpack.c.h.b16 %v34
  %v126 = vunpack.c.l.b16 %v35
  %v127 = vunpack.c.h.b16 %v35
  %v128 = vunpack.c.l.b16 %v36
  %v129 = vunpack.c.h.b16 %v36
  %v130 = vunpack.c.l.b16 %v37
  %v131 = vunpack.c.h.b16 %v37
  %v132 = vunpack.c.l.b16 %v38
  %v133 = vunpack.c.h.b16 %v38
  %v134 = vunpack.c.l.b16 %v39
  %v135 = vunpack.c.h.b16 %v39
  %v136 = vunpack.c.l.b16 %v40
  %v137 = vunpack.c.h.b16 %v40
  %v138 = vunpack.c.l.b16 %v41
  %v139 = vunpack.c.h.b16 %v41
  %v140 = vunpack.c.l.b16 %v42
  %v141 = vunpack.c.h.b16 %v42
  %v142 = vunpack.c.l.b16 %v43
  %v143 = vunpack.c.h.b16 %v43
  %v144 = vunpack.c.l.b16 %v44
  %v145 = vunpack.c.h.b16 %v44
  %v146 = vunpack.c.l.b16 %v45
  %v147 = vunpack.c.h.b16 %v45
  %v148 = vpack.c.b16 %v102, %v100
  %v149 = vpack.c.b16 %v103, %v101
  %v150 = vpack.c.b16 %v106, %v104
  %v151 = vpack.c.b16 %v107, %v105
  %v152 = vpack.c.b16 %v110, %v108
  %v153 = vpack.c.b16 %v111, %v109
  %v154 = vpack.c.b16 %v114, %v112
  %v155 = vpack.c.b16 %v115, %v113
  %v156 = vpack.c.b16 %v118, %v116
  %v157 = vpack.c.b16 %v119, %v117
  %v158 = vpack.c.b16 %v122, %v120
  %v159 = vpack.c.b16 %v123, %v121
  %v160 = vpack.c.b16 %v126, %v124
  %v161 = vpack.c.b16 %v127, %v125
  %v162 = vpack.c.b16 %v130, %v128
  %v163 = vpack.c.b16 %v131, %v129
  %v164 = vpack.c.b16 %v134, %v132
  %v165 = vpack.c.b16 %v135, %v133
  %v166 = vpack.c.b16 %v138, %v136
  %v167 = vpack.c.b16 %v139, %v137
  %v168 = vpack.c.b16 %v142, %v140
  %v169 = vpack.c.b16 %v143, %v141
  %v170 = vpack.c.b16 %v146, %v144
  %v171 = vpack.c.b16 %v147, %v145
  %vm196 = vcmask 523264
  %v198 = vsel %vm196, %v71, 0
  %v201 = vsel %vm196, %v73, 0
  %203 = vmatprep.subr.bf16.mxu0 %v163
  %204 = vmatpush1.bf16.msra.mxu0 %v162
  %205 = vmatprep.subr.bf16.mxu0 %v161
  %206 = vmatpush1.bf16.msra.mxu0 %v160
  %207 = vmatprep.subr.bf16.mxu0 %v159
  %208 = vmatpush1.bf16.msra.mxu0 %v158
  %209 = vmatprep.subr.bf16.mxu0 %v157
  %210 = vmatpush1.bf16.msra.mxu0 %v156
  %211 = vmatprep.subr.bf16.mxu0 %v155
  %212 = vmatpush1.bf16.msra.mxu0 %v154
  %213 = vmatprep.subr.bf16.mxu0 %v153
  %214 = vmatpush1.bf16.msra.mxu0 %v152
  %215 = vmatprep.subr.bf16.mxu0 %v151
  %216 = vmatpush1.bf16.msra.mxu0 %v150
  %217 = vmatprep.subr.bf16.mxu0 %v149
  %218 = vmatpush1.bf16.msra.mxu0 %v148
  %219 = vmatprep.subr.bf16.mxu0 0
  %220 = vmatpush2.bf16.msra.mxu0 0
  %221 = vmatprep.subr.bf16.mxu0 0
  %222 = vmatpush2.bf16.msra.mxu0 0
  %223 = vmatprep.subr.bf16.mxu0 0
  %224 = vmatpush2.bf16.msra.mxu0 0
  %225 = vmatprep.subr.bf16.mxu0 0
  %226 = vmatpush2.bf16.msra.mxu0 0
  %227 = vmatprep.subr.bf16.mxu0 %v171
  %228 = vmatpush2.bf16.msra.mxu0 %v170
  %229 = vmatprep.subr.bf16.mxu0 %v169
  %230 = vmatpush2.bf16.msra.mxu0 %v168
  %231 = vmatprep.subr.bf16.mxu0 %v167
  %232 = vmatpush2.bf16.msra.mxu0 %v166
  %233 = vmatprep.subr.bf16.mxu0 %v165
  %234 = vmatpush2.bf16.msra.mxu0 %v164
  %235 = vmatprep.mubr.bf16.mxu0 %v198
  %236 = vmatmul.mubr.bf16.gmra.mxu0 %v70
  %v237 = vpop.f32.mrf.mxu0
  %v238 = vadd.f32 %v51, %v237
  %v239 = vpop.f32.mrf.mxu0
  %v240 = vadd.f32 %v55, %v239
  %v241 = vpop.f32.mrf.mxu0
  %v242 = vadd.f32 %v51, %v241
  %v243 = vpop.f32.mrf.mxu0
  %v244 = vadd.f32 %v55, %v243
  %245 = vmatprep.mubr.bf16.mxu0 %v201
  %246 = vmatmul.mubr.bf16.gmra.mxu0 %v72
  %v247 = vpop.f32.mrf.mxu0
  %v248 = vadd.f32 %v51, %v247
  %v249 = vpop.f32.mrf.mxu0
  %v250 = vadd.f32 %v55, %v249
  %v251 = vpop.f32.mrf.mxu0
  %v252 = vadd.f32 %v51, %v251
  %v253 = vpop.f32.mrf.mxu0
  %v254 = vadd.f32 %v55, %v253
  %255 = vdwg.mxu0
  %v256 = vld [vmem:[%s3] sm:$0xff]
  %v257 = vld [vmem:[%s3 + $0x8] sm:$0xff]
  %v258 = vld [vmem:[%s3 + $0x10] sm:$0xff]
  %v259 = vld [vmem:[%s3 + $0x18] sm:$0xff]
  %v260 = vunpack.c.l.bf16 %v256
  %v261 = vunpack.c.h.bf16 %v256
  %v262 = vunpack.c.l.bf16 %v257
  %v263 = vunpack.c.h.bf16 %v257
  %v264 = vunpack.c.l.bf16 %v258
  %v265 = vunpack.c.h.bf16 %v258
  %v266 = vunpack.c.l.bf16 %v259
  %v267 = vunpack.c.h.bf16 %v259
  %v268 = vadd.f32 %v238, %v260
  %v269 = vadd.f32 %v240, %v261
  %v270 = vadd.f32 %v242, %v262
  %v271 = vadd.f32 %v244, %v263
  %v272 = vadd.f32 %v248, %v264
  %v273 = vadd.f32 %v250, %v265
  %v274 = vadd.f32 %v252, %v266
  %v275 = vadd.f32 %v254, %v267
  %v276 = vpack.c.bf16 %v270, %v268
  %v277 = vpack.c.bf16 %v271, %v269
  %v278 = vpack.c.bf16 %v274, %v272
  %v279 = vpack.c.bf16 %v275, %v273
  %v284 = vunpack.c.l.b16 %v276
  %v285 = vunpack.c.l.b16 %v277
  %v286 = vunpack.c.h.b16 %v276
  %v287 = vunpack.c.h.b16 %v277
  %v288 = vunpack.c.l.b16 %v278
  %v289 = vunpack.c.l.b16 %v279
  %v290 = vunpack.c.h.b16 %v278
  %v291 = vunpack.c.h.b16 %v279
  %v292 = vpack.c.b16 %v285, %v284
  %v293 = vpack.c.b16 %v287, %v286
  %v294 = vpack.c.b16 %v289, %v288
  %v295 = vpack.c.b16 %v291, %v290
  %300 = vst [vmem:[%s4] sm:$0xff] %v292
  %301 = vst [vmem:[%s4 + $0x8] sm:$0xff] %v293
  %302 = vst [vmem:[%s4 + $0x10] sm:$0xff] %v294
  %303 = vst [vmem:[%s4 + $0x18] sm:$0xff] %v295
  // Predicated region
  $region18: #{vision_encoder_forward.12} parent=0 // pred_check
    _
  $region19: #{vision_encoder_forward.12} parent=0 // pred_check_branch
    %305 = sbr.rel (0) target = $region21
  $region20: #{vision_encoder_forward.12} parent=0 // pred_region
    _
  $region21: #{vision_encoder_forward.12} parent=0 // pred_fallthru
    _
  // Predicated region
  $region22: #{vision_encoder_forward.12} parent=0 // pred_check
    _
  $region23: #{vision_encoder_forward.12} parent=0 // pred_check_branch
    %307 = sbr.rel (0) target = $region25
  $region24: #{vision_encoder_forward.12} parent=0 // pred_region
    _
  $region25: #{vision_encoder_forward.12} parent=0 // pred_fallthru
    _

// kernel: vision_encoder_forward.13
$region0: #{vision_encoder_forward.13}
  #allocation0 [shape = 'u32[]', space=smem, size = 0x4, offset = 0x4, fixed_abs, tag = 'smem constant byte address 0x4 - core index']
  #allocation1 [shape = 'u32[144,128]{1,0:T(1,128)}', space=vmem, size = 0x12000, scoped, tag = 'internal scratch']
  #allocation2 [shape = 'bf16[32,256]{1,0:T(8,128)(2,1)}', space=vmem, size = 0x4000, scoped, tag = 'scratch operand']
  %s0 = inlined_call_operand.vmem [shape: bf16[32,256], index: 0, kind: input, shape index: {}]
  %s1 = inlined_call_operand.vmem [shape: f32[1,256], index: 1, kind: input, shape index: {}]
  %s2 = inlined_call_operand.vmem [shape: f32[1,256], index: 2, kind: input, shape index: {}]
  %s3 = inlined_call_operand.vmem [shape: bf16[256,768], index: 3, kind: input, shape index: {}]
  %s4 = inlined_call_operand.vmem [shape: f32[1,768], index: 4, kind: input, shape index: {}]
  %s5 = inlined_call_operand.vmem [shape: bf16[32,768], index: 5, kind: output, shape index: {}]
  %s6 = sld [smem:[#allocation0]]
  $region34: #{vision_encoder_forward.13} parent=0
    _
  %s8 = ssub.s32 1, %s6
  %s9 = scalar_select 0, %s8, %s6
  // Predicated region
  $region2: #{vision_encoder_forward.13} parent=0 // pred_check
    _
  $region3: #{vision_encoder_forward.13} parent=0 // pred_check_branch
    %11 = sbr.rel (0) target = $region5
  $region4: #{vision_encoder_forward.13} parent=0 // pred_region
    _
  $region5: #{vision_encoder_forward.13} parent=0 // pred_fallthru
    _
  // Predicated region
  $region6: #{vision_encoder_forward.13} parent=0 // pred_check
    _
  $region7: #{vision_encoder_forward.13} parent=0 // pred_check_branch
    %13 = sbr.rel (0) target = $region9
  $region8: #{vision_encoder_forward.13} parent=0 // pred_region
    _
  $region9: #{vision_encoder_forward.13} parent=0 // pred_fallthru
    _
  // Predicated region
  $region10: #{vision_encoder_forward.13} parent=0 // pred_check
    _
  $region11: #{vision_encoder_forward.13} parent=0 // pred_check_branch
    %15 = sbr.rel (0) target = $region13
  $region12: #{vision_encoder_forward.13} parent=0 // pred_region
    _
  $region13: #{vision_encoder_forward.13} parent=0 // pred_fallthru
    _
  // Predicated region
  $region14: #{vision_encoder_forward.13} parent=0 // pred_check
    _
  $region15: #{vision_encoder_forward.13} parent=0 // pred_check_branch
    %17 = sbr.rel (0) target = $region17
  $region16: #{vision_encoder_forward.13} parent=0 // pred_region
    _
  $region17: #{vision_encoder_forward.13} parent=0 // pred_fallthru
    _
  // Predicated region
  $region18: #{vision_encoder_forward.13} parent=0 // pred_check
    _
  $region19: #{vision_encoder_forward.13} parent=0 // pred_check_branch
    %19 = sbr.rel (0) target = $region21
  $region20: #{vision_encoder_forward.13} parent=0 // pred_region
    _
  $region21: #{vision_encoder_forward.13} parent=0 // pred_fallthru
    _
  %p20 = scmp.eq.s32.totalorder 0, 0
  // Predicated region
  $region22: #{vision_encoder_forward.13} parent=0 // pred_check
    %p21 = pneg %p20
  $region23: #{vision_encoder_forward.13} parent=0 // pred_check_branch
    %23 = sbr.rel (%p21) target = $region25
  $region24: #{vision_encoder_forward.13} parent=0 // pred_region
    %v24 = vld [vmem:[%s0] sm:$0xff]
    %v25 = vld [vmem:[%s0 + $0x8] sm:$0xff]
    %v26 = vld [vmem:[%s0 + $0x10] sm:$0xff]
    %v27 = vld [vmem:[%s0 + $0x18] sm:$0xff]
    %v28 = vunpack.c.l.bf16 %v24
    %v29 = vunpack.c.h.bf16 %v24
    %v30 = vunpack.c.l.bf16 %v25
    %v31 = vunpack.c.h.bf16 %v25
    %v32 = vunpack.c.l.bf16 %v26
    %v33 = vunpack.c.h.bf16 %v26
    %v34 = vunpack.c.l.bf16 %v27
    %v35 = vunpack.c.h.bf16 %v27
    %v36 = vadd.f32 %v28, %v29
    %37 = vadd.xlane.f32.xlu0 %v36
    %v38 = vpop.xlane.xlu0 %37
    %v39 = vadd.f32 %v30, %v31
    %40 = vadd.xlane.f32.xlu0 %v39
    %v41 = vpop.xlane.xlu0 %40
    %v42 = vadd.f32 %v32, %v33
    %43 = vadd.xlane.f32.xlu0 %v42
    %v44 = vpop.xlane.xlu0 %43
    %v45 = vadd.f32 %v34, %v35
    %46 = vadd.xlane.f32.xlu0 %v45
    %v47 = vpop.xlane.xlu0 %46
    %v48 = vrcp.pop 256.0
    %v49 = vmul.f32 %v38, %v48
    %v50 = vmul.f32 %v41, %v48
    %v51 = vmul.f32 %v44, %v48
    %v52 = vmul.f32 %v47, %v48
    %v53 = vsub.f32 %v28, %v49
    %v54 = vsub.f32 %v29, %v49
    %v55 = vsub.f32 %v30, %v50
    %v56 = vsub.f32 %v31, %v50
    %v57 = vsub.f32 %v32, %v51
    %v58 = vsub.f32 %v33, %v51
    %v59 = vsub.f32 %v34, %v52
    %v60 = vsub.f32 %v35, %v52
    %v61 = vmul.f32 %v53, %v53
    %v62 = vmul.f32 %v54, %v54
    %v63 = vmul.f32 %v55, %v55
    %v64 = vmul.f32 %v56, %v56
    %v65 = vmul.f32 %v57, %v57
    %v66 = vmul.f32 %v58, %v58
    %v67 = vmul.f32 %v59, %v59
    %v68 = vmul.f32 %v60, %v60
    %v69 = vadd.f32 %v61, %v62
    %70 = vadd.xlane.f32.xlu0 %v69
    %v71 = vpop.xlane.xlu0 %70
    %v72 = vadd.f32 %v63, %v64
    %73 = vadd.xlane.f32.xlu0 %v72
    %v74 = vpop.xlane.xlu0 %73
    %v75 = vadd.f32 %v65, %v66
    %76 = vadd.xlane.f32.xlu0 %v75
    %v77 = vpop.xlane.xlu0 %76
    %v78 = vadd.f32 %v67, %v68
    %79 = vadd.xlane.f32.xlu0 %v78
    %v80 = vpop.xlane.xlu0 %79
    %v81 = vmul.f32 %v71, %v48
    %v82 = vmul.f32 %v74, %v48
    %v83 = vmul.f32 %v77, %v48
    %v84 = vmul.f32 %v80, %v48
    %v85 = vadd.f32 %v81, 1e-06
    %v86 = vadd.f32 %v82, 1e-06
    %v87 = vadd.f32 %v83, 1e-06
    %v88 = vadd.f32 %v84, 1e-06
    %v89 = vrsqrt.pop %v85
    %v90 = vrsqrt.pop %v86
    %v91 = vrsqrt.pop %v87
    %v92 = vrsqrt.pop %v88
    %v93 = vmul.f32 %v53, %v89
    %v94 = vmul.f32 %v54, %v89
    %v95 = vmul.f32 %v55, %v90
    %v96 = vmul.f32 %v56, %v90
    %v97 = vmul.f32 %v57, %v91
    %v98 = vmul.f32 %v58, %v91
    %v99 = vmul.f32 %v59, %v92
    %v100 = vmul.f32 %v60, %v92
    %v101 = vld [vmem:[%s1] sm:$0x3]
    %v103 = vlaneseq
    %v104 = vshrl.u32 %v103, 7
    %v105 = vsub.s32 0, %v104
    %v106 = vrot.slane %v101, %v105
    %v107 = vlaneseq
    %v108 = vshrl.u32 %v107, 7
    %v109 = vsub.s32 1, %v108
    %v110 = vrot.slane %v101, %v109
    %v113 = vmul.f32 %v93, %v106
    %v114 = vmul.f32 %v94, %v110
    %v115 = vmul.f32 %v95, %v106
    %v116 = vmul.f32 %v96, %v110
    %v117 = vmul.f32 %v97, %v106
    %v118 = vmul.f32 %v98, %v110
    %v119 = vmul.f32 %v99, %v106
    %v120 = vmul.f32 %v100, %v110
    %v121 = vld [vmem:[%s2] sm:$0x3]
    %v123 = vlaneseq
    %v124 = vshrl.u32 %v123, 7
    %v125 = vsub.s32 0, %v124
    %v126 = vrot.slane %v121, %v125
    %v127 = vlaneseq
    %v128 = vshrl.u32 %v127, 7
    %v129 = vsub.s32 1, %v128
    %v130 = vrot.slane %v121, %v129
    %v133 = vadd.f32 %v113, %v126
    %v134 = vadd.f32 %v114, %v130
    %v135 = vadd.f32 %v115, %v126
    %v136 = vadd.f32 %v116, %v130
    %v137 = vadd.f32 %v117, %v126
    %v138 = vadd.f32 %v118, %v130
    %v139 = vadd.f32 %v119, %v126
    %v140 = vadd.f32 %v120, %v130
    %v141 = vpack.c.bf16 %v135, %v133
    %v142 = vpack.c.bf16 %v136, %v134
    %v143 = vpack.c.bf16 %v139, %v137
    %v144 = vpack.c.bf16 %v140, %v138
    %v149 = vunpack.c.l.b16 %v141
    %v150 = vunpack.c.l.b16 %v142
    %v151 = vunpack.c.h.b16 %v141
    %v152 = vunpack.c.h.b16 %v142
    %v153 = vunpack.c.l.b16 %v143
    %v154 = vunpack.c.l.b16 %v144
    %v155 = vunpack.c.h.b16 %v143
    %v156 = vunpack.c.h.b16 %v144
    %v157 = vpack.c.b16 %v150, %v149
    %v158 = vpack.c.b16 %v152, %v151
    %v159 = vpack.c.b16 %v154, %v153
    %v160 = vpack.c.b16 %v156, %v155
    %165 = vst [vmem:[#allocation2] sm:$0xff] %v157
    %166 = vst [vmem:[#allocation2 + $0x8] sm:$0xff] %v158
    %167 = vst [vmem:[#allocation2 + $0x10] sm:$0xff] %v159
    %168 = vst [vmem:[#allocation2 + $0x18] sm:$0xff] %v160
  $region25: #{vision_encoder_forward.13} parent=0 // pred_fallthru
    _
  %v169 = vld [vmem:[#allocation2] sm:$0xff]
  %v170 = vld [vmem:[#allocation2 + $0x8] sm:$0xff]
  %v171 = vld [vmem:[#allocation2 + $0x10] sm:$0xff]
  %v172 = vld [vmem:[#allocation2 + $0x18] sm:$0xff]
  %v173 = vld [vmem:[%s3] sm:$0xff]
  %v174 = vld [vmem:[%s3 + $0x8] sm:$0xff]
  %v175 = vld [vmem:[%s3 + $0x10] sm:$0xff]
  %v176 = vld [vmem:[%s3 + $0x18] sm:$0xff]
  %v177 = vld [vmem:[%s3 + $0x20] sm:$0xff]
  %v178 = vld [vmem:[%s3 + $0x28] sm:$0xff]
  %v179 = vld [vmem:[%s3 + $0x30] sm:$0xff]
  %v180 = vld [vmem:[%s3 + $0x38] sm:$0xff]
  %v181 = vld [vmem:[%s3 + $0x40] sm:$0xff]
  %v182 = vld [vmem:[%s3 + $0x48] sm:$0xff]
  %v183 = vld [vmem:[%s3 + $0x50] sm:$0xff]
  %v184 = vld [vmem:[%s3 + $0x58] sm:$0xff]
  %v185 = vld [vmem:[%s3 + $0x60] sm:$0xff]
  %v186 = vld [vmem:[%s3 + $0x68] sm:$0xff]
  %v187 = vld [vmem:[%s3 + $0x70] sm:$0xff]
  %v188 = vld [vmem:[%s3 + $0x78] sm:$0xff]
  %v189 = vld [vmem:[%s3 + $0x80] sm:$0xff]
  %v190 = vld [vmem:[%s3 + $0x88] sm:$0xff]
  %v191 = vld [vmem:[%s3 + $0x90] sm:$0xff]
  %v192 = vld [vmem:[%s3 + $0x98] sm:$0xff]
  %v193 = vld [vmem:[%s3 + $0xa0] sm:$0xff]
  %v194 = vld [vmem:[%s3 + $0xa8] sm:$0xff]
  %v195 = vld [vmem:[%s3 + $0xb0] sm:$0xff]
  %v196 = vld [vmem:[%s3 + $0xb8] sm:$0xff]
  %v197 = vld [vmem:[%s3 + $0xc0] sm:$0xff]
  %v198 = vld [vmem:[%s3 + $0xc8] sm:$0xff]
  %v199 = vld [vmem:[%s3 + $0xd0] sm:$0xff]
  %v200 = vld [vmem:[%s3 + $0xd8] sm:$0xff]
  %v201 = vld [vmem:[%s3 + $0xe0] sm:$0xff]
  %v202 = vld [vmem:[%s3 + $0xe8] sm:$0xff]
  %v203 = vld [vmem:[%s3 + $0xf0] sm:$0xff]
  %v204 = vld [vmem:[%s3 + $0xf8] sm:$0xff]
  %v205 = vld [vmem:[%s3 + $0x100] sm:$0xff]
  %v206 = vld [vmem:[%s3 + $0x108] sm:$0xff]
  %v207 = vld [vmem:[%s3 + $0x110] sm:$0xff]
  %v208 = vld [vmem:[%s3 + $0x118] sm:$0xff]
  %v209 = vld [vmem:[%s3 + $0x120] sm:$0xff]
  %v210 = vld [vmem:[%s3 + $0x128] sm:$0xff]
  %v211 = vld [vmem:[%s3 + $0x130] sm:$0xff]
  %v212 = vld [vmem:[%s3 + $0x138] sm:$0xff]
  %v213 = vld [vmem:[%s3 + $0x140] sm:$0xff]
  %v214 = vld [vmem:[%s3 + $0x148] sm:$0xff]
  %v215 = vld [vmem:[%s3 + $0x150] sm:$0xff]
  %v216 = vld [vmem:[%s3 + $0x158] sm:$0xff]
  %v217 = vld [vmem:[%s3 + $0x160] sm:$0xff]
  %v218 = vld [vmem:[%s3 + $0x168] sm:$0xff]
  %v219 = vld [vmem:[%s3 + $0x170] sm:$0xff]
  %v220 = vld [vmem:[%s3 + $0x178] sm:$0xff]
  %v221 = vld [vmem:[%s3 + $0x180] sm:$0xff]
  %v222 = vld [vmem:[%s3 + $0x188] sm:$0xff]
  %v223 = vld [vmem:[%s3 + $0x190] sm:$0xff]
  %v224 = vld [vmem:[%s3 + $0x198] sm:$0xff]
  %v225 = vld [vmem:[%s3 + $0x1a0] sm:$0xff]
  %v226 = vld [vmem:[%s3 + $0x1a8] sm:$0xff]
  %v227 = vld [vmem:[%s3 + $0x1b0] sm:$0xff]
  %v228 = vld [vmem:[%s3 + $0x1b8] sm:$0xff]
  %v229 = vld [vmem:[%s3 + $0x1c0] sm:$0xff]
  %v230 = vld [vmem:[%s3 + $0x1c8] sm:$0xff]
  %v231 = vld [vmem:[%s3 + $0x1d0] sm:$0xff]
  %v232 = vld [vmem:[%s3 + $0x1d8] sm:$0xff]
  %v233 = vld [vmem:[%s3 + $0x1e0] sm:$0xff]
  %v234 = vld [vmem:[%s3 + $0x1e8] sm:$0xff]
  %v235 = vld [vmem:[%s3 + $0x1f0] sm:$0xff]
  %v236 = vld [vmem:[%s3 + $0x1f8] sm:$0xff]
  %v237 = vld [vmem:[%s3 + $0x200] sm:$0xff]
  %v238 = vld [vmem:[%s3 + $0x208] sm:$0xff]
  %v239 = vld [vmem:[%s3 + $0x210] sm:$0xff]
  %v240 = vld [vmem:[%s3 + $0x218] sm:$0xff]
  %v241 = vld [vmem:[%s3 + $0x220] sm:$0xff]
  %v242 = vld [vmem:[%s3 + $0x228] sm:$0xff]
  %v243 = vld [vmem:[%s3 + $0x230] sm:$0xff]
  %v244 = vld [vmem:[%s3 + $0x238] sm:$0xff]
  %v245 = vld [vmem:[%s3 + $0x240] sm:$0xff]
  %v246 = vld [vmem:[%s3 + $0x248] sm:$0xff]
  %v247 = vld [vmem:[%s3 + $0x250] sm:$0xff]
  %v248 = vld [vmem:[%s3 + $0x258] sm:$0xff]
  %v249 = vld [vmem:[%s3 + $0x260] sm:$0xff]
  %v250 = vld [vmem:[%s3 + $0x268] sm:$0xff]
  %v251 = vld [vmem:[%s3 + $0x270] sm:$0xff]
  %v252 = vld [vmem:[%s3 + $0x278] sm:$0xff]
  %v253 = vld [vmem:[%s3 + $0x280] sm:$0xff]
  %v254 = vld [vmem:[%s3 + $0x288] sm:$0xff]
  %v255 = vld [vmem:[%s3 + $0x290] sm:$0xff]
  %v256 = vld [vmem:[%s3 + $0x298] sm:$0xff]
  %v257 = vld [vmem:[%s3 + $0x2a0] sm:$0xff]
  %v258 = vld [vmem:[%s3 + $0x2a8] sm:$0xff]
  %v259 = vld [vmem:[%s3 + $0x2b0] sm:$0xff]
  %v260 = vld [vmem:[%s3 + $0x2b8] sm:$0xff]
  %v261 = vld [vmem:[%s3 + $0x2c0] sm:$0xff]
  %v262 = vld [vmem:[%s3 + $0x2c8] sm:$0xff]
  %v263 = vld [vmem:[%s3 + $0x2d0] sm:$0xff]
  %v264 = vld [vmem:[%s3 + $0x2d8] sm:$0xff]
  %v265 = vld [vmem:[%s3 + $0x2e0] sm:$0xff]
  %v266 = vld [vmem:[%s3 + $0x2e8] sm:$0xff]
  %v267 = vld [vmem:[%s3 + $0x2f0] sm:$0xff]
  %v268 = vld [vmem:[%s3 + $0x2f8] sm:$0xff]
  %v269 = vld [vmem:[%s4] sm:$0x3f]
  %v271 = vlaneseq
  %v272 = vshrl.u32 %v271, 7
  %v273 = vsub.s32 0, %v272
  %v274 = vrot.slane %v269, %v273
  %v275 = vlaneseq
  %v276 = vshrl.u32 %v275, 7
  %v277 = vsub.s32 1, %v276
  %v278 = vrot.slane %v269, %v277
  %v279 = vlaneseq
  %v280 = vshrl.u32 %v279, 7
  %v281 = vsub.s32 2, %v280
  %v282 = vrot.slane %v269, %v281
  %v283 = vlaneseq
  %v284 = vshrl.u32 %v283, 7
  %v285 = vsub.s32 3, %v284
  %v286 = vrot.slane %v269, %v285
  %v287 = vlaneseq
  %v288 = vshrl.u32 %v287, 7
  %v289 = vsub.s32 4, %v288
  %v290 = vrot.slane %v269, %v289
  %v291 = vlaneseq
  %v292 = vshrl.u32 %v291, 7
  %v293 = vsub.s32 5, %v292
  %v294 = vrot.slane %v269, %v293
  %v305 = vunpack.c.l.b16 %v169
  %v306 = vunpack.c.h.b16 %v169
  %v307 = vunpack.c.l.b16 %v170
  %v308 = vunpack.c.h.b16 %v170
  %v309 = vunpack.c.l.b16 %v171
  %v310 = vunpack.c.h.b16 %v171
  %v311 = vunpack.c.l.b16 %v172
  %v312 = vunpack.c.h.b16 %v172
  %v313 = vpack.c.b16 %v307, %v305
  %v314 = vpack.c.b16 %v308, %v306
  %v315 = vpack.c.b16 %v311, %v309
  %v316 = vpack.c.b16 %v312, %v310
  %v417 = vunpack.c.l.b16 %v173
  %v418 = vunpack.c.h.b16 %v173
  %v419 = vunpack.c.l.b16 %v174
  %v420 = vunpack.c.h.b16 %v174
  %v421 = vunpack.c.l.b16 %v175
  %v422 = vunpack.c.h.b16 %v175
  %v423 = vunpack.c.l.b16 %v176
  %v424 = vunpack.c.h.b16 %v176
  %v425 = vunpack.c.l.b16 %v177
  %v426 = vunpack.c.h.b16 %v177
  %v427 = vunpack.c.l.b16 %v178
  %v428 = vunpack.c.h.b16 %v178
  %v429 = vunpack.c.l.b16 %v179
  %v430 = vunpack.c.h.b16 %v179
  %v431 = vunpack.c.l.b16 %v180
  %v432 = vunpack.c.h.b16 %v180
  %v433 = vunpack.c.l.b16 %v181
  %v434 = vunpack.c.h.b16 %v181
  %v435 = vunpack.c.l.b16 %v182
  %v436 = vunpack.c.h.b16 %v182
  %v437 = vunpack.c.l.b16 %v183
  %v438 = vunpack.c.h.b16 %v183
  %v439 = vunpack.c.l.b16 %v184
  %v440 = vunpack.c.h.b16 %v184
  %v441 = vunpack.c.l.b16 %v185
  %v442 = vunpack.c.h.b16 %v185
  %v443 = vunpack.c.l.b16 %v186
  %v444 = vunpack.c.h.b16 %v186
  %v445 = vunpack.c.l.b16 %v187
  %v446 = vunpack.c.h.b16 %v187
  %v447 = vunpack.c.l.b16 %v188
  %v448 = vunpack.c.h.b16 %v188
  %v449 = vunpack.c.l.b16 %v189
  %v450 = vunpack.c.h.b16 %v189
  %v451 = vunpack.c.l.b16 %v190
  %v452 = vunpack.c.h.b16 %v190
  %v453 = vunpack.c.l.b16 %v191
  %v454 = vunpack.c.h.b16 %v191
  %v455 = vunpack.c.l.b16 %v192
  %v456 = vunpack.c.h.b16 %v192
  %v457 = vunpack.c.l.b16 %v193
  %v458 = vunpack.c.h.b16 %v193
  %v459 = vunpack.c.l.b16 %v194
  %v460 = vunpack.c.h.b16 %v194
  %v461 = vunpack.c.l.b16 %v195
  %v462 = vunpack.c.h.b16 %v195
  %v463 = vunpack.c.l.b16 %v196
  %v464 = vunpack.c.h.b16 %v196
  %v465 = vunpack.c.l.b16 %v197
  %v466 = vunpack.c.h.b16 %v197
  %v467 = vunpack.c.l.b16 %v198
  %v468 = vunpack.c.h.b16 %v198
  %v469 = vunpack.c.l.b16 %v199
  %v470 = vunpack.c.h.b16 %v199
  %v471 = vunpack.c.l.b16 %v200
  %v472 = vunpack.c.h.b16 %v200
  %v473 = vunpack.c.l.b16 %v201
  %v474 = vunpack.c.h.b16 %v201
  %v475 = vunpack.c.l.b16 %v202
  %v476 = vunpack.c.h.b16 %v202
  %v477 = vunpack.c.l.b16 %v203
  %v478 = vunpack.c.h.b16 %v203
  %v479 = vunpack.c.l.b16 %v204
  %v480 = vunpack.c.h.b16 %v204
  %v481 = vunpack.c.l.b16 %v205
  %v482 = vunpack.c.h.b16 %v205
  %v483 = vunpack.c.l.b16 %v206
  %v484 = vunpack.c.h.b16 %v206
  %v485 = vunpack.c.l.b16 %v207
  %v486 = vunpack.c.h.b16 %v207
  %v487 = vunpack.c.l.b16 %v208
  %v488 = vunpack.c.h.b16 %v208
  %v489 = vunpack.c.l.b16 %v209
  %v490 = vunpack.c.h.b16 %v209
  %v491 = vunpack.c.l.b16 %v210
  %v492 = vunpack.c.h.b16 %v210
  %v493 = vunpack.c.l.b16 %v211
  %v494 = vunpack.c.h.b16 %v211
  %v495 = vunpack.c.l.b16 %v212
  %v496 = vunpack.c.h.b16 %v212
  %v497 = vunpack.c.l.b16 %v213
  %v498 = vunpack.c.h.b16 %v213
  %v499 = vunpack.c.l.b16 %v214
  %v500 = vunpack.c.h.b16 %v214
  %v501 = vunpack.c.l.b16 %v215
  %v502 = vunpack.c.h.b16 %v215
  %v503 = vunpack.c.l.b16 %v216
  %v504 = vunpack.c.h.b16 %v216
  %v505 = vunpack.c.l.b16 %v217
  %v506 = vunpack.c.h.b16 %v217
  %v507 = vunpack.c.l.b16 %v218
  %v508 = vunpack.c.h.b16 %v218
  %v509 = vunpack.c.l.b16 %v219
  %v510 = vunpack.c.h.b16 %v219
  %v511 = vunpack.c.l.b16 %v220
  %v512 = vunpack.c.h.b16 %v220
  %v513 = vunpack.c.l.b16 %v221
  %v514 = vunpack.c.h.b16 %v221
  %v515 = vunpack.c.l.b16 %v222
  %v516 = vunpack.c.h.b16 %v222
  %v517 = vunpack.c.l.b16 %v223
  %v518 = vunpack.c.h.b16 %v223
  %v519 = vunpack.c.l.b16 %v224
  %v520 = vunpack.c.h.b16 %v224
  %v521 = vunpack.c.l.b16 %v225
  %v522 = vunpack.c.h.b16 %v225
  %v523 = vunpack.c.l.b16 %v226
  %v524 = vunpack.c.h.b16 %v226
  %v525 = vunpack.c.l.b16 %v227
  %v526 = vunpack.c.h.b16 %v227
  %v527 = vunpack.c.l.b16 %v228
  %v528 = vunpack.c.h.b16 %v228
  %v529 = vunpack.c.l.b16 %v229
  %v530 = vunpack.c.h.b16 %v229
  %v531 = vunpack.c.l.b16 %v230
  %v532 = vunpack.c.h.b16 %v230
  %v533 = vunpack.c.l.b16 %v231
  %v534 = vunpack.c.h.b16 %v231
  %v535 = vunpack.c.l.b16 %v232
  %v536 = vunpack.c.h.b16 %v232
  %v537 = vunpack.c.l.b16 %v233
  %v538 = vunpack.c.h.b16 %v233
  %v539 = vunpack.c.l.b16 %v234
  %v540 = vunpack.c.h.b16 %v234
  %v541 = vunpack.c.l.b16 %v235
  %v542 = vunpack.c.h.b16 %v235
  %v543 = vunpack.c.l.b16 %v236
  %v544 = vunpack.c.h.b16 %v236
  %v545 = vunpack.c.l.b16 %v237
  %v546 = vunpack.c.h.b16 %v237
  %v547 = vunpack.c.l.b16 %v238
  %v548 = vunpack.c.h.b16 %v238
  %v549 = vunpack.c.l.b16 %v239
  %v550 = vunpack.c.h.b16 %v239
  %v551 = vunpack.c.l.b16 %v240
  %v552 = vunpack.c.h.b16 %v240
  %v553 = vunpack.c.l.b16 %v241
  %v554 = vunpack.c.h.b16 %v241
  %v555 = vunpack.c.l.b16 %v242
  %v556 = vunpack.c.h.b16 %v242
  %v557 = vunpack.c.l.b16 %v243
  %v558 = vunpack.c.h.b16 %v243
  %v559 = vunpack.c.l.b16 %v244
  %v560 = vunpack.c.h.b16 %v244
  %v561 = vunpack.c.l.b16 %v245
  %v562 = vunpack.c.h.b16 %v245
  %v563 = vunpack.c.l.b16 %v246
  %v564 = vunpack.c.h.b16 %v246
  %v565 = vunpack.c.l.b16 %v247
  %v566 = vunpack.c.h.b16 %v247
  %v567 = vunpack.c.l.b16 %v248
  %v568 = vunpack.c.h.b16 %v248
  %v569 = vunpack.c.l.b16 %v249
  %v570 = vunpack.c.h.b16 %v249
  %v571 = vunpack.c.l.b16 %v250
  %v572 = vunpack.c.h.b16 %v250
  %v573 = vunpack.c.l.b16 %v251
  %v574 = vunpack.c.h.b16 %v251
  %v575 = vunpack.c.l.b16 %v252
  %v576 = vunpack.c.h.b16 %v252
  %v577 = vunpack.c.l.b16 %v253
  %v578 = vunpack.c.h.b16 %v253
  %v579 = vunpack.c.l.b16 %v254
  %v580 = vunpack.c.h.b16 %v254
  %v581 = vunpack.c.l.b16 %v255
  %v582 = vunpack.c.h.b16 %v255
  %v583 = vunpack.c.l.b16 %v256
  %v584 = vunpack.c.h.b16 %v256
  %v585 = vunpack.c.l.b16 %v257
  %v586 = vunpack.c.h.b16 %v257
  %v587 = vunpack.c.l.b16 %v258
  %v588 = vunpack.c.h.b16 %v258
  %v589 = vunpack.c.l.b16 %v259
  %v590 = vunpack.c.h.b16 %v259
  %v591 = vunpack.c.l.b16 %v260
  %v592 = vunpack.c.h.b16 %v260
  %v593 = vunpack.c.l.b16 %v261
  %v594 = vunpack.c.h.b16 %v261
  %v595 = vunpack.c.l.b16 %v262
  %v596 = vunpack.c.h.b16 %v262
  %v597 = vunpack.c.l.b16 %v263
  %v598 = vunpack.c.h.b16 %v263
  %v599 = vunpack.c.l.b16 %v264
  %v600 = vunpack.c.h.b16 %v264
  %v601 = vunpack.c.l.b16 %v265
  %v602 = vunpack.c.h.b16 %v265
  %v603 = vunpack.c.l.b16 %v266
  %v604 = vunpack.c.h.b16 %v266
  %v605 = vunpack.c.l.b16 %v267
  %v606 = vunpack.c.h.b16 %v267
  %v607 = vunpack.c.l.b16 %v268
  %v608 = vunpack.c.h.b16 %v268
  %v609 = vpack.c.b16 %v423, %v417
  %v610 = vpack.c.b16 %v424, %v418
  %v611 = vpack.c.b16 %v425, %v419
  %v612 = vpack.c.b16 %v426, %v420
  %v613 = vpack.c.b16 %v427, %v421
  %v614 = vpack.c.b16 %v428, %v422
  %v615 = vpack.c.b16 %v435, %v429
  %v616 = vpack.c.b16 %v436, %v430
  %v617 = vpack.c.b16 %v437, %v431
  %v618 = vpack.c.b16 %v438, %v432
  %v619 = vpack.c.b16 %v439, %v433
  %v620 = vpack.c.b16 %v440, %v434
  %v621 = vpack.c.b16 %v447, %v441
  %v622 = vpack.c.b16 %v448, %v442
  %v623 = vpack.c.b16 %v449, %v443
  %v624 = vpack.c.b16 %v450, %v444
  %v625 = vpack.c.b16 %v451, %v445
  %v626 = vpack.c.b16 %v452, %v446
  %v627 = vpack.c.b16 %v459, %v453
  %v628 = vpack.c.b16 %v460, %v454
  %v629 = vpack.c.b16 %v461, %v455
  %v630 = vpack.c.b16 %v462, %v456
  %v631 = vpack.c.b16 %v463, %v457
  %v632 = vpack.c.b16 %v464, %v458
  %v633 = vpack.c.b16 %v471, %v465
  %v634 = vpack.c.b16 %v472, %v466
  %v635 = vpack.c.b16 %v473, %v467
  %v636 = vpack.c.b16 %v474, %v468
  %v637 = vpack.c.b16 %v475, %v469
  %v638 = vpack.c.b16 %v476, %v470
  %v639 = vpack.c.b16 %v483, %v477
  %v640 = vpack.c.b16 %v484, %v478
  %v641 = vpack.c.b16 %v485, %v479
  %v642 = vpack.c.b16 %v486, %v480
  %v643 = vpack.c.b16 %v487, %v481
  %v644 = vpack.c.b16 %v488, %v482
  %v645 = vpack.c.b16 %v495, %v489
  %v646 = vpack.c.b16 %v496, %v490
  %v647 = vpack.c.b16 %v497, %v491
  %v648 = vpack.c.b16 %v498, %v492
  %v649 = vpack.c.b16 %v499, %v493
  %v650 = vpack.c.b16 %v500, %v494
  %v651 = vpack.c.b16 %v507, %v501
  %v652 = vpack.c.b16 %v508, %v502
  %v653 = vpack.c.b16 %v509, %v503
  %v654 = vpack.c.b16 %v510, %v504
  %v655 = vpack.c.b16 %v511, %v505
  %v656 = vpack.c.b16 %v512, %v506
  %v657 = vpack.c.b16 %v519, %v513
  %v658 = vpack.c.b16 %v520, %v514
  %v659 = vpack.c.b16 %v521, %v515
  %v660 = vpack.c.b16 %v522, %v516
  %v661 = vpack.c.b16 %v523, %v517
  %v662 = vpack.c.b16 %v524, %v518
  %v663 = vpack.c.b16 %v531, %v525
  %v664 = vpack.c.b16 %v532, %v526
  %v665 = vpack.c.b16 %v533, %v527
  %v666 = vpack.c.b16 %v534, %v528
  %v667 = vpack.c.b16 %v535, %v529
  %v668 = vpack.c.b16 %v536, %v530
  %v669 = vpack.c.b16 %v543, %v537
  %v670 = vpack.c.b16 %v544, %v538
  %v671 = vpack.c.b16 %v545, %v539
  %v672 = vpack.c.b16 %v546, %v540
  %v673 = vpack.c.b16 %v547, %v541
  %v674 = vpack.c.b16 %v548, %v542
  %v675 = vpack.c.b16 %v555, %v549
  %v676 = vpack.c.b16 %v556, %v550
  %v677 = vpack.c.b16 %v557, %v551
  %v678 = vpack.c.b16 %v558, %v552
  %v679 = vpack.c.b16 %v559, %v553
  %v680 = vpack.c.b16 %v560, %v554
  %v681 = vpack.c.b16 %v567, %v561
  %v682 = vpack.c.b16 %v568, %v562
  %v683 = vpack.c.b16 %v569, %v563
  %v684 = vpack.c.b16 %v570, %v564
  %v685 = vpack.c.b16 %v571, %v565
  %v686 = vpack.c.b16 %v572, %v566
  %v687 = vpack.c.b16 %v579, %v573
  %v688 = vpack.c.b16 %v580, %v574
  %v689 = vpack.c.b16 %v581, %v575
  %v690 = vpack.c.b16 %v582, %v576
  %v691 = vpack.c.b16 %v583, %v577
  %v692 = vpack.c.b16 %v584, %v578
  %v693 = vpack.c.b16 %v591, %v585
  %v694 = vpack.c.b16 %v592, %v586
  %v695 = vpack.c.b16 %v593, %v587
  %v696 = vpack.c.b16 %v594, %v588
  %v697 = vpack.c.b16 %v595, %v589
  %v698 = vpack.c.b16 %v596, %v590
  %v699 = vpack.c.b16 %v603, %v597
  %v700 = vpack.c.b16 %v604, %v598
  %v701 = vpack.c.b16 %v605, %v599
  %v702 = vpack.c.b16 %v606, %v600
  %v703 = vpack.c.b16 %v607, %v601
  %v704 = vpack.c.b16 %v608, %v602
  %801 = vmatprep.subr.bf16.mxu0 %v652
  %802 = vmatpush1.bf16.msra.mxu0 %v651
  %803 = vmatprep.subr.bf16.mxu0 %v646
  %804 = vmatpush1.bf16.msra.mxu0 %v645
  %805 = vmatprep.subr.bf16.mxu0 %v640
  %806 = vmatpush1.bf16.msra.mxu0 %v639
  %807 = vmatprep.subr.bf16.mxu0 %v634
  %808 = vmatpush1.bf16.msra.mxu0 %v633
  %809 = vmatprep.subr.bf16.mxu0 %v628
  %810 = vmatpush1.bf16.msra.mxu0 %v627
  %811 = vmatprep.subr.bf16.mxu0 %v622
  %812 = vmatpush1.bf16.msra.mxu0 %v621
  %813 = vmatprep.subr.bf16.mxu0 %v616
  %814 = vmatpush1.bf16.msra.mxu0 %v615
  %815 = vmatprep.subr.bf16.mxu0 %v610
  %816 = vmatpush1.bf16.msra.mxu0 %v609
  %817 = vmatprep.subr.bf16.mxu0 %v700
  %818 = vmatpush2.bf16.msra.mxu0 %v699
  %819 = vmatprep.subr.bf16.mxu0 %v694
  %820 = vmatpush2.bf16.msra.mxu0 %v693
  %821 = vmatprep.subr.bf16.mxu0 %v688
  %822 = vmatpush2.bf16.msra.mxu0 %v687
  %823 = vmatprep.subr.bf16.mxu0 %v682
  %824 = vmatpush2.bf16.msra.mxu0 %v681
  %825 = vmatprep.subr.bf16.mxu0 %v676
  %826 = vmatpush2.bf16.msra.mxu0 %v675
  %827 = vmatprep.subr.bf16.mxu0 %v670
  %828 = vmatpush2.bf16.msra.mxu0 %v669
  %829 = vmatprep.subr.bf16.mxu0 %v664
  %830 = vmatpush2.bf16.msra.mxu0 %v663
  %831 = vmatprep.subr.bf16.mxu0 %v658
  %832 = vmatpush2.bf16.msra.mxu0 %v657
  %833 = vmatprep.mubr.bf16.mxu0 %v314
  %834 = vmatmul.mubr.bf16.gmra.mxu0 %v313
  %v835 = vpop.f32.mrf.mxu0
  %v836 = vadd.f32 %v274, %v835
  %v837 = vpop.f32.mrf.mxu0
  %v838 = vadd.f32 %v278, %v837
  %v839 = vpop.f32.mrf.mxu0
  %v840 = vadd.f32 %v274, %v839
  %v841 = vpop.f32.mrf.mxu0
  %v842 = vadd.f32 %v278, %v841
  %843 = vmatprep.mubr.bf16.mxu0 %v316
  %844 = vmatmul.mubr.bf16.gmra.mxu0 %v315
  %v845 = vpop.f32.mrf.mxu0
  %v846 = vadd.f32 %v274, %v845
  %v847 = vpop.f32.mrf.mxu0
  %v848 = vadd.f32 %v278, %v847
  %v849 = vpop.f32.mrf.mxu0
  %v850 = vadd.f32 %v274, %v849
  %v851 = vpop.f32.mrf.mxu0
  %v852 = vadd.f32 %v278, %v851
  %853 = vdwg.mxu0
  %854 = vmatprep.subr.bf16.mxu0 %v654
  %855 = vmatpush1.bf16.msra.mxu0 %v653
  %856 = vmatprep.subr.bf16.mxu0 %v648
  %857 = vmatpush1.bf16.msra.mxu0 %v647
  %858 = vmatprep.subr.bf16.mxu0 %v642
  %859 = vmatpush1.bf16.msra.mxu0 %v641
  %860 = vmatprep.subr.bf16.mxu0 %v636
  %861 = vmatpush1.bf16.msra.mxu0 %v635
  %862 = vmatprep.subr.bf16.mxu0 %v630
  %863 = vmatpush1.bf16.msra.mxu0 %v629
  %864 = vmatprep.subr.bf16.mxu0 %v624
  %865 = vmatpush1.bf16.msra.mxu0 %v623
  %866 = vmatprep.subr.bf16.mxu0 %v618
  %867 = vmatpush1.bf16.msra.mxu0 %v617
  %868 = vmatprep.subr.bf16.mxu0 %v612
  %869 = vmatpush1.bf16.msra.mxu0 %v611
  %870 = vmatprep.subr.bf16.mxu0 %v702
  %871 = vmatpush2.bf16.msra.mxu0 %v701
  %872 = vmatprep.subr.bf16.mxu0 %v696
  %873 = vmatpush2.bf16.msra.mxu0 %v695
  %874 = vmatprep.subr.bf16.mxu0 %v690
  %875 = vmatpush2.bf16.msra.mxu0 %v689
  %876 = vmatprep.subr.bf16.mxu0 %v684
  %877 = vmatpush2.bf16.msra.mxu0 %v683
  %878 = vmatprep.subr.bf16.mxu0 %v678
  %879 = vmatpush2.bf16.msra.mxu0 %v677
  %880 = vmatprep.subr.bf16.mxu0 %v672
  %881 = vmatpush2.bf16.msra.mxu0 %v671
  %882 = vmatprep.subr.bf16.mxu0 %v666
  %883 = vmatpush2.bf16.msra.mxu0 %v665
  %884 = vmatprep.subr.bf16.mxu0 %v660
  %885 = vmatpush2.bf16.msra.mxu0 %v659
  %886 = vmatprep.mubr.bf16.mxu0 %v314
  %887 = vmatmul.mubr.bf16.gmra.mxu0 %v313
  %v888 = vpop.f32.mrf.mxu0
  %v889 = vadd.f32 %v282, %v888
  %v890 = vpop.f32.mrf.mxu0
  %v891 = vadd.f32 %v286, %v890
  %v892 = vpop.f32.mrf.mxu0
  %v893 = vadd.f32 %v282, %v892
  %v894 = vpop.f32.mrf.mxu0
  %v895 = vadd.f32 %v286, %v894
  %896 = vmatprep.mubr.bf16.mxu0 %v316
  %897 = vmatmul.mubr.bf16.gmra.mxu0 %v315
  %v898 = vpop.f32.mrf.mxu0
  %v899 = vadd.f32 %v282, %v898
  %v900 = vpop.f32.mrf.mxu0
  %v901 = vadd.f32 %v286, %v900
  %v902 = vpop.f32.mrf.mxu0
  %v903 = vadd.f32 %v282, %v902
  %v904 = vpop.f32.mrf.mxu0
  %v905 = vadd.f32 %v286, %v904
  %906 = vdwg.mxu0
  %907 = vmatprep.subr.bf16.mxu0 %v656
  %908 = vmatpush1.bf16.msra.mxu0 %v655
  %909 = vmatprep.subr.bf16.mxu0 %v650
  %910 = vmatpush1.bf16.msra.mxu0 %v649
  %911 = vmatprep.subr.bf16.mxu0 %v644
  %912 = vmatpush1.bf16.msra.mxu0 %v643
  %913 = vmatprep.subr.bf16.mxu0 %v638
  %914 = vmatpush1.bf16.msra.mxu0 %v637
  %915 = vmatprep.subr.bf16.mxu0 %v632
  %916 = vmatpush1.bf16.msra.mxu0 %v631
  %917 = vmatprep.subr.bf16.mxu0 %v626
  %918 = vmatpush1.bf16.msra.mxu0 %v625
  %919 = vmatprep.subr.bf16.mxu0 %v620
  %920 = vmatpush1.bf16.msra.mxu0 %v619
  %921 = vmatprep.subr.bf16.mxu0 %v614
  %922 = vmatpush1.bf16.msra.mxu0 %v613
  %923 = vmatprep.subr.bf16.mxu0 %v704
  %924 = vmatpush2.bf16.msra.mxu0 %v703
  %925 = vmatprep.subr.bf16.mxu0 %v698
  %926 = vmatpush2.bf16.msra.mxu0 %v697
  %927 = vmatprep.subr.bf16.mxu0 %v692
  %928 = vmatpush2.bf16.msra.mxu0 %v691
  %929 = vmatprep.subr.bf16.mxu0 %v686
  %930 = vmatpush2.bf16.msra.mxu0 %v685
  %931 = vmatprep.subr.bf16.mxu0 %v680
  %932 = vmatpush2.bf16.msra.mxu0 %v679
  %933 = vmatprep.subr.bf16.mxu0 %v674
  %934 = vmatpush2.bf16.msra.mxu0 %v673
  %935 = vmatprep.subr.bf16.mxu0 %v668
  %936 = vmatpush2.bf16.msra.mxu0 %v667
  %937 = vmatprep.subr.bf16.mxu0 %v662
  %938 = vmatpush2.bf16.msra.mxu0 %v661
  %939 = vmatprep.mubr.bf16.mxu0 %v314
  %940 = vmatmul.mubr.bf16.gmra.mxu0 %v313
  %v941 = vpop.f32.mrf.mxu0
  %v942 = vadd.f32 %v290, %v941
  %v943 = vpop.f32.mrf.mxu0
  %v944 = vadd.f32 %v294, %v943
  %v945 = vpop.f32.mrf.mxu0
  %v946 = vadd.f32 %v290, %v945
  %v947 = vpop.f32.mrf.mxu0
  %v948 = vadd.f32 %v294, %v947
  %949 = vmatprep.mubr.bf16.mxu0 %v316
  %950 = vmatmul.mubr.bf16.gmra.mxu0 %v315
  %v951 = vpop.f32.mrf.mxu0
  %v952 = vadd.f32 %v290, %v951
  %v953 = vpop.f32.mrf.mxu0
  %v954 = vadd.f32 %v294, %v953
  %v955 = vpop.f32.mrf.mxu0
  %v956 = vadd.f32 %v290, %v955
  %v957 = vpop.f32.mrf.mxu0
  %v958 = vadd.f32 %v294, %v957
  %959 = vdwg.mxu0
  %v960 = vpack.c.bf16 %v840, %v836
  %v961 = vpack.c.bf16 %v842, %v838
  %v962 = vpack.c.bf16 %v893, %v889
  %v963 = vpack.c.bf16 %v895, %v891
  %v964 = vpack.c.bf16 %v946, %v942
  %v965 = vpack.c.bf16 %v948, %v944
  %v966 = vpack.c.bf16 %v850, %v846
  %v967 = vpack.c.bf16 %v852, %v848
  %v968 = vpack.c.bf16 %v903, %v899
  %v969 = vpack.c.bf16 %v905, %v901
  %v970 = vpack.c.bf16 %v956, %v952
  %v971 = vpack.c.bf16 %v958, %v954
  %v984 = vunpack.c.l.b16 %v960
  %v985 = vunpack.c.l.b16 %v961
  %v986 = vunpack.c.l.b16 %v962
  %v987 = vunpack.c.l.b16 %v963
  %v988 = vunpack.c.l.b16 %v964
  %v989 = vunpack.c.l.b16 %v965
  %v990 = vunpack.c.h.b16 %v960
  %v991 = vunpack.c.h.b16 %v961
  %v992 = vunpack.c.h.b16 %v962
  %v993 = vunpack.c.h.b16 %v963
  %v994 = vunpack.c.h.b16 %v964
  %v995 = vunpack.c.h.b16 %v965
  %v996 = vunpack.c.l.b16 %v966
  %v997 = vunpack.c.l.b16 %v967
  %v998 = vunpack.c.l.b16 %v968
  %v999 = vunpack.c.l.b16 %v969
  %v1000 = vunpack.c.l.b16 %v970
  %v1001 = vunpack.c.l.b16 %v971
  %v1002 = vunpack.c.h.b16 %v966
  %v1003 = vunpack.c.h.b16 %v967
  %v1004 = vunpack.c.h.b16 %v968
  %v1005 = vunpack.c.h.b16 %v969
  %v1006 = vunpack.c.h.b16 %v970
  %v1007 = vunpack.c.h.b16 %v971
  %v1008 = vpack.c.b16 %v985, %v984
  %v1009 = vpack.c.b16 %v987, %v986
  %v1010 = vpack.c.b16 %v989, %v988
  %v1011 = vpack.c.b16 %v991, %v990
  %v1012 = vpack.c.b16 %v993, %v992
  %v1013 = vpack.c.b16 %v995, %v994
  %v1014 = vpack.c.b16 %v997, %v996
  %v1015 = vpack.c.b16 %v999, %v998
  %v1016 = vpack.c.b16 %v1001, %v1000
  %v1017 = vpack.c.b16 %v1003, %v1002
  %v1018 = vpack.c.b16 %v1005, %v1004
  %v1019 = vpack.c.b16 %v1007, %v1006
  %1032 = vst [vmem:[%s5] sm:$0xff] %v1008
  %1033 = vst [vmem:[%s5 + $0x8] sm:$0xff] %v1009
  %1034 = vst [vmem:[%s5 + $0x10] sm:$0xff] %v1010
  %1035 = vst [vmem:[%s5 + $0x18] sm:$0xff] %v1011
  %1036 = vst [vmem:[%s5 + $0x20] sm:$0xff] %v1012
  %1037 = vst [vmem:[%s5 + $0x28] sm:$0xff] %v1013
  %1038 = vst [vmem:[%s5 + $0x30] sm:$0xff] %v1014
  %1039 = vst [vmem:[%s5 + $0x38] sm:$0xff] %v1015
  %1040 = vst [vmem:[%s5 + $0x40] sm:$0xff] %v1016
  %1041 = vst [vmem:[%s5 + $0x48] sm:$0xff] %v1017
  %1042 = vst [vmem:[%s5 + $0x50] sm:$0xff] %v1018
  %1043 = vst [vmem:[%s5 + $0x58] sm:$0xff] %v1019
  // Predicated region
  $region26: #{vision_encoder_forward.13} parent=0 // pred_check
    _
  $region27: #{vision_encoder_forward.13} parent=0 // pred_check_branch
    %1045 = sbr.rel (0) target = $region29
  $region28: #{vision_encoder_forward.13} parent=0 // pred_region
    _
  $region29: #{vision_encoder_forward.13} parent=0 // pred_fallthru
    _
  // Predicated region
  $region30: #{vision_encoder_forward.13} parent=0 // pred_check
    _
  $region31: #{vision_encoder_forward.13} parent=0 // pred_check_branch
    %1047 = sbr.rel (0) target = $region33
  $region32: #{vision_encoder_forward.13} parent=0 // pred_region
    _
  $region33: #{vision_encoder_forward.13} parent=0 // pred_fallthru
    _

// kernel: vision_encoder_forward.15
$region0: #{vision_encoder_forward.15}
  #allocation0 [shape = 'u32[]', space=smem, size = 0x4, offset = 0x4, fixed_abs, tag = 'smem constant byte address 0x4 - core index']
  #allocation1 [shape = 'u32[144,128]{1,0:T(1,128)}', space=vmem, size = 0x12000, scoped, tag = 'internal scratch']
  %s0 = inlined_call_operand.vmem [shape: bf16[32,256], index: 0, kind: input, shape index: {}]
  %s1 = inlined_call_operand.vmem [shape: bf16[256,256], index: 1, kind: input, shape index: {}]
  %s2 = inlined_call_operand.vmem [shape: f32[1,256], index: 2, kind: input, shape index: {}]
  %s3 = inlined_call_operand.vmem [shape: bf16[32,256], index: 3, kind: input, shape index: {}]
  %s4 = inlined_call_operand.vmem [shape: bf16[32,256], index: 4, kind: output, shape index: {}]
  %s5 = sld [smem:[#allocation0]]
  $region26: #{vision_encoder_forward.15} parent=0
    _
  %s7 = ssub.s32 1, %s5
  %s8 = scalar_select 0, %s7, %s5
  // Predicated region
  $region2: #{vision_encoder_forward.15} parent=0 // pred_check
    _
  $region3: #{vision_encoder_forward.15} parent=0 // pred_check_branch
    %10 = sbr.rel (0) target = $region5
  $region4: #{vision_encoder_forward.15} parent=0 // pred_region
    _
  $region5: #{vision_encoder_forward.15} parent=0 // pred_fallthru
    _
  // Predicated region
  $region6: #{vision_encoder_forward.15} parent=0 // pred_check
    _
  $region7: #{vision_encoder_forward.15} parent=0 // pred_check_branch
    %12 = sbr.rel (0) target = $region9
  $region8: #{vision_encoder_forward.15} parent=0 // pred_region
    _
  $region9: #{vision_encoder_forward.15} parent=0 // pred_fallthru
    _
  // Predicated region
  $region10: #{vision_encoder_forward.15} parent=0 // pred_check
    _
  $region11: #{vision_encoder_forward.15} parent=0 // pred_check_branch
    %14 = sbr.rel (0) target = $region13
  $region12: #{vision_encoder_forward.15} parent=0 // pred_region
    _
  $region13: #{vision_encoder_forward.15} parent=0 // pred_fallthru
    _
  // Predicated region
  $region14: #{vision_encoder_forward.15} parent=0 // pred_check
    _
  $region15: #{vision_encoder_forward.15} parent=0 // pred_check_branch
    %16 = sbr.rel (0) target = $region17
  $region16: #{vision_encoder_forward.15} parent=0 // pred_region
    _
  $region17: #{vision_encoder_forward.15} parent=0 // pred_fallthru
    _
  %v17 = vld [vmem:[%s0] sm:$0xff]
  %v18 = vld [vmem:[%s0 + $0x8] sm:$0xff]
  %v19 = vld [vmem:[%s0 + $0x10] sm:$0xff]
  %v20 = vld [vmem:[%s0 + $0x18] sm:$0xff]
  %v21 = vld [vmem:[%s1] sm:$0xff]
  %v22 = vld [vmem:[%s1 + $0x8] sm:$0xff]
  %v23 = vld [vmem:[%s1 + $0x10] sm:$0xff]
  %v24 = vld [vmem:[%s1 + $0x18] sm:$0xff]
  %v25 = vld [vmem:[%s1 + $0x20] sm:$0xff]
  %v26 = vld [vmem:[%s1 + $0x28] sm:$0xff]
  %v27 = vld [vmem:[%s1 + $0x30] sm:$0xff]
  %v28 = vld [vmem:[%s1 + $0x38] sm:$0xff]
  %v29 = vld [vmem:[%s1 + $0x40] sm:$0xff]
  %v30 = vld [vmem:[%s1 + $0x48] sm:$0xff]
  %v31 = vld [vmem:[%s1 + $0x50] sm:$0xff]
  %v32 = vld [vmem:[%s1 + $0x58] sm:$0xff]
  %v33 = vld [vmem:[%s1 + $0x60] sm:$0xff]
  %v34 = vld [vmem:[%s1 + $0x68] sm:$0xff]
  %v35 = vld [vmem:[%s1 + $0x70] sm:$0xff]
  %v36 = vld [vmem:[%s1 + $0x78] sm:$0xff]
  %v37 = vld [vmem:[%s1 + $0x80] sm:$0xff]
  %v38 = vld [vmem:[%s1 + $0x88] sm:$0xff]
  %v39 = vld [vmem:[%s1 + $0x90] sm:$0xff]
  %v40 = vld [vmem:[%s1 + $0x98] sm:$0xff]
  %v41 = vld [vmem:[%s1 + $0xa0] sm:$0xff]
  %v42 = vld [vmem:[%s1 + $0xa8] sm:$0xff]
  %v43 = vld [vmem:[%s1 + $0xb0] sm:$0xff]
  %v44 = vld [vmem:[%s1 + $0xb8] sm:$0xff]
  %v45 = vld [vmem:[%s1 + $0xc0] sm:$0xff]
  %v46 = vld [vmem:[%s1 + $0xc8] sm:$0xff]
  %v47 = vld [vmem:[%s1 + $0xd0] sm:$0xff]
  %v48 = vld [vmem:[%s1 + $0xd8] sm:$0xff]
  %v49 = vld [vmem:[%s1 + $0xe0] sm:$0xff]
  %v50 = vld [vmem:[%s1 + $0xe8] sm:$0xff]
  %v51 = vld [vmem:[%s1 + $0xf0] sm:$0xff]
  %v52 = vld [vmem:[%s1 + $0xf8] sm:$0xff]
  %v53 = vld [vmem:[%s2] sm:$0x3]
  %v55 = vlaneseq
  %v56 = vshrl.u32 %v55, 7
  %v57 = vsub.s32 0, %v56
  %v58 = vrot.slane %v53, %v57
  %v59 = vlaneseq
  %v60 = vshrl.u32 %v59, 7
  %v61 = vsub.s32 1, %v60
  %v62 = vrot.slane %v53, %v61
  %v69 = vunpack.c.l.b16 %v17
  %v70 = vunpack.c.h.b16 %v17
  %v71 = vunpack.c.l.b16 %v18
  %v72 = vunpack.c.h.b16 %v18
  %v73 = vunpack.c.l.b16 %v19
  %v74 = vunpack.c.h.b16 %v19
  %v75 = vunpack.c.l.b16 %v20
  %v76 = vunpack.c.h.b16 %v20
  %v77 = vpack.c.b16 %v71, %v69
  %v78 = vpack.c.b16 %v72, %v70
  %v79 = vpack.c.b16 %v75, %v73
  %v80 = vpack.c.b16 %v76, %v74
  %v117 = vunpack.c.l.b16 %v21
  %v118 = vunpack.c.h.b16 %v21
  %v119 = vunpack.c.l.b16 %v22
  %v120 = vunpack.c.h.b16 %v22
  %v121 = vunpack.c.l.b16 %v23
  %v122 = vunpack.c.h.b16 %v23
  %v123 = vunpack.c.l.b16 %v24
  %v124 = vunpack.c.h.b16 %v24
  %v125 = vunpack.c.l.b16 %v25
  %v126 = vunpack.c.h.b16 %v25
  %v127 = vunpack.c.l.b16 %v26
  %v128 = vunpack.c.h.b16 %v26
  %v129 = vunpack.c.l.b16 %v27
  %v130 = vunpack.c.h.b16 %v27
  %v131 = vunpack.c.l.b16 %v28
  %v132 = vunpack.c.h.b16 %v28
  %v133 = vunpack.c.l.b16 %v29
  %v134 = vunpack.c.h.b16 %v29
  %v135 = vunpack.c.l.b16 %v30
  %v136 = vunpack.c.h.b16 %v30
  %v137 = vunpack.c.l.b16 %v31
  %v138 = vunpack.c.h.b16 %v31
  %v139 = vunpack.c.l.b16 %v32
  %v140 = vunpack.c.h.b16 %v32
  %v141 = vunpack.c.l.b16 %v33
  %v142 = vunpack.c.h.b16 %v33
  %v143 = vunpack.c.l.b16 %v34
  %v144 = vunpack.c.h.b16 %v34
  %v145 = vunpack.c.l.b16 %v35
  %v146 = vunpack.c.h.b16 %v35
  %v147 = vunpack.c.l.b16 %v36
  %v148 = vunpack.c.h.b16 %v36
  %v149 = vunpack.c.l.b16 %v37
  %v150 = vunpack.c.h.b16 %v37
  %v151 = vunpack.c.l.b16 %v38
  %v152 = vunpack.c.h.b16 %v38
  %v153 = vunpack.c.l.b16 %v39
  %v154 = vunpack.c.h.b16 %v39
  %v155 = vunpack.c.l.b16 %v40
  %v156 = vunpack.c.h.b16 %v40
  %v157 = vunpack.c.l.b16 %v41
  %v158 = vunpack.c.h.b16 %v41
  %v159 = vunpack.c.l.b16 %v42
  %v160 = vunpack.c.h.b16 %v42
  %v161 = vunpack.c.l.b16 %v43
  %v162 = vunpack.c.h.b16 %v43
  %v163 = vunpack.c.l.b16 %v44
  %v164 = vunpack.c.h.b16 %v44
  %v165 = vunpack.c.l.b16 %v45
  %v166 = vunpack.c.h.b16 %v45
  %v167 = vunpack.c.l.b16 %v46
  %v168 = vunpack.c.h.b16 %v46
  %v169 = vunpack.c.l.b16 %v47
  %v170 = vunpack.c.h.b16 %v47
  %v171 = vunpack.c.l.b16 %v48
  %v172 = vunpack.c.h.b16 %v48
  %v173 = vunpack.c.l.b16 %v49
  %v174 = vunpack.c.h.b16 %v49
  %v175 = vunpack.c.l.b16 %v50
  %v176 = vunpack.c.h.b16 %v50
  %v177 = vunpack.c.l.b16 %v51
  %v178 = vunpack.c.h.b16 %v51
  %v179 = vunpack.c.l.b16 %v52
  %v180 = vunpack.c.h.b16 %v52
  %v181 = vpack.c.b16 %v119, %v117
  %v182 = vpack.c.b16 %v120, %v118
  %v183 = vpack.c.b16 %v123, %v121
  %v184 = vpack.c.b16 %v124, %v122
  %v185 = vpack.c.b16 %v127, %v125
  %v186 = vpack.c.b16 %v128, %v126
  %v187 = vpack.c.b16 %v131, %v129
  %v188 = vpack.c.b16 %v132, %v130
  %v189 = vpack.c.b16 %v135, %v133
  %v190 = vpack.c.b16 %v136, %v134
  %v191 = vpack.c.b16 %v139, %v137
  %v192 = vpack.c.b16 %v140, %v138
  %v193 = vpack.c.b16 %v143, %v141
  %v194 = vpack.c.b16 %v144, %v142
  %v195 = vpack.c.b16 %v147, %v145
  %v196 = vpack.c.b16 %v148, %v146
  %v197 = vpack.c.b16 %v151, %v149
  %v198 = vpack.c.b16 %v152, %v150
  %v199 = vpack.c.b16 %v155, %v153
  %v200 = vpack.c.b16 %v156, %v154
  %v201 = vpack.c.b16 %v159, %v157
  %v202 = vpack.c.b16 %v160, %v158
  %v203 = vpack.c.b16 %v163, %v161
  %v204 = vpack.c.b16 %v164, %v162
  %v205 = vpack.c.b16 %v167, %v165
  %v206 = vpack.c.b16 %v168, %v166
  %v207 = vpack.c.b16 %v171, %v169
  %v208 = vpack.c.b16 %v172, %v170
  %v209 = vpack.c.b16 %v175, %v173
  %v210 = vpack.c.b16 %v176, %v174
  %v211 = vpack.c.b16 %v179, %v177
  %v212 = vpack.c.b16 %v180, %v178
  %245 = vmatprep.subr.bf16.mxu0 %v196
  %246 = vmatpush1.bf16.msra.mxu0 %v195
  %247 = vmatprep.subr.bf16.mxu0 %v194
  %248 = vmatpush1.bf16.msra.mxu0 %v193
  %249 = vmatprep.subr.bf16.mxu0 %v192
  %250 = vmatpush1.bf16.msra.mxu0 %v191
  %251 = vmatprep.subr.bf16.mxu0 %v190
  %252 = vmatpush1.bf16.msra.mxu0 %v189
  %253 = vmatprep.subr.bf16.mxu0 %v188
  %254 = vmatpush1.bf16.msra.mxu0 %v187
  %255 = vmatprep.subr.bf16.mxu0 %v186
  %256 = vmatpush1.bf16.msra.mxu0 %v185
  %257 = vmatprep.subr.bf16.mxu0 %v184
  %258 = vmatpush1.bf16.msra.mxu0 %v183
  %259 = vmatprep.subr.bf16.mxu0 %v182
  %260 = vmatpush1.bf16.msra.mxu0 %v181
  %261 = vmatprep.subr.bf16.mxu0 %v212
  %262 = vmatpush2.bf16.msra.mxu0 %v211
  %263 = vmatprep.subr.bf16.mxu0 %v210
  %264 = vmatpush2.bf16.msra.mxu0 %v209
  %265 = vmatprep.subr.bf16.mxu0 %v208
  %266 = vmatpush2.bf16.msra.mxu0 %v207
  %267 = vmatprep.subr.bf16.mxu0 %v206
  %268 = vmatpush2.bf16.msra.mxu0 %v205
  %269 = vmatprep.subr.bf16.mxu0 %v204
  %270 = vmatpush2.bf16.msra.mxu0 %v203
  %271 = vmatprep.subr.bf16.mxu0 %v202
  %272 = vmatpush2.bf16.msra.mxu0 %v201
  %273 = vmatprep.subr.bf16.mxu0 %v200
  %274 = vmatpush2.bf16.msra.mxu0 %v199
  %275 = vmatprep.subr.bf16.mxu0 %v198
  %276 = vmatpush2.bf16.msra.mxu0 %v197
  %277 = vmatprep.mubr.bf16.mxu0 %v78
  %278 = vmatmul.mubr.bf16.gmra.mxu0 %v77
  %v279 = vpop.f32.mrf.mxu0
  %v280 = vadd.f32 %v58, %v279
  %v281 = vpop.f32.mrf.mxu0
  %v282 = vadd.f32 %v62, %v281
  %v283 = vpop.f32.mrf.mxu0
  %v284 = vadd.f32 %v58, %v283
  %v285 = vpop.f32.mrf.mxu0
  %v286 = vadd.f32 %v62, %v285
  %287 = vmatprep.mubr.bf16.mxu0 %v80
  %288 = vmatmul.mubr.bf16.gmra.mxu0 %v79
  %v289 = vpop.f32.mrf.mxu0
  %v290 = vadd.f32 %v58, %v289
  %v291 = vpop.f32.mrf.mxu0
  %v292 = vadd.f32 %v62, %v291
  %v293 = vpop.f32.mrf.mxu0
  %v294 = vadd.f32 %v58, %v293
  %v295 = vpop.f32.mrf.mxu0
  %v296 = vadd.f32 %v62, %v295
  %297 = vdwg.mxu0
  %v298 = vld [vmem:[%s3] sm:$0xff]
  %v299 = vld [vmem:[%s3 + $0x8] sm:$0xff]
  %v300 = vld [vmem:[%s3 + $0x10] sm:$0xff]
  %v301 = vld [vmem:[%s3 + $0x18] sm:$0xff]
  %v302 = vunpack.c.l.bf16 %v298
  %v303 = vunpack.c.h.bf16 %v298
  %v304 = vunpack.c.l.bf16 %v299
  %v305 = vunpack.c.h.bf16 %v299
  %v306 = vunpack.c.l.bf16 %v300
  %v307 = vunpack.c.h.bf16 %v300
  %v308 = vunpack.c.l.bf16 %v301
  %v309 = vunpack.c.h.bf16 %v301
  %v310 = vadd.f32 %v280, %v302
  %v311 = vadd.f32 %v282, %v303
  %v312 = vadd.f32 %v284, %v304
  %v313 = vadd.f32 %v286, %v305
  %v314 = vadd.f32 %v290, %v306
  %v315 = vadd.f32 %v292, %v307
  %v316 = vadd.f32 %v294, %v308
  %v317 = vadd.f32 %v296, %v309
  %v318 = vpack.c.bf16 %v312, %v310
  %v319 = vpack.c.bf16 %v313, %v311
  %v320 = vpack.c.bf16 %v316, %v314
  %v321 = vpack.c.bf16 %v317, %v315
  %v326 = vunpack.c.l.b16 %v318
  %v327 = vunpack.c.l.b16 %v319
  %v328 = vunpack.c.h.b16 %v318
  %v329 = vunpack.c.h.b16 %v319
  %v330 = vunpack.c.l.b16 %v320
  %v331 = vunpack.c.l.b16 %v321
  %v332 = vunpack.c.h.b16 %v320
  %v333 = vunpack.c.h.b16 %v321
  %v334 = vpack.c.b16 %v327, %v326
  %v335 = vpack.c.b16 %v329, %v328
  %v336 = vpack.c.b16 %v331, %v330
  %v337 = vpack.c.b16 %v333, %v332
  %342 = vst [vmem:[%s4] sm:$0xff] %v334
  %343 = vst [vmem:[%s4 + $0x8] sm:$0xff] %v335
  %344 = vst [vmem:[%s4 + $0x10] sm:$0xff] %v336
  %345 = vst [vmem:[%s4 + $0x18] sm:$0xff] %v337
  // Predicated region
  $region18: #{vision_encoder_forward.15} parent=0 // pred_check
    _
  $region19: #{vision_encoder_forward.15} parent=0 // pred_check_branch
    %347 = sbr.rel (0) target = $region21
  $region20: #{vision_encoder_forward.15} parent=0 // pred_region
    _
  $region21: #{vision_encoder_forward.15} parent=0 // pred_fallthru
    _
  // Predicated region
  $region22: #{vision_encoder_forward.15} parent=0 // pred_check
    _
  $region23: #{vision_encoder_forward.15} parent=0 // pred_check_branch
    %349 = sbr.rel (0) target = $region25
  $region24: #{vision_encoder_forward.15} parent=0 // pred_region
    _
  $region25: #{vision_encoder_forward.15} parent=0 // pred_fallthru
    _

// kernel: vision_encoder_forward.17
$region0: #{vision_encoder_forward.17}
  #allocation0 [shape = 'u32[]', space=smem, size = 0x4, offset = 0x4, fixed_abs, tag = 'smem constant byte address 0x4 - core index']
  #allocation1 [shape = 'u32[144,128]{1,0:T(1,128)}', space=vmem, size = 0x12000, scoped, tag = 'internal scratch']
  %s0 = inlined_call_operand.vmem [shape: bf16[32,512], index: 0, kind: input, shape index: {}]
  %s1 = inlined_call_operand.vmem [shape: bf16[512,256], index: 1, kind: input, shape index: {}]
  %s2 = inlined_call_operand.vmem [shape: f32[1,256], index: 2, kind: input, shape index: {}]
  %s3 = inlined_call_operand.vmem [shape: bf16[32,256], index: 3, kind: input, shape index: {}]
  %s4 = inlined_call_operand.vmem [shape: bf16[32,256], index: 4, kind: output, shape index: {}]
  %s5 = sld [smem:[#allocation0]]
  $region26: #{vision_encoder_forward.17} parent=0
    _
  %s7 = ssub.s32 1, %s5
  %s8 = scalar_select 0, %s7, %s5
  // Predicated region
  $region2: #{vision_encoder_forward.17} parent=0 // pred_check
    _
  $region3: #{vision_encoder_forward.17} parent=0 // pred_check_branch
    %10 = sbr.rel (0) target = $region5
  $region4: #{vision_encoder_forward.17} parent=0 // pred_region
    _
  $region5: #{vision_encoder_forward.17} parent=0 // pred_fallthru
    _
  // Predicated region
  $region6: #{vision_encoder_forward.17} parent=0 // pred_check
    _
  $region7: #{vision_encoder_forward.17} parent=0 // pred_check_branch
    %12 = sbr.rel (0) target = $region9
  $region8: #{vision_encoder_forward.17} parent=0 // pred_region
    _
  $region9: #{vision_encoder_forward.17} parent=0 // pred_fallthru
    _
  // Predicated region
  $region10: #{vision_encoder_forward.17} parent=0 // pred_check
    _
  $region11: #{vision_encoder_forward.17} parent=0 // pred_check_branch
    %14 = sbr.rel (0) target = $region13
  $region12: #{vision_encoder_forward.17} parent=0 // pred_region
    _
  $region13: #{vision_encoder_forward.17} parent=0 // pred_fallthru
    _
  // Predicated region
  $region14: #{vision_encoder_forward.17} parent=0 // pred_check
    _
  $region15: #{vision_encoder_forward.17} parent=0 // pred_check_branch
    %16 = sbr.rel (0) target = $region17
  $region16: #{vision_encoder_forward.17} parent=0 // pred_region
    _
  $region17: #{vision_encoder_forward.17} parent=0 // pred_fallthru
    _
  %v17 = vld [vmem:[%s0] sm:$0xff]
  %v18 = vld [vmem:[%s0 + $0x8] sm:$0xff]
  %v19 = vld [vmem:[%s0 + $0x10] sm:$0xff]
  %v20 = vld [vmem:[%s0 + $0x18] sm:$0xff]
  %v21 = vld [vmem:[%s0 + $0x20] sm:$0xff]
  %v22 = vld [vmem:[%s0 + $0x28] sm:$0xff]
  %v23 = vld [vmem:[%s0 + $0x30] sm:$0xff]
  %v24 = vld [vmem:[%s0 + $0x38] sm:$0xff]
  %v25 = vld [vmem:[%s1] sm:$0xff]
  %v26 = vld [vmem:[%s1 + $0x8] sm:$0xff]
  %v27 = vld [vmem:[%s1 + $0x10] sm:$0xff]
  %v28 = vld [vmem:[%s1 + $0x18] sm:$0xff]
  %v29 = vld [vmem:[%s1 + $0x20] sm:$0xff]
  %v30 = vld [vmem:[%s1 + $0x28] sm:$0xff]
  %v31 = vld [vmem:[%s1 + $0x30] sm:$0xff]
  %v32 = vld [vmem:[%s1 + $0x38] sm:$0xff]
  %v33 = vld [vmem:[%s1 + $0x40] sm:$0xff]
  %v34 = vld [vmem:[%s1 + $0x48] sm:$0xff]
  %v35 = vld [vmem:[%s1 + $0x50] sm:$0xff]
  %v36 = vld [vmem:[%s1 + $0x58] sm:$0xff]
  %v37 = vld [vmem:[%s1 + $0x60] sm:$0xff]
  %v38 = vld [vmem:[%s1 + $0x68] sm:$0xff]
  %v39 = vld [vmem:[%s1 + $0x70] sm:$0xff]
  %v40 = vld [vmem:[%s1 + $0x78] sm:$0xff]
  %v41 = vld [vmem:[%s1 + $0x80] sm:$0xff]
  %v42 = vld [vmem:[%s1 + $0x88] sm:$0xff]
  %v43 = vld [vmem:[%s1 + $0x90] sm:$0xff]
  %v44 = vld [vmem:[%s1 + $0x98] sm:$0xff]
  %v45 = vld [vmem:[%s1 + $0xa0] sm:$0xff]
  %v46 = vld [vmem:[%s1 + $0xa8] sm:$0xff]
  %v47 = vld [vmem:[%s1 + $0xb0] sm:$0xff]
  %v48 = vld [vmem:[%s1 + $0xb8] sm:$0xff]
  %v49 = vld [vmem:[%s1 + $0xc0] sm:$0xff]
  %v50 = vld [vmem:[%s1 + $0xc8] sm:$0xff]
  %v51 = vld [vmem:[%s1 + $0xd0] sm:$0xff]
  %v52 = vld [vmem:[%s1 + $0xd8] sm:$0xff]
  %v53 = vld [vmem:[%s1 + $0xe0] sm:$0xff]
  %v54 = vld [vmem:[%s1 + $0xe8] sm:$0xff]
  %v55 = vld [vmem:[%s1 + $0xf0] sm:$0xff]
  %v56 = vld [vmem:[%s1 + $0xf8] sm:$0xff]
  %v57 = vld [vmem:[%s1 + $0x100] sm:$0xff]
  %v58 = vld [vmem:[%s1 + $0x108] sm:$0xff]
  %v59 = vld [vmem:[%s1 + $0x110] sm:$0xff]
  %v60 = vld [vmem:[%s1 + $0x118] sm:$0xff]
  %v61 = vld [vmem:[%s1 + $0x120] sm:$0xff]
  %v62 = vld [vmem:[%s1 + $0x128] sm:$0xff]
  %v63 = vld [vmem:[%s1 + $0x130] sm:$0xff]
  %v64 = vld [vmem:[%s1 + $0x138] sm:$0xff]
  %v65 = vld [vmem:[%s1 + $0x140] sm:$0xff]
  %v66 = vld [vmem:[%s1 + $0x148] sm:$0xff]
  %v67 = vld [vmem:[%s1 + $0x150] sm:$0xff]
  %v68 = vld [vmem:[%s1 + $0x158] sm:$0xff]
  %v69 = vld [vmem:[%s1 + $0x160] sm:$0xff]
  %v70 = vld [vmem:[%s1 + $0x168] sm:$0xff]
  %v71 = vld [vmem:[%s1 + $0x170] sm:$0xff]
  %v72 = vld [vmem:[%s1 + $0x178] sm:$0xff]
  %v73 = vld [vmem:[%s1 + $0x180] sm:$0xff]
  %v74 = vld [vmem:[%s1 + $0x188] sm:$0xff]
  %v75 = vld [vmem:[%s1 + $0x190] sm:$0xff]
  %v76 = vld [vmem:[%s1 + $0x198] sm:$0xff]
  %v77 = vld [vmem:[%s1 + $0x1a0] sm:$0xff]
  %v78 = vld [vmem:[%s1 + $0x1a8] sm:$0xff]
  %v79 = vld [vmem:[%s1 + $0x1b0] sm:$0xff]
  %v80 = vld [vmem:[%s1 + $0x1b8] sm:$0xff]
  %v81 = vld [vmem:[%s1 + $0x1c0] sm:$0xff]
  %v82 = vld [vmem:[%s1 + $0x1c8] sm:$0xff]
  %v83 = vld [vmem:[%s1 + $0x1d0] sm:$0xff]
  %v84 = vld [vmem:[%s1 + $0x1d8] sm:$0xff]
  %v85 = vld [vmem:[%s1 + $0x1e0] sm:$0xff]
  %v86 = vld [vmem:[%s1 + $0x1e8] sm:$0xff]
  %v87 = vld [vmem:[%s1 + $0x1f0] sm:$0xff]
  %v88 = vld [vmem:[%s1 + $0x1f8] sm:$0xff]
  %v89 = vld [vmem:[%s2] sm:$0x3]
  %v91 = vlaneseq
  %v92 = vshrl.u32 %v91, 7
  %v93 = vsub.s32 0, %v92
  %v94 = vrot.slane %v89, %v93
  %v95 = vlaneseq
  %v96 = vshrl.u32 %v95, 7
  %v97 = vsub.s32 1, %v96
  %v98 = vrot.slane %v89, %v97
  %v109 = vunpack.c.l.b16 %v17
  %v110 = vunpack.c.h.b16 %v17
  %v111 = vunpack.c.l.b16 %v18
  %v112 = vunpack.c.h.b16 %v18
  %v113 = vunpack.c.l.b16 %v19
  %v114 = vunpack.c.h.b16 %v19
  %v115 = vunpack.c.l.b16 %v20
  %v116 = vunpack.c.h.b16 %v20
  %v117 = vunpack.c.l.b16 %v21
  %v118 = vunpack.c.h.b16 %v21
  %v119 = vunpack.c.l.b16 %v22
  %v120 = vunpack.c.h.b16 %v22
  %v121 = vunpack.c.l.b16 %v23
  %v122 = vunpack.c.h.b16 %v23
  %v123 = vunpack.c.l.b16 %v24
  %v124 = vunpack.c.h.b16 %v24
  %v125 = vpack.c.b16 %v113, %v109
  %v126 = vpack.c.b16 %v114, %v110
  %v127 = vpack.c.b16 %v115, %v111
  %v128 = vpack.c.b16 %v116, %v112
  %v129 = vpack.c.b16 %v121, %v117
  %v130 = vpack.c.b16 %v122, %v118
  %v131 = vpack.c.b16 %v123, %v119
  %v132 = vpack.c.b16 %v124, %v120
  %v205 = vunpack.c.l.b16 %v25
  %v206 = vunpack.c.h.b16 %v25
  %v207 = vunpack.c.l.b16 %v26
  %v208 = vunpack.c.h.b16 %v26
  %v209 = vunpack.c.l.b16 %v27
  %v210 = vunpack.c.h.b16 %v27
  %v211 = vunpack.c.l.b16 %v28
  %v212 = vunpack.c.h.b16 %v28
  %v213 = vunpack.c.l.b16 %v29
  %v214 = vunpack.c.h.b16 %v29
  %v215 = vunpack.c.l.b16 %v30
  %v216 = vunpack.c.h.b16 %v30
  %v217 = vunpack.c.l.b16 %v31
  %v218 = vunpack.c.h.b16 %v31
  %v219 = vunpack.c.l.b16 %v32
  %v220 = vunpack.c.h.b16 %v32
  %v221 = vunpack.c.l.b16 %v33
  %v222 = vunpack.c.h.b16 %v33
  %v223 = vunpack.c.l.b16 %v34
  %v224 = vunpack.c.h.b16 %v34
  %v225 = vunpack.c.l.b16 %v35
  %v226 = vunpack.c.h.b16 %v35
  %v227 = vunpack.c.l.b16 %v36
  %v228 = vunpack.c.h.b16 %v36
  %v229 = vunpack.c.l.b16 %v37
  %v230 = vunpack.c.h.b16 %v37
  %v231 = vunpack.c.l.b16 %v38
  %v232 = vunpack.c.h.b16 %v38
  %v233 = vunpack.c.l.b16 %v39
  %v234 = vunpack.c.h.b16 %v39
  %v235 = vunpack.c.l.b16 %v40
  %v236 = vunpack.c.h.b16 %v40
  %v237 = vunpack.c.l.b16 %v41
  %v238 = vunpack.c.h.b16 %v41
  %v239 = vunpack.c.l.b16 %v42
  %v240 = vunpack.c.h.b16 %v42
  %v241 = vunpack.c.l.b16 %v43
  %v242 = vunpack.c.h.b16 %v43
  %v243 = vunpack.c.l.b16 %v44
  %v244 = vunpack.c.h.b16 %v44
  %v245 = vunpack.c.l.b16 %v45
  %v246 = vunpack.c.h.b16 %v45
  %v247 = vunpack.c.l.b16 %v46
  %v248 = vunpack.c.h.b16 %v46
  %v249 = vunpack.c.l.b16 %v47
  %v250 = vunpack.c.h.b16 %v47
  %v251 = vunpack.c.l.b16 %v48
  %v252 = vunpack.c.h.b16 %v48
  %v253 = vunpack.c.l.b16 %v49
  %v254 = vunpack.c.h.b16 %v49
  %v255 = vunpack.c.l.b16 %v50
  %v256 = vunpack.c.h.b16 %v50
  %v257 = vunpack.c.l.b16 %v51
  %v258 = vunpack.c.h.b16 %v51
  %v259 = vunpack.c.l.b16 %v52
  %v260 = vunpack.c.h.b16 %v52
  %v261 = vunpack.c.l.b16 %v53
  %v262 = vunpack.c.h.b16 %v53
  %v263 = vunpack.c.l.b16 %v54
  %v264 = vunpack.c.h.b16 %v54
  %v265 = vunpack.c.l.b16 %v55
  %v266 = vunpack.c.h.b16 %v55
  %v267 = vunpack.c.l.b16 %v56
  %v268 = vunpack.c.h.b16 %v56
  %v269 = vunpack.c.l.b16 %v57
  %v270 = vunpack.c.h.b16 %v57
  %v271 = vunpack.c.l.b16 %v58
  %v272 = vunpack.c.h.b16 %v58
  %v273 = vunpack.c.l.b16 %v59
  %v274 = vunpack.c.h.b16 %v59
  %v275 = vunpack.c.l.b16 %v60
  %v276 = vunpack.c.h.b16 %v60
  %v277 = vunpack.c.l.b16 %v61
  %v278 = vunpack.c.h.b16 %v61
  %v279 = vunpack.c.l.b16 %v62
  %v280 = vunpack.c.h.b16 %v62
  %v281 = vunpack.c.l.b16 %v63
  %v282 = vunpack.c.h.b16 %v63
  %v283 = vunpack.c.l.b16 %v64
  %v284 = vunpack.c.h.b16 %v64
  %v285 = vunpack.c.l.b16 %v65
  %v286 = vunpack.c.h.b16 %v65
  %v287 = vunpack.c.l.b16 %v66
  %v288 = vunpack.c.h.b16 %v66
  %v289 = vunpack.c.l.b16 %v67
  %v290 = vunpack.c.h.b16 %v67
  %v291 = vunpack.c.l.b16 %v68
  %v292 = vunpack.c.h.b16 %v68
  %v293 = vunpack.c.l.b16 %v69
  %v294 = vunpack.c.h.b16 %v69
  %v295 = vunpack.c.l.b16 %v70
  %v296 = vunpack.c.h.b16 %v70
  %v297 = vunpack.c.l.b16 %v71
  %v298 = vunpack.c.h.b16 %v71
  %v299 = vunpack.c.l.b16 %v72
  %v300 = vunpack.c.h.b16 %v72
  %v301 = vunpack.c.l.b16 %v73
  %v302 = vunpack.c.h.b16 %v73
  %v303 = vunpack.c.l.b16 %v74
  %v304 = vunpack.c.h.b16 %v74
  %v305 = vunpack.c.l.b16 %v75
  %v306 = vunpack.c.h.b16 %v75
  %v307 = vunpack.c.l.b16 %v76
  %v308 = vunpack.c.h.b16 %v76
  %v309 = vunpack.c.l.b16 %v77
  %v310 = vunpack.c.h.b16 %v77
  %v311 = vunpack.c.l.b16 %v78
  %v312 = vunpack.c.h.b16 %v78
  %v313 = vunpack.c.l.b16 %v79
  %v314 = vunpack.c.h.b16 %v79
  %v315 = vunpack.c.l.b16 %v80
  %v316 = vunpack.c.h.b16 %v80
  %v317 = vunpack.c.l.b16 %v81
  %v318 = vunpack.c.h.b16 %v81
  %v319 = vunpack.c.l.b16 %v82
  %v320 = vunpack.c.h.b16 %v82
  %v321 = vunpack.c.l.b16 %v83
  %v322 = vunpack.c.h.b16 %v83
  %v323 = vunpack.c.l.b16 %v84
  %v324 = vunpack.c.h.b16 %v84
  %v325 = vunpack.c.l.b16 %v85
  %v326 = vunpack.c.h.b16 %v85
  %v327 = vunpack.c.l.b16 %v86
  %v328 = vunpack.c.h.b16 %v86
  %v329 = vunpack.c.l.b16 %v87
  %v330 = vunpack.c.h.b16 %v87
  %v331 = vunpack.c.l.b16 %v88
  %v332 = vunpack.c.h.b16 %v88
  %v333 = vpack.c.b16 %v207, %v205
  %v334 = vpack.c.b16 %v208, %v206
  %v335 = vpack.c.b16 %v211, %v209
  %v336 = vpack.c.b16 %v212, %v210
  %v337 = vpack.c.b16 %v215, %v213
  %v338 = vpack.c.b16 %v216, %v214
  %v339 = vpack.c.b16 %v219, %v217
  %v340 = vpack.c.b16 %v220, %v218
  %v341 = vpack.c.b16 %v223, %v221
  %v342 = vpack.c.b16 %v224, %v222
  %v343 = vpack.c.b16 %v227, %v225
  %v344 = vpack.c.b16 %v228, %v226
  %v345 = vpack.c.b16 %v231, %v229
  %v346 = vpack.c.b16 %v232, %v230
  %v347 = vpack.c.b16 %v235, %v233
  %v348 = vpack.c.b16 %v236, %v234
  %v349 = vpack.c.b16 %v239, %v237
  %v350 = vpack.c.b16 %v240, %v238
  %v351 = vpack.c.b16 %v243, %v241
  %v352 = vpack.c.b16 %v244, %v242
  %v353 = vpack.c.b16 %v247, %v245
  %v354 = vpack.c.b16 %v248, %v246
  %v355 = vpack.c.b16 %v251, %v249
  %v356 = vpack.c.b16 %v252, %v250
  %v357 = vpack.c.b16 %v255, %v253
  %v358 = vpack.c.b16 %v256, %v254
  %v359 = vpack.c.b16 %v259, %v257
  %v360 = vpack.c.b16 %v260, %v258
  %v361 = vpack.c.b16 %v263, %v261
  %v362 = vpack.c.b16 %v264, %v262
  %v363 = vpack.c.b16 %v267, %v265
  %v364 = vpack.c.b16 %v268, %v266
  %v365 = vpack.c.b16 %v271, %v269
  %v366 = vpack.c.b16 %v272, %v270
  %v367 = vpack.c.b16 %v275, %v273
  %v368 = vpack.c.b16 %v276, %v274
  %v369 = vpack.c.b16 %v279, %v277
  %v370 = vpack.c.b16 %v280, %v278
  %v371 = vpack.c.b16 %v283, %v281
  %v372 = vpack.c.b16 %v284, %v282
  %v373 = vpack.c.b16 %v287, %v285
  %v374 = vpack.c.b16 %v288, %v286
  %v375 = vpack.c.b16 %v291, %v289
  %v376 = vpack.c.b16 %v292, %v290
  %v377 = vpack.c.b16 %v295, %v293
  %v378 = vpack.c.b16 %v296, %v294
  %v379 = vpack.c.b16 %v299, %v297
  %v380 = vpack.c.b16 %v300, %v298
  %v381 = vpack.c.b16 %v303, %v301
  %v382 = vpack.c.b16 %v304, %v302
  %v383 = vpack.c.b16 %v307, %v305
  %v384 = vpack.c.b16 %v308, %v306
  %v385 = vpack.c.b16 %v311, %v309
  %v386 = vpack.c.b16 %v312, %v310
  %v387 = vpack.c.b16 %v315, %v313
  %v388 = vpack.c.b16 %v316, %v314
  %v389 = vpack.c.b16 %v319, %v317
  %v390 = vpack.c.b16 %v320, %v318
  %v391 = vpack.c.b16 %v323, %v321
  %v392 = vpack.c.b16 %v324, %v322
  %v393 = vpack.c.b16 %v327, %v325
  %v394 = vpack.c.b16 %v328, %v326
  %v395 = vpack.c.b16 %v331, %v329
  %v396 = vpack.c.b16 %v332, %v330
  %461 = vmatprep.subr.bf16.mxu0 %v348
  %462 = vmatpush1.bf16.msra.mxu0 %v347
  %463 = vmatprep.subr.bf16.mxu0 %v346
  %464 = vmatpush1.bf16.msra.mxu0 %v345
  %465 = vmatprep.subr.bf16.mxu0 %v344
  %466 = vmatpush1.bf16.msra.mxu0 %v343
  %467 = vmatprep.subr.bf16.mxu0 %v342
  %468 = vmatpush1.bf16.msra.mxu0 %v341
  %469 = vmatprep.subr.bf16.mxu0 %v340
  %470 = vmatpush1.bf16.msra.mxu0 %v339
  %471 = vmatprep.subr.bf16.mxu0 %v338
  %472 = vmatpush1.bf16.msra.mxu0 %v337
  %473 = vmatprep.subr.bf16.mxu0 %v336
  %474 = vmatpush1.bf16.msra.mxu0 %v335
  %475 = vmatprep.subr.bf16.mxu0 %v334
  %476 = vmatpush1.bf16.msra.mxu0 %v333
  %477 = vmatprep.subr.bf16.mxu0 %v364
  %478 = vmatpush2.bf16.msra.mxu0 %v363
  %479 = vmatprep.subr.bf16.mxu0 %v362
  %480 = vmatpush2.bf16.msra.mxu0 %v361
  %481 = vmatprep.subr.bf16.mxu0 %v360
  %482 = vmatpush2.bf16.msra.mxu0 %v359
  %483 = vmatprep.subr.bf16.mxu0 %v358
  %484 = vmatpush2.bf16.msra.mxu0 %v357
  %485 = vmatprep.subr.bf16.mxu0 %v356
  %486 = vmatpush2.bf16.msra.mxu0 %v355
  %487 = vmatprep.subr.bf16.mxu0 %v354
  %488 = vmatpush2.bf16.msra.mxu0 %v353
  %489 = vmatprep.subr.bf16.mxu0 %v352
  %490 = vmatpush2.bf16.msra.mxu0 %v351
  %491 = vmatprep.subr.bf16.mxu0 %v350
  %492 = vmatpush2.bf16.msra.mxu0 %v349
  %493 = vmatprep.mubr.bf16.mxu0 %v126
  %494 = vmatmul.mubr.bf16.gmra.mxu0 %v125
  %v495 = vpop.f32.mrf.mxu0
  %v496 = vadd.f32 %v94, %v495
  %v497 = vpop.f32.mrf.mxu0
  %v498 = vadd.f32 %v98, %v497
  %v499 = vpop.f32.mrf.mxu0
  %v500 = vadd.f32 %v94, %v499
  %v501 = vpop.f32.mrf.mxu0
  %v502 = vadd.f32 %v98, %v501
  %503 = vmatprep.mubr.bf16.mxu0 %v130
  %504 = vmatmul.mubr.bf16.gmra.mxu0 %v129
  %v505 = vpop.f32.mrf.mxu0
  %v506 = vadd.f32 %v94, %v505
  %v507 = vpop.f32.mrf.mxu0
  %v508 = vadd.f32 %v98, %v507
  %v509 = vpop.f32.mrf.mxu0
  %v510 = vadd.f32 %v94, %v509
  %v511 = vpop.f32.mrf.mxu0
  %v512 = vadd.f32 %v98, %v511
  %513 = vdwg.mxu0
  %514 = vmatprep.subr.bf16.mxu0 %v380
  %515 = vmatpush1.bf16.msra.mxu0 %v379
  %516 = vmatprep.subr.bf16.mxu0 %v378
  %517 = vmatpush1.bf16.msra.mxu0 %v377
  %518 = vmatprep.subr.bf16.mxu0 %v376
  %519 = vmatpush1.bf16.msra.mxu0 %v375
  %520 = vmatprep.subr.bf16.mxu0 %v374
  %521 = vmatpush1.bf16.msra.mxu0 %v373
  %522 = vmatprep.subr.bf16.mxu0 %v372
  %523 = vmatpush1.bf16.msra.mxu0 %v371
  %524 = vmatprep.subr.bf16.mxu0 %v370
  %525 = vmatpush1.bf16.msra.mxu0 %v369
  %526 = vmatprep.subr.bf16.mxu0 %v368
  %527 = vmatpush1.bf16.msra.mxu0 %v367
  %528 = vmatprep.subr.bf16.mxu0 %v366
  %529 = vmatpush1.bf16.msra.mxu0 %v365
  %530 = vmatprep.subr.bf16.mxu0 %v396
  %531 = vmatpush2.bf16.msra.mxu0 %v395
  %532 = vmatprep.subr.bf16.mxu0 %v394
  %533 = vmatpush2.bf16.msra.mxu0 %v393
  %534 = vmatprep.subr.bf16.mxu0 %v392
  %535 = vmatpush2.bf16.msra.mxu0 %v391
  %536 = vmatprep.subr.bf16.mxu0 %v390
  %537 = vmatpush2.bf16.msra.mxu0 %v389
  %538 = vmatprep.subr.bf16.mxu0 %v388
  %539 = vmatpush2.bf16.msra.mxu0 %v387
  %540 = vmatprep.subr.bf16.mxu0 %v386
  %541 = vmatpush2.bf16.msra.mxu0 %v385
  %542 = vmatprep.subr.bf16.mxu0 %v384
  %543 = vmatpush2.bf16.msra.mxu0 %v383
  %544 = vmatprep.subr.bf16.mxu0 %v382
  %545 = vmatpush2.bf16.msra.mxu0 %v381
  %546 = vmatprep.mubr.bf16.mxu0 %v128
  %547 = vmatmul.mubr.bf16.gmra.mxu0 %v127
  %v548 = vpop.f32.mrf.mxu0
  %v549 = vadd.f32 %v496, %v548
  %v550 = vpop.f32.mrf.mxu0
  %v551 = vadd.f32 %v498, %v550
  %v552 = vpop.f32.mrf.mxu0
  %v553 = vadd.f32 %v500, %v552
  %v554 = vpop.f32.mrf.mxu0
  %v555 = vadd.f32 %v502, %v554
  %556 = vmatprep.mubr.bf16.mxu0 %v132
  %557 = vmatmul.mubr.bf16.gmra.mxu0 %v131
  %v558 = vpop.f32.mrf.mxu0
  %v559 = vadd.f32 %v506, %v558
  %v560 = vpop.f32.mrf.mxu0
  %v561 = vadd.f32 %v508, %v560
  %v562 = vpop.f32.mrf.mxu0
  %v563 = vadd.f32 %v510, %v562
  %v564 = vpop.f32.mrf.mxu0
  %v565 = vadd.f32 %v512, %v564
  %566 = vdwg.mxu0
  %v567 = vld [vmem:[%s3] sm:$0xff]
  %v568 = vld [vmem:[%s3 + $0x8] sm:$0xff]
  %v569 = vld [vmem:[%s3 + $0x10] sm:$0xff]
  %v570 = vld [vmem:[%s3 + $0x18] sm:$0xff]
  %v571 = vunpack.c.l.bf16 %v567
  %v572 = vunpack.c.h.bf16 %v567
  %v573 = vunpack.c.l.bf16 %v568
  %v574 = vunpack.c.h.bf16 %v568
  %v575 = vunpack.c.l.bf16 %v569
  %v576 = vunpack.c.h.bf16 %v569
  %v577 = vunpack.c.l.bf16 %v570
  %v578 = vunpack.c.h.bf16 %v570
  %v579 = vadd.f32 %v549, %v571
  %v580 = vadd.f32 %v551, %v572
  %v581 = vadd.f32 %v553, %v573
  %v582 = vadd.f32 %v555, %v574
  %v583 = vadd.f32 %v559, %v575
  %v584 = vadd.f32 %v561, %v576
  %v585 = vadd.f32 %v563, %v577
  %v586 = vadd.f32 %v565, %v578
  %v587 = vpack.c.bf16 %v581, %v579
  %v588 = vpack.c.bf16 %v582, %v580
  %v589 = vpack.c.bf16 %v585, %v583
  %v590 = vpack.c.bf16 %v586, %v584
  %v595 = vunpack.c.l.b16 %v587
  %v596 = vunpack.c.l.b16 %v588
  %v597 = vunpack.c.h.b16 %v587
  %v598 = vunpack.c.h.b16 %v588
  %v599 = vunpack.c.l.b16 %v589
  %v600 = vunpack.c.l.b16 %v590
  %v601 = vunpack.c.h.b16 %v589
  %v602 = vunpack.c.h.b16 %v590
  %v603 = vpack.c.b16 %v596, %v595
  %v604 = vpack.c.b16 %v598, %v597
  %v605 = vpack.c.b16 %v600, %v599
  %v606 = vpack.c.b16 %v602, %v601
  %611 = vst [vmem:[%s4] sm:$0xff] %v603
  %612 = vst [vmem:[%s4 + $0x8] sm:$0xff] %v604
  %613 = vst [vmem:[%s4 + $0x10] sm:$0xff] %v605
  %614 = vst [vmem:[%s4 + $0x18] sm:$0xff] %v606
  // Predicated region
  $region18: #{vision_encoder_forward.17} parent=0 // pred_check
    _
  $region19: #{vision_encoder_forward.17} parent=0 // pred_check_branch
    %616 = sbr.rel (0) target = $region21
  $region20: #{vision_encoder_forward.17} parent=0 // pred_region
    _
  $region21: #{vision_encoder_forward.17} parent=0 // pred_fallthru
    _
  // Predicated region
  $region22: #{vision_encoder_forward.17} parent=0 // pred_check
    _
  $region23: #{vision_encoder_forward.17} parent=0 // pred_check_branch
    %618 = sbr.rel (0) target = $region25
  $region24: #{vision_encoder_forward.17} parent=0 // pred_region
    _
  $region25: #{vision_encoder_forward.17} parent=0 // pred_fallthru
    _

// kernel: vision_encoder_forward.23
$region0: #{vision_encoder_forward.23}
  #allocation0 [shape = 'u32[]', space=smem, size = 0x4, offset = 0x4, fixed_abs, tag = 'smem constant byte address 0x4 - core index']
  #allocation1 [shape = 'u32[144,128]{1,0:T(1,128)}', space=vmem, size = 0x12000, scoped, tag = 'internal scratch']
  #allocation2 [shape = 'bf16[32,256]{1,0:T(8,128)(2,1)}', space=vmem, size = 0x4000, scoped, tag = 'scratch operand']
  %s0 = inlined_call_operand.vmem [shape: bf16[32,256], index: 0, kind: input, shape index: {}]
  %s1 = inlined_call_operand.vmem [shape: f32[1,256], index: 1, kind: input, shape index: {}]
  %s2 = inlined_call_operand.vmem [shape: f32[1,256], index: 2, kind: input, shape index: {}]
  %s3 = inlined_call_operand.vmem [shape: bf16[256,128], index: 3, kind: input, shape index: {}]
  %s4 = inlined_call_operand.vmem [shape: f32[1,128], index: 4, kind: input, shape index: {}]
  %s5 = inlined_call_operand.hbm [shape: f32[32,128], index: 5, kind: output, shape index: {}]
  %s6 = sld [smem:[#allocation0]]
  $region34: #{vision_encoder_forward.23} parent=0
    _
  %s8 = ssub.s32 1, %s6
  %s9 = scalar_select 0, %s8, %s6
  $region1: #{vision_encoder_forward.23} parent=0
    #allocation3 [shape = 'u8[16384]{0}', space=vmem, size = 0x4000, scoped, tag = 'output window, operand 0, single buffered']
    #allocation4 [shape = 's32[1]{0}', space=sflag, size = 0x4, scoped, tag = 'scoped memory for vision_encoder_forward.23']
    %10 = vsyncpa [#allocation4], 0
    // Predicated region
    $region2: #{vision_encoder_forward.23} parent=1 // pred_check
      _
    $region3: #{vision_encoder_forward.23} parent=1 // pred_check_branch
      %12 = sbr.rel (0) target = $region5
    $region4: #{vision_encoder_forward.23} parent=1 // pred_region
      _
    $region5: #{vision_encoder_forward.23} parent=1 // pred_fallthru
      _
    // Predicated region
    $region6: #{vision_encoder_forward.23} parent=1 // pred_check
      _
    $region7: #{vision_encoder_forward.23} parent=1 // pred_check_branch
      %14 = sbr.rel (0) target = $region9
    $region8: #{vision_encoder_forward.23} parent=1 // pred_region
      _
    $region9: #{vision_encoder_forward.23} parent=1 // pred_fallthru
      _
    // Predicated region
    $region10: #{vision_encoder_forward.23} parent=1 // pred_check
      _
    $region11: #{vision_encoder_forward.23} parent=1 // pred_check_branch
      %16 = sbr.rel (0) target = $region13
    $region12: #{vision_encoder_forward.23} parent=1 // pred_region
      _
    $region13: #{vision_encoder_forward.23} parent=1 // pred_fallthru
      _
    // Predicated region
    $region14: #{vision_encoder_forward.23} parent=1 // pred_check
      _
    $region15: #{vision_encoder_forward.23} parent=1 // pred_check_branch
      %18 = sbr.rel (0) target = $region17
    $region16: #{vision_encoder_forward.23} parent=1 // pred_region
      _
    $region17: #{vision_encoder_forward.23} parent=1 // pred_fallthru
      _
    // Predicated region
    $region18: #{vision_encoder_forward.23} parent=1 // pred_check
      _
    $region19: #{vision_encoder_forward.23} parent=1 // pred_check_branch
      %20 = sbr.rel (0) target = $region21
    $region20: #{vision_encoder_forward.23} parent=1 // pred_region
      _
    $region21: #{vision_encoder_forward.23} parent=1 // pred_fallthru
      _
    %p22 = scmp.eq.s32.totalorder 0, 0
    // Predicated region
    $region22: #{vision_encoder_forward.23} parent=1 // pred_check
      %p23 = pneg %p22
    $region23: #{vision_encoder_forward.23} parent=1 // pred_check_branch
      %25 = sbr.rel (%p23) target = $region25
    $region24: #{vision_encoder_forward.23} parent=1 // pred_region
      %v26 = vld [vmem:[%s0] sm:$0xff]
      %v27 = vld [vmem:[%s0 + $0x8] sm:$0xff]
      %v28 = vld [vmem:[%s0 + $0x10] sm:$0xff]
      %v29 = vld [vmem:[%s0 + $0x18] sm:$0xff]
      %v30 = vunpack.c.l.bf16 %v26
      %v31 = vunpack.c.h.bf16 %v26
      %v32 = vunpack.c.l.bf16 %v27
      %v33 = vunpack.c.h.bf16 %v27
      %v34 = vunpack.c.l.bf16 %v28
      %v35 = vunpack.c.h.bf16 %v28
      %v36 = vunpack.c.l.bf16 %v29
      %v37 = vunpack.c.h.bf16 %v29
      %v38 = vadd.f32 %v30, %v31
      %39 = vadd.xlane.f32.xlu0 %v38
      %v40 = vpop.xlane.xlu0 %39
      %v41 = vadd.f32 %v32, %v33
      %42 = vadd.xlane.f32.xlu0 %v41
      %v43 = vpop.xlane.xlu0 %42
      %v44 = vadd.f32 %v34, %v35
      %45 = vadd.xlane.f32.xlu0 %v44
      %v46 = vpop.xlane.xlu0 %45
      %v47 = vadd.f32 %v36, %v37
      %48 = vadd.xlane.f32.xlu0 %v47
      %v49 = vpop.xlane.xlu0 %48
      %v50 = vrcp.pop 256.0
      %v51 = vmul.f32 %v40, %v50
      %v52 = vmul.f32 %v43, %v50
      %v53 = vmul.f32 %v46, %v50
      %v54 = vmul.f32 %v49, %v50
      %v55 = vsub.f32 %v30, %v51
      %v56 = vsub.f32 %v31, %v51
      %v57 = vsub.f32 %v32, %v52
      %v58 = vsub.f32 %v33, %v52
      %v59 = vsub.f32 %v34, %v53
      %v60 = vsub.f32 %v35, %v53
      %v61 = vsub.f32 %v36, %v54
      %v62 = vsub.f32 %v37, %v54
      %v63 = vmul.f32 %v55, %v55
      %v64 = vmul.f32 %v56, %v56
      %v65 = vmul.f32 %v57, %v57
      %v66 = vmul.f32 %v58, %v58
      %v67 = vmul.f32 %v59, %v59
      %v68 = vmul.f32 %v60, %v60
      %v69 = vmul.f32 %v61, %v61
      %v70 = vmul.f32 %v62, %v62
      %v71 = vadd.f32 %v63, %v64
      %72 = vadd.xlane.f32.xlu0 %v71
      %v73 = vpop.xlane.xlu0 %72
      %v74 = vadd.f32 %v65, %v66
      %75 = vadd.xlane.f32.xlu0 %v74
      %v76 = vpop.xlane.xlu0 %75
      %v77 = vadd.f32 %v67, %v68
      %78 = vadd.xlane.f32.xlu0 %v77
      %v79 = vpop.xlane.xlu0 %78
      %v80 = vadd.f32 %v69, %v70
      %81 = vadd.xlane.f32.xlu0 %v80
      %v82 = vpop.xlane.xlu0 %81
      %v83 = vmul.f32 %v73, %v50
      %v84 = vmul.f32 %v76, %v50
      %v85 = vmul.f32 %v79, %v50
      %v86 = vmul.f32 %v82, %v50
      %v87 = vadd.f32 %v83, 1e-06
      %v88 = vadd.f32 %v84, 1e-06
      %v89 = vadd.f32 %v85, 1e-06
      %v90 = vadd.f32 %v86, 1e-06
      %v91 = vrsqrt.pop %v87
      %v92 = vrsqrt.pop %v88
      %v93 = vrsqrt.pop %v89
      %v94 = vrsqrt.pop %v90
      %v95 = vmul.f32 %v55, %v91
      %v96 = vmul.f32 %v56, %v91
      %v97 = vmul.f32 %v57, %v92
      %v98 = vmul.f32 %v58, %v92
      %v99 = vmul.f32 %v59, %v93
      %v100 = vmul.f32 %v60, %v93
      %v101 = vmul.f32 %v61, %v94
      %v102 = vmul.f32 %v62, %v94
      %v103 = vld [vmem:[%s1] sm:$0x3]
      %v105 = vlaneseq
      %v106 = vshrl.u32 %v105, 7
      %v107 = vsub.s32 0, %v106
      %v108 = vrot.slane %v103, %v107
      %v109 = vlaneseq
      %v110 = vshrl.u32 %v109, 7
      %v111 = vsub.s32 1, %v110
      %v112 = vrot.slane %v103, %v111
      %v115 = vmul.f32 %v95, %v108
      %v116 = vmul.f32 %v96, %v112
      %v117 = vmul.f32 %v97, %v108
      %v118 = vmul.f32 %v98, %v112
      %v119 = vmul.f32 %v99, %v108
      %v120 = vmul.f32 %v100, %v112
      %v121 = vmul.f32 %v101, %v108
      %v122 = vmul.f32 %v102, %v112
      %v123 = vld [vmem:[%s2] sm:$0x3]
      %v125 = vlaneseq
      %v126 = vshrl.u32 %v125, 7
      %v127 = vsub.s32 0, %v126
      %v128 = vrot.slane %v123, %v127
      %v129 = vlaneseq
      %v130 = vshrl.u32 %v129, 7
      %v131 = vsub.s32 1, %v130
      %v132 = vrot.slane %v123, %v131
      %v135 = vadd.f32 %v115, %v128
      %v136 = vadd.f32 %v116, %v132
      %v137 = vadd.f32 %v117, %v128
      %v138 = vadd.f32 %v118, %v132
      %v139 = vadd.f32 %v119, %v128
      %v140 = vadd.f32 %v120, %v132
      %v141 = vadd.f32 %v121, %v128
      %v142 = vadd.f32 %v122, %v132
      %v143 = vpack.c.bf16 %v137, %v135
      %v144 = vpack.c.bf16 %v138, %v136
      %v145 = vpack.c.bf16 %v141, %v139
      %v146 = vpack.c.bf16 %v142, %v140
      %v151 = vunpack.c.l.b16 %v143
      %v152 = vunpack.c.l.b16 %v144
      %v153 = vunpack.c.h.b16 %v143
      %v154 = vunpack.c.h.b16 %v144
      %v155 = vunpack.c.l.b16 %v145
      %v156 = vunpack.c.l.b16 %v146
      %v157 = vunpack.c.h.b16 %v145
      %v158 = vunpack.c.h.b16 %v146
      %v159 = vpack.c.b16 %v152, %v151
      %v160 = vpack.c.b16 %v154, %v153
      %v161 = vpack.c.b16 %v156, %v155
      %v162 = vpack.c.b16 %v158, %v157
      %167 = vst [vmem:[#allocation2] sm:$0xff] %v159
      %168 = vst [vmem:[#allocation2 + $0x8] sm:$0xff] %v160
      %169 = vst [vmem:[#allocation2 + $0x10] sm:$0xff] %v161
      %170 = vst [vmem:[#allocation2 + $0x18] sm:$0xff] %v162
    $region25: #{vision_encoder_forward.23} parent=1 // pred_fallthru
      _
    %v171 = vld [vmem:[#allocation2] sm:$0xff]
    %v172 = vld [vmem:[#allocation2 + $0x8] sm:$0xff]
    %v173 = vld [vmem:[#allocation2 + $0x10] sm:$0xff]
    %v174 = vld [vmem:[#allocation2 + $0x18] sm:$0xff]
    %v175 = vld [vmem:[%s3] sm:$0xf]
    %v176 = vld [vmem:[%s3 + $0x4] sm:$0xf]
    %v177 = vld [vmem:[%s3 + $0x8] sm:$0xf]
    %v178 = vld [vmem:[%s3 + $0xc] sm:$0xf]
    %v179 = vld [vmem:[%s3 + $0x10] sm:$0xf]
    %v180 = vld [vmem:[%s3 + $0x14] sm:$0xf]
    %v181 = vld [vmem:[%s3 + $0x18] sm:$0xf]
    %v182 = vld [vmem:[%s3 + $0x1c] sm:$0xf]
    %v183 = vld [vmem:[%s3 + $0x20] sm:$0xf]
    %v184 = vld [vmem:[%s3 + $0x24] sm:$0xf]
    %v185 = vld [vmem:[%s3 + $0x28] sm:$0xf]
    %v186 = vld [vmem:[%s3 + $0x2c] sm:$0xf]
    %v187 = vld [vmem:[%s3 + $0x30] sm:$0xf]
    %v188 = vld [vmem:[%s3 + $0x34] sm:$0xf]
    %v189 = vld [vmem:[%s3 + $0x38] sm:$0xf]
    %v190 = vld [vmem:[%s3 + $0x3c] sm:$0xf]
    %v191 = vld [vmem:[%s3 + $0x40] sm:$0xf]
    %v192 = vld [vmem:[%s3 + $0x44] sm:$0xf]
    %v193 = vld [vmem:[%s3 + $0x48] sm:$0xf]
    %v194 = vld [vmem:[%s3 + $0x4c] sm:$0xf]
    %v195 = vld [vmem:[%s3 + $0x50] sm:$0xf]
    %v196 = vld [vmem:[%s3 + $0x54] sm:$0xf]
    %v197 = vld [vmem:[%s3 + $0x58] sm:$0xf]
    %v198 = vld [vmem:[%s3 + $0x5c] sm:$0xf]
    %v199 = vld [vmem:[%s3 + $0x60] sm:$0xf]
    %v200 = vld [vmem:[%s3 + $0x64] sm:$0xf]
    %v201 = vld [vmem:[%s3 + $0x68] sm:$0xf]
    %v202 = vld [vmem:[%s3 + $0x6c] sm:$0xf]
    %v203 = vld [vmem:[%s3 + $0x70] sm:$0xf]
    %v204 = vld [vmem:[%s3 + $0x74] sm:$0xf]
    %v205 = vld [vmem:[%s3 + $0x78] sm:$0xf]
    %v206 = vld [vmem:[%s3 + $0x7c] sm:$0xf]
    %v207 = vld [vmem:[%s4] sm:$0x1]
    %v209 = vlaneseq
    %v210 = vshrl.u32 %v209, 7
    %v211 = vsub.s32 0, %v210
    %v212 = vrot.slane %v207, %v211
    %v218 = vunpack.c.l.b16 %v171
    %v219 = vunpack.c.h.b16 %v171
    %v220 = vunpack.c.l.b16 %v172
    %v221 = vunpack.c.h.b16 %v172
    %v222 = vunpack.c.l.b16 %v173
    %v223 = vunpack.c.h.b16 %v173
    %v224 = vunpack.c.l.b16 %v174
    %v225 = vunpack.c.h.b16 %v174
    %v226 = vpack.c.b16 %v220, %v218
    %v227 = vpack.c.b16 %v221, %v219
    %v228 = vpack.c.b16 %v224, %v222
    %v229 = vpack.c.b16 %v225, %v223
    %v266 = vunpack.c.l.b16 %v175
    %v267 = vunpack.c.l.b16 %v176
    %v268 = vunpack.c.l.b16 %v177
    %v269 = vunpack.c.l.b16 %v178
    %v270 = vunpack.c.l.b16 %v179
    %v271 = vunpack.c.l.b16 %v180
    %v272 = vunpack.c.l.b16 %v181
    %v273 = vunpack.c.l.b16 %v182
    %v274 = vunpack.c.l.b16 %v183
    %v275 = vunpack.c.l.b16 %v184
    %v276 = vunpack.c.l.b16 %v185
    %v277 = vunpack.c.l.b16 %v186
    %v278 = vunpack.c.l.b16 %v187
    %v279 = vunpack.c.l.b16 %v188
    %v280 = vunpack.c.l.b16 %v189
    %v281 = vunpack.c.l.b16 %v190
    %v282 = vunpack.c.l.b16 %v191
    %v283 = vunpack.c.l.b16 %v192
    %v284 = vunpack.c.l.b16 %v193
    %v285 = vunpack.c.l.b16 %v194
    %v286 = vunpack.c.l.b16 %v195
    %v287 = vunpack.c.l.b16 %v196
    %v288 = vunpack.c.l.b16 %v197
    %v289 = vunpack.c.l.b16 %v198
    %v290 = vunpack.c.l.b16 %v199
    %v291 = vunpack.c.l.b16 %v200
    %v292 = vunpack.c.l.b16 %v201
    %v293 = vunpack.c.l.b16 %v202
    %v294 = vunpack.c.l.b16 %v203
    %v295 = vunpack.c.l.b16 %v204
    %v296 = vunpack.c.l.b16 %v205
    %v297 = vunpack.c.l.b16 %v206
    %v298 = vpack.c.b16 %v267, %v266
    %v299 = vpack.c.b16 %v269, %v268
    %v300 = vpack.c.b16 %v271, %v270
    %v301 = vpack.c.b16 %v273, %v272
    %v302 = vpack.c.b16 %v275, %v274
    %v303 = vpack.c.b16 %v277, %v276
    %v304 = vpack.c.b16 %v279, %v278
    %v305 = vpack.c.b16 %v281, %v280
    %v306 = vpack.c.b16 %v283, %v282
    %v307 = vpack.c.b16 %v285, %v284
    %v308 = vpack.c.b16 %v287, %v286
    %v309 = vpack.c.b16 %v289, %v288
    %v310 = vpack.c.b16 %v291, %v290
    %v311 = vpack.c.b16 %v293, %v292
    %v312 = vpack.c.b16 %v295, %v294
    %v313 = vpack.c.b16 %v297, %v296
    %330 = vmatprep.subr.bf16.mxu0 0
    %331 = vmatpush1.bf16.msra.mxu0 %v305
    %332 = vmatprep.subr.bf16.mxu0 0
    %333 = vmatpush1.bf16.msra.mxu0 %v304
    %334 = vmatprep.subr.bf16.mxu0 0
    %335 = vmatpush1.bf16.msra.mxu0 %v303
    %336 = vmatprep.subr.bf16.mxu0 0
    %337 = vmatpush1.bf16.msra.mxu0 %v302
    %338 = vmatprep.subr.bf16.mxu0 0
    %339 = vmatpush1.bf16.msra.mxu0 %v301
    %340 = vmatprep.subr.bf16.mxu0 0
    %341 = vmatpush1.bf16.msra.mxu0 %v300
    %342 = vmatprep.subr.bf16.mxu0 0
    %343 = vmatpush1.bf16.msra.mxu0 %v299
    %344 = vmatprep.subr.bf16.mxu0 0
    %345 = vmatpush1.bf16.msra.mxu0 %v298
    %346 = vmatprep.subr.bf16.mxu0 0
    %347 = vmatpush2.bf16.msra.mxu0 %v313
    %348 = vmatprep.subr.bf16.mxu0 0
    %349 = vmatpush2.bf16.msra.mxu0 %v312
    %350 = vmatprep.subr.bf16.mxu0 0
    %351 = vmatpush2.bf16.msra.mxu0 %v311
    %352 = vmatprep.subr.bf16.mxu0 0
    %353 = vmatpush2.bf16.msra.mxu0 %v310
    %354 = vmatprep.subr.bf16.mxu0 0
    %355 = vmatpush2.bf16.msra.mxu0 %v309
    %356 = vmatprep.subr.bf16.mxu0 0
    %357 = vmatpush2.bf16.msra.mxu0 %v308
    %358 = vmatprep.subr.bf16.mxu0 0
    %359 = vmatpush2.bf16.msra.mxu0 %v307
    %360 = vmatprep.subr.bf16.mxu0 0
    %361 = vmatpush2.bf16.msra.mxu0 %v306
    %362 = vmatprep.mubr.bf16.mxu0 %v227
    %363 = vmatmul.mubr.bf16.gmra.mxu0 %v226
    %v364 = vpop.f32.mrf.mxu0
    %v365 = vadd.f32 %v212, %v364
    %v366 = vpop.f32.mrf.mxu0
    %v367 = vpop.f32.mrf.mxu0
    %v368 = vadd.f32 %v212, %v367
    %v369 = vpop.f32.mrf.mxu0
    %370 = vmatprep.mubr.bf16.mxu0 %v229
    %371 = vmatmul.mubr.bf16.gmra.mxu0 %v228
    %v372 = vpop.f32.mrf.mxu0
    %v373 = vadd.f32 %v212, %v372
    %v374 = vpop.f32.mrf.mxu0
    %v375 = vpop.f32.mrf.mxu0
    %v376 = vadd.f32 %v212, %v375
    %v377 = vpop.f32.mrf.mxu0
    %378 = vdwg.mxu0
    %379 = vst [vmem:[#allocation3] sm:$0xff] %v365
    %380 = vst [vmem:[#allocation3 + $0x8] sm:$0xff] %v368
    %381 = vst [vmem:[#allocation3 + $0x10] sm:$0xff] %v373
    %382 = vst [vmem:[#allocation3 + $0x18] sm:$0xff] %v376
    // Predicated region
    $region26: #{vision_encoder_forward.23} parent=1 // pred_check
      _
    $region27: #{vision_encoder_forward.23} parent=1 // pred_check_branch
      %384 = sbr.rel (0) target = $region29
    $region28: #{vision_encoder_forward.23} parent=1 // pred_region
      %s386 = ssub.s32 512, 512
      %387 = vsyncadd [#allocation4], %s386
      %s388 = sshll.u32 [#allocation3], 4
      %s389 = int_to_ptr.vmem [resolvable:$true] %s388
      %394 = dma.vmem_to_hbm [thread:$0]  %s389, 512, %s5, [#allocation4], 128, 128, 8
    $region29: #{vision_encoder_forward.23} parent=1 // pred_fallthru
      _
    // Predicated region
    $region30: #{vision_encoder_forward.23} parent=1 // pred_check
      _
    $region31: #{vision_encoder_forward.23} parent=1 // pred_check_branch
      %396 = sbr.rel (0) target = $region33
    $region32: #{vision_encoder_forward.23} parent=1 // pred_region
      %397 = dma.done [#allocation4], 512
    $region33: #{vision_encoder_forward.23} parent=1 // pred_fallthru
      _
    %398 = vsyncpa [#allocation4], 1

// kernel: vision_encoder_forward.16
$region0: #{vision_encoder_forward.16}
  #allocation0 [shape = 'u32[]', space=smem, size = 0x4, offset = 0x4, fixed_abs, tag = 'smem constant byte address 0x4 - core index']
  #allocation1 [shape = 'u32[144,128]{1,0:T(1,128)}', space=vmem, size = 0x12000, scoped, tag = 'internal scratch']
  #allocation2 [shape = 'bf16[32,256]{1,0:T(8,128)(2,1)}', space=vmem, size = 0x4000, scoped, tag = 'scratch operand']
  %s0 = inlined_call_operand.vmem [shape: bf16[32,256], index: 0, kind: input, shape index: {}]
  %s1 = inlined_call_operand.vmem [shape: f32[1,256], index: 1, kind: input, shape index: {}]
  %s2 = inlined_call_operand.vmem [shape: f32[1,256], index: 2, kind: input, shape index: {}]
  %s3 = inlined_call_operand.vmem [shape: bf16[256,512], index: 3, kind: input, shape index: {}]
  %s4 = inlined_call_operand.vmem [shape: f32[1,512], index: 4, kind: input, shape index: {}]
  %s5 = inlined_call_operand.vmem [shape: bf16[32,512], index: 5, kind: output, shape index: {}]
  %s6 = sld [smem:[#allocation0]]
  $region34: #{vision_encoder_forward.16} parent=0
    _
  %s8 = ssub.s32 1, %s6
  %s9 = scalar_select 0, %s8, %s6
  // Predicated region
  $region2: #{vision_encoder_forward.16} parent=0 // pred_check
    _
  $region3: #{vision_encoder_forward.16} parent=0 // pred_check_branch
    %11 = sbr.rel (0) target = $region5
  $region4: #{vision_encoder_forward.16} parent=0 // pred_region
    _
  $region5: #{vision_encoder_forward.16} parent=0 // pred_fallthru
    _
  // Predicated region
  $region6: #{vision_encoder_forward.16} parent=0 // pred_check
    _
  $region7: #{vision_encoder_forward.16} parent=0 // pred_check_branch
    %13 = sbr.rel (0) target = $region9
  $region8: #{vision_encoder_forward.16} parent=0 // pred_region
    _
  $region9: #{vision_encoder_forward.16} parent=0 // pred_fallthru
    _
  // Predicated region
  $region10: #{vision_encoder_forward.16} parent=0 // pred_check
    _
  $region11: #{vision_encoder_forward.16} parent=0 // pred_check_branch
    %15 = sbr.rel (0) target = $region13
  $region12: #{vision_encoder_forward.16} parent=0 // pred_region
    _
  $region13: #{vision_encoder_forward.16} parent=0 // pred_fallthru
    _
  // Predicated region
  $region14: #{vision_encoder_forward.16} parent=0 // pred_check
    _
  $region15: #{vision_encoder_forward.16} parent=0 // pred_check_branch
    %17 = sbr.rel (0) target = $region17
  $region16: #{vision_encoder_forward.16} parent=0 // pred_region
    _
  $region17: #{vision_encoder_forward.16} parent=0 // pred_fallthru
    _
  // Predicated region
  $region18: #{vision_encoder_forward.16} parent=0 // pred_check
    _
  $region19: #{vision_encoder_forward.16} parent=0 // pred_check_branch
    %19 = sbr.rel (0) target = $region21
  $region20: #{vision_encoder_forward.16} parent=0 // pred_region
    _
  $region21: #{vision_encoder_forward.16} parent=0 // pred_fallthru
    _
  %p20 = scmp.eq.s32.totalorder 0, 0
  // Predicated region
  $region22: #{vision_encoder_forward.16} parent=0 // pred_check
    %p21 = pneg %p20
  $region23: #{vision_encoder_forward.16} parent=0 // pred_check_branch
    %23 = sbr.rel (%p21) target = $region25
  $region24: #{vision_encoder_forward.16} parent=0 // pred_region
    %v24 = vld [vmem:[%s0] sm:$0xff]
    %v25 = vld [vmem:[%s0 + $0x8] sm:$0xff]
    %v26 = vld [vmem:[%s0 + $0x10] sm:$0xff]
    %v27 = vld [vmem:[%s0 + $0x18] sm:$0xff]
    %v28 = vunpack.c.l.bf16 %v24
    %v29 = vunpack.c.h.bf16 %v24
    %v30 = vunpack.c.l.bf16 %v25
    %v31 = vunpack.c.h.bf16 %v25
    %v32 = vunpack.c.l.bf16 %v26
    %v33 = vunpack.c.h.bf16 %v26
    %v34 = vunpack.c.l.bf16 %v27
    %v35 = vunpack.c.h.bf16 %v27
    %v36 = vadd.f32 %v28, %v29
    %37 = vadd.xlane.f32.xlu0 %v36
    %v38 = vpop.xlane.xlu0 %37
    %v39 = vadd.f32 %v30, %v31
    %40 = vadd.xlane.f32.xlu0 %v39
    %v41 = vpop.xlane.xlu0 %40
    %v42 = vadd.f32 %v32, %v33
    %43 = vadd.xlane.f32.xlu0 %v42
    %v44 = vpop.xlane.xlu0 %43
    %v45 = vadd.f32 %v34, %v35
    %46 = vadd.xlane.f32.xlu0 %v45
    %v47 = vpop.xlane.xlu0 %46
    %v48 = vrcp.pop 256.0
    %v49 = vmul.f32 %v38, %v48
    %v50 = vmul.f32 %v41, %v48
    %v51 = vmul.f32 %v44, %v48
    %v52 = vmul.f32 %v47, %v48
    %v53 = vsub.f32 %v28, %v49
    %v54 = vsub.f32 %v29, %v49
    %v55 = vsub.f32 %v30, %v50
    %v56 = vsub.f32 %v31, %v50
    %v57 = vsub.f32 %v32, %v51
    %v58 = vsub.f32 %v33, %v51
    %v59 = vsub.f32 %v34, %v52
    %v60 = vsub.f32 %v35, %v52
    %v61 = vmul.f32 %v53, %v53
    %v62 = vmul.f32 %v54, %v54
    %v63 = vmul.f32 %v55, %v55
    %v64 = vmul.f32 %v56, %v56
    %v65 = vmul.f32 %v57, %v57
    %v66 = vmul.f32 %v58, %v58
    %v67 = vmul.f32 %v59, %v59
    %v68 = vmul.f32 %v60, %v60
    %v69 = vadd.f32 %v61, %v62
    %70 = vadd.xlane.f32.xlu0 %v69
    %v71 = vpop.xlane.xlu0 %70
    %v72 = vadd.f32 %v63, %v64
    %73 = vadd.xlane.f32.xlu0 %v72
    %v74 = vpop.xlane.xlu0 %73
    %v75 = vadd.f32 %v65, %v66
    %76 = vadd.xlane.f32.xlu0 %v75
    %v77 = vpop.xlane.xlu0 %76
    %v78 = vadd.f32 %v67, %v68
    %79 = vadd.xlane.f32.xlu0 %v78
    %v80 = vpop.xlane.xlu0 %79
    %v81 = vmul.f32 %v71, %v48
    %v82 = vmul.f32 %v74, %v48
    %v83 = vmul.f32 %v77, %v48
    %v84 = vmul.f32 %v80, %v48
    %v85 = vadd.f32 %v81, 1e-06
    %v86 = vadd.f32 %v82, 1e-06
    %v87 = vadd.f32 %v83, 1e-06
    %v88 = vadd.f32 %v84, 1e-06
    %v89 = vrsqrt.pop %v85
    %v90 = vrsqrt.pop %v86
    %v91 = vrsqrt.pop %v87
    %v92 = vrsqrt.pop %v88
    %v93 = vmul.f32 %v53, %v89
    %v94 = vmul.f32 %v54, %v89
    %v95 = vmul.f32 %v55, %v90
    %v96 = vmul.f32 %v56, %v90
    %v97 = vmul.f32 %v57, %v91
    %v98 = vmul.f32 %v58, %v91
    %v99 = vmul.f32 %v59, %v92
    %v100 = vmul.f32 %v60, %v92
    %v101 = vld [vmem:[%s1] sm:$0x3]
    %v103 = vlaneseq
    %v104 = vshrl.u32 %v103, 7
    %v105 = vsub.s32 0, %v104
    %v106 = vrot.slane %v101, %v105
    %v107 = vlaneseq
    %v108 = vshrl.u32 %v107, 7
    %v109 = vsub.s32 1, %v108
    %v110 = vrot.slane %v101, %v109
    %v113 = vmul.f32 %v93, %v106
    %v114 = vmul.f32 %v94, %v110
    %v115 = vmul.f32 %v95, %v106
    %v116 = vmul.f32 %v96, %v110
    %v117 = vmul.f32 %v97, %v106
    %v118 = vmul.f32 %v98, %v110
    %v119 = vmul.f32 %v99, %v106
    %v120 = vmul.f32 %v100, %v110
    %v121 = vld [vmem:[%s2] sm:$0x3]
    %v123 = vlaneseq
    %v124 = vshrl.u32 %v123, 7
    %v125 = vsub.s32 0, %v124
    %v126 = vrot.slane %v121, %v125
    %v127 = vlaneseq
    %v128 = vshrl.u32 %v127, 7
    %v129 = vsub.s32 1, %v128
    %v130 = vrot.slane %v121, %v129
    %v133 = vadd.f32 %v113, %v126
    %v134 = vadd.f32 %v114, %v130
    %v135 = vadd.f32 %v115, %v126
    %v136 = vadd.f32 %v116, %v130
    %v137 = vadd.f32 %v117, %v126
    %v138 = vadd.f32 %v118, %v130
    %v139 = vadd.f32 %v119, %v126
    %v140 = vadd.f32 %v120, %v130
    %v141 = vpack.c.bf16 %v135, %v133
    %v142 = vpack.c.bf16 %v136, %v134
    %v143 = vpack.c.bf16 %v139, %v137
    %v144 = vpack.c.bf16 %v140, %v138
    %v149 = vunpack.c.l.b16 %v141
    %v150 = vunpack.c.l.b16 %v142
    %v151 = vunpack.c.h.b16 %v141
    %v152 = vunpack.c.h.b16 %v142
    %v153 = vunpack.c.l.b16 %v143
    %v154 = vunpack.c.l.b16 %v144
    %v155 = vunpack.c.h.b16 %v143
    %v156 = vunpack.c.h.b16 %v144
    %v157 = vpack.c.b16 %v150, %v149
    %v158 = vpack.c.b16 %v152, %v151
    %v159 = vpack.c.b16 %v154, %v153
    %v160 = vpack.c.b16 %v156, %v155
    %165 = vst [vmem:[#allocation2] sm:$0xff] %v157
    %166 = vst [vmem:[#allocation2 + $0x8] sm:$0xff] %v158
    %167 = vst [vmem:[#allocation2 + $0x10] sm:$0xff] %v159
    %168 = vst [vmem:[#allocation2 + $0x18] sm:$0xff] %v160
  $region25: #{vision_encoder_forward.16} parent=0 // pred_fallthru
    _
  %v169 = vld [vmem:[#allocation2] sm:$0xff]
  %v170 = vld [vmem:[#allocation2 + $0x8] sm:$0xff]
  %v171 = vld [vmem:[#allocation2 + $0x10] sm:$0xff]
  %v172 = vld [vmem:[#allocation2 + $0x18] sm:$0xff]
  %v173 = vld [vmem:[%s3] sm:$0xff]
  %v174 = vld [vmem:[%s3 + $0x8] sm:$0xff]
  %v175 = vld [vmem:[%s3 + $0x10] sm:$0xff]
  %v176 = vld [vmem:[%s3 + $0x18] sm:$0xff]
  %v177 = vld [vmem:[%s3 + $0x20] sm:$0xff]
  %v178 = vld [vmem:[%s3 + $0x28] sm:$0xff]
  %v179 = vld [vmem:[%s3 + $0x30] sm:$0xff]
  %v180 = vld [vmem:[%s3 + $0x38] sm:$0xff]
  %v181 = vld [vmem:[%s3 + $0x40] sm:$0xff]
  %v182 = vld [vmem:[%s3 + $0x48] sm:$0xff]
  %v183 = vld [vmem:[%s3 + $0x50] sm:$0xff]
  %v184 = vld [vmem:[%s3 + $0x58] sm:$0xff]
  %v185 = vld [vmem:[%s3 + $0x60] sm:$0xff]
  %v186 = vld [vmem:[%s3 + $0x68] sm:$0xff]
  %v187 = vld [vmem:[%s3 + $0x70] sm:$0xff]
  %v188 = vld [vmem:[%s3 + $0x78] sm:$0xff]
  %v189 = vld [vmem:[%s3 + $0x80] sm:$0xff]
  %v190 = vld [vmem:[%s3 + $0x88] sm:$0xff]
  %v191 = vld [vmem:[%s3 + $0x90] sm:$0xff]
  %v192 = vld [vmem:[%s3 + $0x98] sm:$0xff]
  %v193 = vld [vmem:[%s3 + $0xa0] sm:$0xff]
  %v194 = vld [vmem:[%s3 + $0xa8] sm:$0xff]
  %v195 = vld [vmem:[%s3 + $0xb0] sm:$0xff]
  %v196 = vld [vmem:[%s3 + $0xb8] sm:$0xff]
  %v197 = vld [vmem:[%s3 + $0xc0] sm:$0xff]
  %v198 = vld [vmem:[%s3 + $0xc8] sm:$0xff]
  %v199 = vld [vmem:[%s3 + $0xd0] sm:$0xff]
  %v200 = vld [vmem:[%s3 + $0xd8] sm:$0xff]
  %v201 = vld [vmem:[%s3 + $0xe0] sm:$0xff]
  %v202 = vld [vmem:[%s3 + $0xe8] sm:$0xff]
  %v203 = vld [vmem:[%s3 + $0xf0] sm:$0xff]
  %v204 = vld [vmem:[%s3 + $0xf8] sm:$0xff]
  %v205 = vld [vmem:[%s3 + $0x100] sm:$0xff]
  %v206 = vld [vmem:[%s3 + $0x108] sm:$0xff]
  %v207 = vld [vmem:[%s3 + $0x110] sm:$0xff]
  %v208 = vld [vmem:[%s3 + $0x118] sm:$0xff]
  %v209 = vld [vmem:[%s3 + $0x120] sm:$0xff]
  %v210 = vld [vmem:[%s3 + $0x128] sm:$0xff]
  %v211 = vld [vmem:[%s3 + $0x130] sm:$0xff]
  %v212 = vld [vmem:[%s3 + $0x138] sm:$0xff]
  %v213 = vld [vmem:[%s3 + $0x140] sm:$0xff]
  %v214 = vld [vmem:[%s3 + $0x148] sm:$0xff]
  %v215 = vld [vmem:[%s3 + $0x150] sm:$0xff]
  %v216 = vld [vmem:[%s3 + $0x158] sm:$0xff]
  %v217 = vld [vmem:[%s3 + $0x160] sm:$0xff]
  %v218 = vld [vmem:[%s3 + $0x168] sm:$0xff]
  %v219 = vld [vmem:[%s3 + $0x170] sm:$0xff]
  %v220 = vld [vmem:[%s3 + $0x178] sm:$0xff]
  %v221 = vld [vmem:[%s3 + $0x180] sm:$0xff]
  %v222 = vld [vmem:[%s3 + $0x188] sm:$0xff]
  %v223 = vld [vmem:[%s3 + $0x190] sm:$0xff]
  %v224 = vld [vmem:[%s3 + $0x198] sm:$0xff]
  %v225 = vld [vmem:[%s3 + $0x1a0] sm:$0xff]
  %v226 = vld [vmem:[%s3 + $0x1a8] sm:$0xff]
  %v227 = vld [vmem:[%s3 + $0x1b0] sm:$0xff]
  %v228 = vld [vmem:[%s3 + $0x1b8] sm:$0xff]
  %v229 = vld [vmem:[%s3 + $0x1c0] sm:$0xff]
  %v230 = vld [vmem:[%s3 + $0x1c8] sm:$0xff]
  %v231 = vld [vmem:[%s3 + $0x1d0] sm:$0xff]
  %v232 = vld [vmem:[%s3 + $0x1d8] sm:$0xff]
  %v233 = vld [vmem:[%s3 + $0x1e0] sm:$0xff]
  %v234 = vld [vmem:[%s3 + $0x1e8] sm:$0xff]
  %v235 = vld [vmem:[%s3 + $0x1f0] sm:$0xff]
  %v236 = vld [vmem:[%s3 + $0x1f8] sm:$0xff]
  %v237 = vld [vmem:[%s4] sm:$0xf]
  %v239 = vlaneseq
  %v240 = vshrl.u32 %v239, 7
  %v241 = vsub.s32 0, %v240
  %v242 = vrot.slane %v237, %v241
  %v243 = vlaneseq
  %v244 = vshrl.u32 %v243, 7
  %v245 = vsub.s32 1, %v244
  %v246 = vrot.slane %v237, %v245
  %v247 = vlaneseq
  %v248 = vshrl.u32 %v247, 7
  %v249 = vsub.s32 2, %v248
  %v250 = vrot.slane %v237, %v249
  %v251 = vlaneseq
  %v252 = vshrl.u32 %v251, 7
  %v253 = vsub.s32 3, %v252
  %v254 = vrot.slane %v237, %v253
  %v263 = vunpack.c.l.b16 %v169
  %v264 = vunpack.c.h.b16 %v169
  %v265 = vunpack.c.l.b16 %v170
  %v266 = vunpack.c.h.b16 %v170
  %v267 = vunpack.c.l.b16 %v171
  %v268 = vunpack.c.h.b16 %v171
  %v269 = vunpack.c.l.b16 %v172
  %v270 = vunpack.c.h.b16 %v172
  %v271 = vpack.c.b16 %v265, %v263
  %v272 = vpack.c.b16 %v266, %v264
  %v273 = vpack.c.b16 %v269, %v267
  %v274 = vpack.c.b16 %v270, %v268
  %v343 = vunpack.c.l.b16 %v173
  %v344 = vunpack.c.h.b16 %v173
  %v345 = vunpack.c.l.b16 %v174
  %v346 = vunpack.c.h.b16 %v174
  %v347 = vunpack.c.l.b16 %v175
  %v348 = vunpack.c.h.b16 %v175
  %v349 = vunpack.c.l.b16 %v176
  %v350 = vunpack.c.h.b16 %v176
  %v351 = vunpack.c.l.b16 %v177
  %v352 = vunpack.c.h.b16 %v177
  %v353 = vunpack.c.l.b16 %v178
  %v354 = vunpack.c.h.b16 %v178
  %v355 = vunpack.c.l.b16 %v179
  %v356 = vunpack.c.h.b16 %v179
  %v357 = vunpack.c.l.b16 %v180
  %v358 = vunpack.c.h.b16 %v180
  %v359 = vunpack.c.l.b16 %v181
  %v360 = vunpack.c.h.b16 %v181
  %v361 = vunpack.c.l.b16 %v182
  %v362 = vunpack.c.h.b16 %v182
  %v363 = vunpack.c.l.b16 %v183
  %v364 = vunpack.c.h.b16 %v183
  %v365 = vunpack.c.l.b16 %v184
  %v366 = vunpack.c.h.b16 %v184
  %v367 = vunpack.c.l.b16 %v185
  %v368 = vunpack.c.h.b16 %v185
  %v369 = vunpack.c.l.b16 %v186
  %v370 = vunpack.c.h.b16 %v186
  %v371 = vunpack.c.l.b16 %v187
  %v372 = vunpack.c.h.b16 %v187
  %v373 = vunpack.c.l.b16 %v188
  %v374 = vunpack.c.h.b16 %v188
  %v375 = vunpack.c.l.b16 %v189
  %v376 = vunpack.c.h.b16 %v189
  %v377 = vunpack.c.l.b16 %v190
  %v378 = vunpack.c.h.b16 %v190
  %v379 = vunpack.c.l.b16 %v191
  %v380 = vunpack.c.h.b16 %v191
  %v381 = vunpack.c.l.b16 %v192
  %v382 = vunpack.c.h.b16 %v192
  %v383 = vunpack.c.l.b16 %v193
  %v384 = vunpack.c.h.b16 %v193
  %v385 = vunpack.c.l.b16 %v194
  %v386 = vunpack.c.h.b16 %v194
  %v387 = vunpack.c.l.b16 %v195
  %v388 = vunpack.c.h.b16 %v195
  %v389 = vunpack.c.l.b16 %v196
  %v390 = vunpack.c.h.b16 %v196
  %v391 = vunpack.c.l.b16 %v197
  %v392 = vunpack.c.h.b16 %v197
  %v393 = vunpack.c.l.b16 %v198
  %v394 = vunpack.c.h.b16 %v198
  %v395 = vunpack.c.l.b16 %v199
  %v396 = vunpack.c.h.b16 %v199
  %v397 = vunpack.c.l.b16 %v200
  %v398 = vunpack.c.h.b16 %v200
  %v399 = vunpack.c.l.b16 %v201
  %v400 = vunpack.c.h.b16 %v201
  %v401 = vunpack.c.l.b16 %v202
  %v402 = vunpack.c.h.b16 %v202
  %v403 = vunpack.c.l.b16 %v203
  %v404 = vunpack.c.h.b16 %v203
  %v405 = vunpack.c.l.b16 %v204
  %v406 = vunpack.c.h.b16 %v204
  %v407 = vunpack.c.l.b16 %v205
  %v408 = vunpack.c.h.b16 %v205
  %v409 = vunpack.c.l.b16 %v206
  %v410 = vunpack.c.h.b16 %v206
  %v411 = vunpack.c.l.b16 %v207
  %v412 = vunpack.c.h.b16 %v207
  %v413 = vunpack.c.l.b16 %v208
  %v414 = vunpack.c.h.b16 %v208
  %v415 = vunpack.c.l.b16 %v209
  %v416 = vunpack.c.h.b16 %v209
  %v417 = vunpack.c.l.b16 %v210
  %v418 = vunpack.c.h.b16 %v210
  %v419 = vunpack.c.l.b16 %v211
  %v420 = vunpack.c.h.b16 %v211
  %v421 = vunpack.c.l.b16 %v212
  %v422 = vunpack.c.h.b16 %v212
  %v423 = vunpack.c.l.b16 %v213
  %v424 = vunpack.c.h.b16 %v213
  %v425 = vunpack.c.l.b16 %v214
  %v426 = vunpack.c.h.b16 %v214
  %v427 = vunpack.c.l.b16 %v215
  %v428 = vunpack.c.h.b16 %v215
  %v429 = vunpack.c.l.b16 %v216
  %v430 = vunpack.c.h.b16 %v216
  %v431 = vunpack.c.l.b16 %v217
  %v432 = vunpack.c.h.b16 %v217
  %v433 = vunpack.c.l.b16 %v218
  %v434 = vunpack.c.h.b16 %v218
  %v435 = vunpack.c.l.b16 %v219
  %v436 = vunpack.c.h.b16 %v219
  %v437 = vunpack.c.l.b16 %v220
  %v438 = vunpack.c.h.b16 %v220
  %v439 = vunpack.c.l.b16 %v221
  %v440 = vunpack.c.h.b16 %v221
  %v441 = vunpack.c.l.b16 %v222
  %v442 = vunpack.c.h.b16 %v222
  %v443 = vunpack.c.l.b16 %v223
  %v444 = vunpack.c.h.b16 %v223
  %v445 = vunpack.c.l.b16 %v224
  %v446 = vunpack.c.h.b16 %v224
  %v447 = vunpack.c.l.b16 %v225
  %v448 = vunpack.c.h.b16 %v225
  %v449 = vunpack.c.l.b16 %v226
  %v450 = vunpack.c.h.b16 %v226
  %v451 = vunpack.c.l.b16 %v227
  %v452 = vunpack.c.h.b16 %v227
  %v453 = vunpack.c.l.b16 %v228
  %v454 = vunpack.c.h.b16 %v228
  %v455 = vunpack.c.l.b16 %v229
  %v456 = vunpack.c.h.b16 %v229
  %v457 = vunpack.c.l.b16 %v230
  %v458 = vunpack.c.h.b16 %v230
  %v459 = vunpack.c.l.b16 %v231
  %v460 = vunpack.c.h.b16 %v231
  %v461 = vunpack.c.l.b16 %v232
  %v462 = vunpack.c.h.b16 %v232
  %v463 = vunpack.c.l.b16 %v233
  %v464 = vunpack.c.h.b16 %v233
  %v465 = vunpack.c.l.b16 %v234
  %v466 = vunpack.c.h.b16 %v234
  %v467 = vunpack.c.l.b16 %v235
  %v468 = vunpack.c.h.b16 %v235
  %v469 = vunpack.c.l.b16 %v236
  %v470 = vunpack.c.h.b16 %v236
  %v471 = vpack.c.b16 %v347, %v343
  %v472 = vpack.c.b16 %v348, %v344
  %v473 = vpack.c.b16 %v349, %v345
  %v474 = vpack.c.b16 %v350, %v346
  %v475 = vpack.c.b16 %v355, %v351
  %v476 = vpack.c.b16 %v356, %v352
  %v477 = vpack.c.b16 %v357, %v353
  %v478 = vpack.c.b16 %v358, %v354
  %v479 = vpack.c.b16 %v363, %v359
  %v480 = vpack.c.b16 %v364, %v360
  %v481 = vpack.c.b16 %v365, %v361
  %v482 = vpack.c.b16 %v366, %v362
  %v483 = vpack.c.b16 %v371, %v367
  %v484 = vpack.c.b16 %v372, %v368
  %v485 = vpack.c.b16 %v373, %v369
  %v486 = vpack.c.b16 %v374, %v370
  %v487 = vpack.c.b16 %v379, %v375
  %v488 = vpack.c.b16 %v380, %v376
  %v489 = vpack.c.b16 %v381, %v377
  %v490 = vpack.c.b16 %v382, %v378
  %v491 = vpack.c.b16 %v387, %v383
  %v492 = vpack.c.b16 %v388, %v384
  %v493 = vpack.c.b16 %v389, %v385
  %v494 = vpack.c.b16 %v390, %v386
  %v495 = vpack.c.b16 %v395, %v391
  %v496 = vpack.c.b16 %v396, %v392
  %v497 = vpack.c.b16 %v397, %v393
  %v498 = vpack.c.b16 %v398, %v394
  %v499 = vpack.c.b16 %v403, %v399
  %v500 = vpack.c.b16 %v404, %v400
  %v501 = vpack.c.b16 %v405, %v401
  %v502 = vpack.c.b16 %v406, %v402
  %v503 = vpack.c.b16 %v411, %v407
  %v504 = vpack.c.b16 %v412, %v408
  %v505 = vpack.c.b16 %v413, %v409
  %v506 = vpack.c.b16 %v414, %v410
  %v507 = vpack.c.b16 %v419, %v415
  %v508 = vpack.c.b16 %v420, %v416
  %v509 = vpack.c.b16 %v421, %v417
  %v510 = vpack.c.b16 %v422, %v418
  %v511 = vpack.c.b16 %v427, %v423
  %v512 = vpack.c.b16 %v428, %v424
  %v513 = vpack.c.b16 %v429, %v425
  %v514 = vpack.c.b16 %v430, %v426
  %v515 = vpack.c.b16 %v435, %v431
  %v516 = vpack.c.b16 %v436, %v432
  %v517 = vpack.c.b16 %v437, %v433
  %v518 = vpack.c.b16 %v438, %v434
  %v519 = vpack.c.b16 %v443, %v439
  %v520 = vpack.c.b16 %v444, %v440
  %v521 = vpack.c.b16 %v445, %v441
  %v522 = vpack.c.b16 %v446, %v442
  %v523 = vpack.c.b16 %v451, %v447
  %v524 = vpack.c.b16 %v452, %v448
  %v525 = vpack.c.b16 %v453, %v449
  %v526 = vpack.c.b16 %v454, %v450
  %v527 = vpack.c.b16 %v459, %v455
  %v528 = vpack.c.b16 %v460, %v456
  %v529 = vpack.c.b16 %v461, %v457
  %v530 = vpack.c.b16 %v462, %v458
  %v531 = vpack.c.b16 %v467, %v463
  %v532 = vpack.c.b16 %v468, %v464
  %v533 = vpack.c.b16 %v469, %v465
  %v534 = vpack.c.b16 %v470, %v466
  %599 = vmatprep.subr.bf16.mxu0 %v500
  %600 = vmatpush1.bf16.msra.mxu0 %v499
  %601 = vmatprep.subr.bf16.mxu0 %v496
  %602 = vmatpush1.bf16.msra.mxu0 %v495
  %603 = vmatprep.subr.bf16.mxu0 %v492
  %604 = vmatpush1.bf16.msra.mxu0 %v491
  %605 = vmatprep.subr.bf16.mxu0 %v488
  %606 = vmatpush1.bf16.msra.mxu0 %v487
  %607 = vmatprep.subr.bf16.mxu0 %v484
  %608 = vmatpush1.bf16.msra.mxu0 %v483
  %609 = vmatprep.subr.bf16.mxu0 %v480
  %610 = vmatpush1.bf16.msra.mxu0 %v479
  %611 = vmatprep.subr.bf16.mxu0 %v476
  %612 = vmatpush1.bf16.msra.mxu0 %v475
  %613 = vmatprep.subr.bf16.mxu0 %v472
  %614 = vmatpush1.bf16.msra.mxu0 %v471
  %615 = vmatprep.subr.bf16.mxu0 %v532
  %616 = vmatpush2.bf16.msra.mxu0 %v531
  %617 = vmatprep.subr.bf16.mxu0 %v528
  %618 = vmatpush2.bf16.msra.mxu0 %v527
  %619 = vmatprep.subr.bf16.mxu0 %v524
  %620 = vmatpush2.bf16.msra.mxu0 %v523
  %621 = vmatprep.subr.bf16.mxu0 %v520
  %622 = vmatpush2.bf16.msra.mxu0 %v519
  %623 = vmatprep.subr.bf16.mxu0 %v516
  %624 = vmatpush2.bf16.msra.mxu0 %v515
  %625 = vmatprep.subr.bf16.mxu0 %v512
  %626 = vmatpush2.bf16.msra.mxu0 %v511
  %627 = vmatprep.subr.bf16.mxu0 %v508
  %628 = vmatpush2.bf16.msra.mxu0 %v507
  %629 = vmatprep.subr.bf16.mxu0 %v504
  %630 = vmatpush2.bf16.msra.mxu0 %v503
  %631 = vmatprep.mubr.bf16.mxu0 %v272
  %632 = vmatmul.mubr.bf16.gmra.mxu0 %v271
  %v633 = vpop.f32.mrf.mxu0
  %v634 = vadd.f32 %v242, %v633
  %v635 = vpop.f32.mrf.mxu0
  %v636 = vadd.f32 %v246, %v635
  %v637 = vpop.f32.mrf.mxu0
  %v638 = vadd.f32 %v242, %v637
  %v639 = vpop.f32.mrf.mxu0
  %v640 = vadd.f32 %v246, %v639
  %641 = vmatprep.mubr.bf16.mxu0 %v274
  %642 = vmatmul.mubr.bf16.gmra.mxu0 %v273
  %v643 = vpop.f32.mrf.mxu0
  %v644 = vadd.f32 %v242, %v643
  %v645 = vpop.f32.mrf.mxu0
  %v646 = vadd.f32 %v246, %v645
  %v647 = vpop.f32.mrf.mxu0
  %v648 = vadd.f32 %v242, %v647
  %v649 = vpop.f32.mrf.mxu0
  %v650 = vadd.f32 %v246, %v649
  %651 = vdwg.mxu0
  %652 = vmatprep.subr.bf16.mxu0 %v502
  %653 = vmatpush1.bf16.msra.mxu0 %v501
  %654 = vmatprep.subr.bf16.mxu0 %v498
  %655 = vmatpush1.bf16.msra.mxu0 %v497
  %656 = vmatprep.subr.bf16.mxu0 %v494
  %657 = vmatpush1.bf16.msra.mxu0 %v493
  %658 = vmatprep.subr.bf16.mxu0 %v490
  %659 = vmatpush1.bf16.msra.mxu0 %v489
  %660 = vmatprep.subr.bf16.mxu0 %v486
  %661 = vmatpush1.bf16.msra.mxu0 %v485
  %662 = vmatprep.subr.bf16.mxu0 %v482
  %663 = vmatpush1.bf16.msra.mxu0 %v481
  %664 = vmatprep.subr.bf16.mxu0 %v478
  %665 = vmatpush1.bf16.msra.mxu0 %v477
  %666 = vmatprep.subr.bf16.mxu0 %v474
  %667 = vmatpush1.bf16.msra.mxu0 %v473
  %668 = vmatprep.subr.bf16.mxu0 %v534
  %669 = vmatpush2.bf16.msra.mxu0 %v533
  %670 = vmatprep.subr.bf16.mxu0 %v530
  %671 = vmatpush2.bf16.msra.mxu0 %v529
  %672 = vmatprep.subr.bf16.mxu0 %v526
  %673 = vmatpush2.bf16.msra.mxu0 %v525
  %674 = vmatprep.subr.bf16.mxu0 %v522
  %675 = vmatpush2.bf16.msra.mxu0 %v521
  %676 = vmatprep.subr.bf16.mxu0 %v518
  %677 = vmatpush2.bf16.msra.mxu0 %v517
  %678 = vmatprep.subr.bf16.mxu0 %v514
  %679 = vmatpush2.bf16.msra.mxu0 %v513
  %680 = vmatprep.subr.bf16.mxu0 %v510
  %681 = vmatpush2.bf16.msra.mxu0 %v509
  %682 = vmatprep.subr.bf16.mxu0 %v506
  %683 = vmatpush2.bf16.msra.mxu0 %v505
  %684 = vmatprep.mubr.bf16.mxu0 %v272
  %685 = vmatmul.mubr.bf16.gmra.mxu0 %v271
  %v686 = vpop.f32.mrf.mxu0
  %v687 = vadd.f32 %v250, %v686
  %v688 = vpop.f32.mrf.mxu0
  %v689 = vadd.f32 %v254, %v688
  %v690 = vpop.f32.mrf.mxu0
  %v691 = vadd.f32 %v250, %v690
  %v692 = vpop.f32.mrf.mxu0
  %v693 = vadd.f32 %v254, %v692
  %694 = vmatprep.mubr.bf16.mxu0 %v274
  %695 = vmatmul.mubr.bf16.gmra.mxu0 %v273
  %v696 = vpop.f32.mrf.mxu0
  %v697 = vadd.f32 %v250, %v696
  %v698 = vpop.f32.mrf.mxu0
  %v699 = vadd.f32 %v254, %v698
  %v700 = vpop.f32.mrf.mxu0
  %v701 = vadd.f32 %v250, %v700
  %v702 = vpop.f32.mrf.mxu0
  %v703 = vadd.f32 %v254, %v702
  %704 = vdwg.mxu0
  %v705 = vmul.f32 %v634, 0.5
  %v706 = vmul.f32 %v636, 0.5
  %v707 = vmul.f32 %v687, 0.5
  %v708 = vmul.f32 %v689, 0.5
  %v709 = vmul.f32 %v638, 0.5
  %v710 = vmul.f32 %v640, 0.5
  %v711 = vmul.f32 %v691, 0.5
  %v712 = vmul.f32 %v693, 0.5
  %v713 = vmul.f32 %v644, 0.5
  %v714 = vmul.f32 %v646, 0.5
  %v715 = vmul.f32 %v697, 0.5
  %v716 = vmul.f32 %v699, 0.5
  %v717 = vmul.f32 %v648, 0.5
  %v718 = vmul.f32 %v650, 0.5
  %v719 = vmul.f32 %v701, 0.5
  %v720 = vmul.f32 %v703, 0.5
  %v721 = vmul.f32 %v634, 0.044715
  %v722 = vmul.f32 %v636, 0.044715
  %v723 = vmul.f32 %v687, 0.044715
  %v724 = vmul.f32 %v689, 0.044715
  %v725 = vmul.f32 %v638, 0.044715
  %v726 = vmul.f32 %v640, 0.044715
  %v727 = vmul.f32 %v691, 0.044715
  %v728 = vmul.f32 %v693, 0.044715
  %v729 = vmul.f32 %v644, 0.044715
  %v730 = vmul.f32 %v646, 0.044715
  %v731 = vmul.f32 %v697, 0.044715
  %v732 = vmul.f32 %v699, 0.044715
  %v733 = vmul.f32 %v648, 0.044715
  %v734 = vmul.f32 %v650, 0.044715
  %v735 = vmul.f32 %v701, 0.044715
  %v736 = vmul.f32 %v703, 0.044715
  %v737 = vmul.f32 %v721, %v634
  %v738 = vmul.f32 %v722, %v636
  %v739 = vmul.f32 %v723, %v687
  %v740 = vmul.f32 %v724, %v689
  %v741 = vmul.f32 %v725, %v638
  %v742 = vmul.f32 %v726, %v640
  %v743 = vmul.f32 %v727, %v691
  %v744 = vmul.f32 %v728, %v693
  %v745 = vmul.f32 %v729, %v644
  %v746 = vmul.f32 %v730, %v646
  %v747 = vmul.f32 %v731, %v697
  %v748 = vmul.f32 %v732, %v699
  %v749 = vmul.f32 %v733, %v648
  %v750 = vmul.f32 %v734, %v650
  %v751 = vmul.f32 %v735, %v701
  %v752 = vmul.f32 %v736, %v703
  %v753 = vmul.f32 %v737, %v634
  %v754 = vmul.f32 %v738, %v636
  %v755 = vmul.f32 %v739, %v687
  %v756 = vmul.f32 %v740, %v689
  %v757 = vmul.f32 %v741, %v638
  %v758 = vmul.f32 %v742, %v640
  %v759 = vmul.f32 %v743, %v691
  %v760 = vmul.f32 %v744, %v693
  %v761 = vmul.f32 %v745, %v644
  %v762 = vmul.f32 %v746, %v646
  %v763 = vmul.f32 %v747, %v697
  %v764 = vmul.f32 %v748, %v699
  %v765 = vmul.f32 %v749, %v648
  %v766 = vmul.f32 %v750, %v650
  %v767 = vmul.f32 %v751, %v701
  %v768 = vmul.f32 %v752, %v703
  %v769 = vadd.f32 %v634, %v753
  %v770 = vadd.f32 %v636, %v754
  %v771 = vadd.f32 %v687, %v755
  %v772 = vadd.f32 %v689, %v756
  %v773 = vadd.f32 %v638, %v757
  %v774 = vadd.f32 %v640, %v758
  %v775 = vadd.f32 %v691, %v759
  %v776 = vadd.f32 %v693, %v760
  %v777 = vadd.f32 %v644, %v761
  %v778 = vadd.f32 %v646, %v762
  %v779 = vadd.f32 %v697, %v763
  %v780 = vadd.f32 %v699, %v764
  %v781 = vadd.f32 %v648, %v765
  %v782 = vadd.f32 %v650, %v766
  %v783 = vadd.f32 %v701, %v767
  %v784 = vadd.f32 %v703, %v768
  %v785 = vmul.f32 %v769, 0.7978846
  %v786 = vmul.f32 %v770, 0.7978846
  %v787 = vmul.f32 %v771, 0.7978846
  %v788 = vmul.f32 %v772, 0.7978846
  %v789 = vmul.f32 %v773, 0.7978846
  %v790 = vmul.f32 %v774, 0.7978846
  %v791 = vmul.f32 %v775, 0.7978846
  %v792 = vmul.f32 %v776, 0.7978846
  %v793 = vmul.f32 %v777, 0.7978846
  %v794 = vmul.f32 %v778, 0.7978846
  %v795 = vmul.f32 %v779, 0.7978846
  %v796 = vmul.f32 %v780, 0.7978846
  %v797 = vmul.f32 %v781, 0.7978846
  %v798 = vmul.f32 %v782, 0.7978846
  %v799 = vmul.f32 %v783, 0.7978846
  %v800 = vmul.f32 %v784, 0.7978846
  %v801 = vtanh.pop %v785
  %v802 = vtanh.pop %v786
  %v803 = vtanh.pop %v787
  %v804 = vtanh.pop %v788
  %v805 = vtanh.pop %v789
  %v806 = vtanh.pop %v790
  %v807 = vtanh.pop %v791
  %v808 = vtanh.pop %v792
  %v809 = vtanh.pop %v793
  %v810 = vtanh.pop %v794
  %v811 = vtanh.pop %v795
  %v812 = vtanh.pop %v796
  %v813 = vtanh.pop %v797
  %v814 = vtanh.pop %v798
  %v815 = vtanh.pop %v799
  %v816 = vtanh.pop %v800
  %v817 = vadd.f32 %v801, 1.0
  %v818 = vadd.f32 %v802, 1.0
  %v819 = vadd.f32 %v803, 1.0
  %v820 = vadd.f32 %v804, 1.0
  %v821 = vadd.f32 %v805, 1.0
  %v822 = vadd.f32 %v806, 1.0
  %v823 = vadd.f32 %v807, 1.0
  %v824 = vadd.f32 %v808, 1.0
  %v825 = vadd.f32 %v809, 1.0
  %v826 = vadd.f32 %v810, 1.0
  %v827 = vadd.f32 %v811, 1.0
  %v828 = vadd.f32 %v812, 1.0
  %v829 = vadd.f32 %v813, 1.0
  %v830 = vadd.f32 %v814, 1.0
  %v831 = vadd.f32 %v815, 1.0
  %v832 = vadd.f32 %v816, 1.0
  %v833 = vmul.f32 %v705, %v817
  %v834 = vmul.f32 %v706, %v818
  %v835 = vmul.f32 %v707, %v819
  %v836 = vmul.f32 %v708, %v820
  %v837 = vmul.f32 %v709, %v821
  %v838 = vmul.f32 %v710, %v822
  %v839 = vmul.f32 %v711, %v823
  %v840 = vmul.f32 %v712, %v824
  %v841 = vmul.f32 %v713, %v825
  %v842 = vmul.f32 %v714, %v826
  %v843 = vmul.f32 %v715, %v827
  %v844 = vmul.f32 %v716, %v828
  %v845 = vmul.f32 %v717, %v829
  %v846 = vmul.f32 %v718, %v830
  %v847 = vmul.f32 %v719, %v831
  %v848 = vmul.f32 %v720, %v832
  %v849 = vpack.c.bf16 %v837, %v833
  %v850 = vpack.c.bf16 %v838, %v834
  %v851 = vpack.c.bf16 %v839, %v835
  %v852 = vpack.c.bf16 %v840, %v836
  %v853 = vpack.c.bf16 %v845, %v841
  %v854 = vpack.c.bf16 %v846, %v842
  %v855 = vpack.c.bf16 %v847, %v843
  %v856 = vpack.c.bf16 %v848, %v844
  %v865 = vunpack.c.l.b16 %v849
  %v866 = vunpack.c.l.b16 %v850
  %v867 = vunpack.c.l.b16 %v851
  %v868 = vunpack.c.l.b16 %v852
  %v869 = vunpack.c.h.b16 %v849
  %v870 = vunpack.c.h.b16 %v850
  %v871 = vunpack.c.h.b16 %v851
  %v872 = vunpack.c.h.b16 %v852
  %v873 = vunpack.c.l.b16 %v853
  %v874 = vunpack.c.l.b16 %v854
  %v875 = vunpack.c.l.b16 %v855
  %v876 = vunpack.c.l.b16 %v856
  %v877 = vunpack.c.h.b16 %v853
  %v878 = vunpack.c.h.b16 %v854
  %v879 = vunpack.c.h.b16 %v855
  %v880 = vunpack.c.h.b16 %v856
  %v881 = vpack.c.b16 %v866, %v865
  %v882 = vpack.c.b16 %v868, %v867
  %v883 = vpack.c.b16 %v870, %v869
  %v884 = vpack.c.b16 %v872, %v871
  %v885 = vpack.c.b16 %v874, %v873
  %v886 = vpack.c.b16 %v876, %v875
  %v887 = vpack.c.b16 %v878, %v877
  %v888 = vpack.c.b16 %v880, %v879
  %897 = vst [vmem:[%s5] sm:$0xff] %v881
  %898 = vst [vmem:[%s5 + $0x8] sm:$0xff] %v882
  %899 = vst [vmem:[%s5 + $0x10] sm:$0xff] %v883
  %900 = vst [vmem:[%s5 + $0x18] sm:$0xff] %v884
  %901 = vst [vmem:[%s5 + $0x20] sm:$0xff] %v885
  %902 = vst [vmem:[%s5 + $0x28] sm:$0xff] %v886
  %903 = vst [vmem:[%s5 + $0x30] sm:$0xff] %v887
  %904 = vst [vmem:[%s5 + $0x38] sm:$0xff] %v888
  // Predicated region
  $region26: #{vision_encoder_forward.16} parent=0 // pred_check
    _
  $region27: #{vision_encoder_forward.16} parent=0 // pred_check_branch
    %906 = sbr.rel (0) target = $region29
  $region28: #{vision_encoder_forward.16} parent=0 // pred_region
    _
  $region29: #{vision_encoder_forward.16} parent=0 // pred_fallthru
    _
  // Predicated region
  $region30: #{vision_encoder_forward.16} parent=0 // pred_check
    _
  $region31: #{vision_encoder_forward.16} parent=0 // pred_check_branch
    %908 = sbr.rel (0) target = $region33
  $region32: #{vision_encoder_forward.16} parent=0 // pred_region
    _
  $region33: #{vision_encoder_forward.16} parent=0 // pred_fallthru
    _

</llo_original>
